<compile_context>
chip_gen: v6e
topology: v6e:2x2x1
jax: 0.10.0
libtpu: 0.0.40
codegen_flags: <defaults>
</compile_context>

<pallas_src>
import numpy as np
import jax
import jax.numpy as jnp
from jax.experimental import pallas as pl

# ----------------------------- problem sizes -----------------------------
N = 2            # batch
C_IN = 96        # channels of x1 / x2
C_MID = 32       # conv1 output channels
C_OUT = 3        # conv_transpose2 output channels (it is a plain Conv2d)
C_PAD = 8        # C_OUT padded to a full sublane tile
H1, W1 = 8, 8    # spatial of x1 (and of conv1 input)
H2, W2 = 4, 4    # spatial of x2 (interpolated up to x1's size)
H3, W3 = 32, 32  # spatial after Upsample(scale_factor=4)
P1 = H1 * W1     # 64
P2 = H2 * W2     # 16
P3 = H3 * W3     # 1024
TAPS = 9


# ------------------ bilinear-resize matrices (PyTorch semantics) ------------------
def bilinear_matrix(in_size, out_size, align_corners):
    i = np.arange(out_size, dtype=np.float64)
    if align_corners:
        src = i * (in_size - 1) / (out_size - 1) if out_size > 1 else np.zeros_like(i)
    else:
        scale = in_size / out_size
        src = (i + 0.5) * scale - 0.5
        src = np.maximum(src, 0.0)          # PyTorch clamps negative src to 0
    x0 = np.minimum(np.floor(src).astype(np.int64), in_size - 1)
    x1 = np.minimum(x0 + 1, in_size - 1)
    lam = src - x0
    M = np.zeros((out_size, in_size), dtype=np.float64)
    M[np.arange(out_size), x0] += 1.0 - lam
    M[np.arange(out_size), x1] += lam
    return M


def resize_matrix_2d(hin, win, hout, wout, align_corners):
    Rh = bilinear_matrix(hin, hout, align_corners)
    Rw = bilinear_matrix(win, wout, align_corners)
    # (Rh ⊗ Rw)[(ho*Wout+wo), (hi*Win+wi)] = Rh[ho,hi] * Rw[wo,wi]
    return np.kron(Rh, Rw).astype(np.float32)


def shift_matrix(h, w, dh, dw):
    """S[p_out, p_src]: (S @ img_flat)[r*w+c] = img[r+dh, c+dw], zero outside."""
    n = h * w
    m = np.zeros((n, n), dtype=np.float64)
    for r in range(h):
        for c in range(w):
            rr, cc = r + dh, c + dw
            if 0 <= rr < h and 0 <= cc < w:
                m[r * w + c, rr * w + cc] = 1.0
    return m


# ----------------------------- host-side parameter packing -----------------------------
def build_kernel_params(w1, b1, w2, b2):
    """w1: (9, C_IN, C_MID), b1: (C_MID,), w2: (9, C_MID, C_OUT), b2: (C_OUT,);
    tap index t = kh*3 + kw, offsets (dh, dw) = (kh-1, kw-1)."""
    r1 = resize_matrix_2d(H2, W2, H1, W1, align_corners=False)    # (64, 16)
    r2 = resize_matrix_2d(H1, W1, H3, W3, align_corners=True)     # (1024, 64)
    r1t = r1.T.astype(np.float32)                                 # (16, 64)

    # Batch-block-diagonal interpolation matrix: (N*16, N*64); keeps the batch
    # on the lane axis through the whole front section with a single matmul.
    r1bd = np.zeros((N * P2, N * P1), np.float32)
    for n in range(N):
        r1bd[n * P2:(n + 1) * P2, n * P1:(n + 1) * P1] = r1t

    w1np = np.asarray(w1, np.float32)                             # (9, 96, 32)
    w2np = np.asarray(w2, np.float32)                             # (9, 32, 3)

    # conv1: stacked transposed weights (9*32, 96), row index = t*32 + co.
    w1t = w1np.transpose(0, 2, 1).reshape(TAPS * C_MID, C_IN)     # (288, 96)
    # conv1 shift matrices, tap-stacked on rows: row t*64+s holds S1_t^T[s, :].
    s1stack = np.concatenate(
        [shift_matrix(H1, W1, kh - 1, kw - 1).T
         for kh in range(3) for kw in range(3)], axis=0).astype(np.float32)   # (576, 64)

    # conv2: C_OUT padded to 8 sublanes; row index = t*8 + co.
    w2t = np.zeros((TAPS * C_PAD, C_MID), np.float32)
    for t in range(TAPS):
        w2t[t * C_PAD:t * C_PAD + C_OUT, :] = w2np[t].T            # (72, 32)
    # Upsample matrix with the conv2 taps folded in, tap-stacked on rows:
    # row t*64+s holds (S2_t @ R2)^T[s, :].
    r2stack = np.concatenate(
        [(shift_matrix(H3, W3, kh - 1, kw - 1) @ r2).T
         for kh in range(3) for kw in range(3)], axis=0).astype(np.float32)   # (576, 1024)

    b1c = np.asarray(b1, np.float32).reshape(C_MID, 1)            # (32, 1)
    b2c = np.zeros((N * C_PAD, 1), np.float32)                    # (16, 1), rows n*8+co
    for n in range(N):
        b2c[n * C_PAD:n * C_PAD + C_OUT, 0] = np.asarray(b2, np.float32)

    return tuple(jnp.asarray(a) for a in (r1bd, w1t, b1c, s1stack, w2t, b2c, r2stack))


# ----------------------------- Pallas kernel -----------------------------
def recon_kernel(x1_ref, x2_ref, r1bd_ref, w1t_ref, b1_ref, s1_ref,
                 w2t_ref, b2_ref, r2_ref, out_ref):
    # x1_ref: (N, 96, 64)   x2_ref: (N, 96, 16)      [channels x spatial]
    # r1bd_ref: (32, 128)   w1t_ref: (288, 96)       b1_ref: (32, 1)
    # s1_ref: (576, 64)     w2t_ref: (72, 32)        b2_ref: (16, 1)
    # r2_ref: (576, 1024)                            out_ref: (16, 1024)

    # Batch lane-concatenated activations: lanes index [n*spatial + s].
    x1c = jnp.concatenate([x1_ref[n] for n in range(N)], axis=1)          # (96, 128)
    x2c = jnp.concatenate([x2_ref[n] for n in range(N)], axis=1)          # (96, 32)

    # F.interpolate(x2 -> 8x8, bilinear, align_corners=False) + x1, both batches
    # in one matmul via the batch-block-diagonal resize matrix.
    xst = jnp.dot(x2c, r1bd_ref[...], preferred_element_type=jnp.float32) + x1c   # (96, 128)

    # conv1 channel contraction for all 9 taps and both batch items at once.
    q1 = jnp.dot(w1t_ref[...], xst, preferred_element_type=jnp.float32)   # (288, 128)

    # Fused tap sum: per batch item, lane-concat the 9 tap blocks -> (32, 576)
    # and contract against the stacked shift matrices in a single K=576 matmul.
    y1_parts = []
    for n in range(N):
        q1n = jnp.concatenate(
            [q1[t * C_MID:(t + 1) * C_MID, n * P1:(n + 1) * P1] for t in range(TAPS)],
            axis=1)                                                        # (32, 576)
        y1_parts.append(jnp.dot(q1n, s1_ref[...],
                                preferred_element_type=jnp.float32))       # (32, 64)
    y1 = jnp.maximum(jnp.concatenate(y1_parts, axis=1) + b1_ref[...], 0.0)  # (32, 128)

    # conv2 channel contraction (all taps, both batch items).
    q2 = jnp.dot(w2t_ref[...], y1, preferred_element_type=jnp.float32)     # (72, 128)

    # Fused upsample + tap sum: LHS (N*C_PAD, 9*64) = (16, 576); the single
    # (16, 576) @ (576, 1024) matmul produces the entire output, stored once.
    q2w = jnp.concatenate(
        [jnp.concatenate(
            [q2[t * C_PAD:(t + 1) * C_PAD, n * P1:(n + 1) * P1] for t in range(TAPS)],
            axis=1)
         for n in range(N)], axis=0)                                       # (16, 576)
    out = jnp.dot(q2w, r2_ref[...], preferred_element_type=jnp.float32)    # (16, 1024)
    out_ref[...] = jnp.maximum(out + b2_ref[...], 0.0)


# ----------------------------- wrapper -----------------------------
def recon_forward(x1_nchw, x2_nchw, kparams):
    r1bd, w1t, b1c, s1stack, w2t, b2c, r2stack = kparams
    n = x1_nchw.shape[0]
    assert n == N
    # NCHW reshapes directly to (N, C, H*W) -- no transposes needed.
    x1 = x1_nchw.reshape(n, C_IN, P1)
    x2 = x2_nchw.reshape(n, C_IN, P2)

    out = pl.pallas_call(
        recon_kernel,
        out_shape=jax.ShapeDtypeStruct((N * C_PAD, P3), jnp.float32),
        cost_estimate=pl.CostEstimate(flops=32_000_000,
                                      transcendentals=0,
                                      bytes_accessed=2_800_000),
    )(x1, x2, r1bd, w1t, b1c, s1stack, w2t, b2c, r2stack)

    # (16, 1024) -> (N, 3, 32, 32): rows are [n*8 + co]; drop padded channels.
    return out.reshape(N, C_PAD, P3)[:, :C_OUT, :].reshape(N, C_OUT, H3, W3)


# ----------------------------- pure-JAX reference -----------------------------
def reference(x1_nchw, x2_nchw, params):
    r1, w1, b1, r2, w2, b2 = params
    n = x1_nchw.shape[0]
    x1 = jnp.transpose(x1_nchw, (0, 2, 3, 1))                        # NHWC
    x2 = jnp.transpose(x2_nchw, (0, 2, 3, 1)).reshape(n, H2 * W2, C_IN)
    xr = jnp.einsum("oi,nic->noc", r1, x2).reshape(n, H1, W1, C_IN) + x1
    w1h = w1.reshape(3, 3, C_IN, C_MID)
    y1 = jax.lax.conv_general_dilated(xr, w1h, (1, 1), "SAME",
                                      dimension_numbers=("NHWC", "HWIO", "NHWC"))
    y1 = jax.nn.relu(y1 + b1.reshape(1, 1, 1, C_MID))
    up = jnp.einsum("oi,nic->noc", r2,
                    y1.reshape(n, H1 * W1, C_MID)).reshape(n, H3, W3, C_MID)
    w2h = w2.reshape(3, 3, C_MID, C_OUT)
    y2 = jax.lax.conv_general_dilated(up, w2h, (1, 1), "SAME",
                                      dimension_numbers=("NHWC", "HWIO", "NHWC"))
    y2 = jax.nn.relu(y2 + b2.reshape(1, 1, 1, C_OUT))
    return jnp.transpose(y2, (0, 3, 1, 2))


# ----------------------------- main -----------------------------
if __name__ == "__main__":
    key = jax.random.PRNGKey(0)
    k1, k2, k3, k4, k5, k6 = jax.random.split(key, 6)

    # Deterministic synthetic parameters (tap-major: (9, Cin, Cout)).
    w1 = jax.random.normal(k1, (TAPS, C_IN, C_MID), jnp.float32) * 0.05
    b1 = jax.random.normal(k2, (C_MID,), jnp.float32) * 0.05
    w2 = jax.random.normal(k3, (TAPS, C_MID, C_OUT), jnp.float32) * 0.05
    b2 = jax.random.normal(k4, (C_OUT,), jnp.float32) * 0.05

    # Inputs (NCHW, like the PyTorch module): x = (x1, x2)
    x1_in = jax.random.normal(k5, (N, C_IN, H1, W1), jnp.float32)
    x2_in = jax.random.normal(k6, (N, C_IN, H2, W2), jnp.float32)

    kparams = build_kernel_params(w1, b1, w2, b2)
    out = jax.block_until_ready(recon_forward(x1_in, x2_in, kparams))

    R1 = jnp.asarray(resize_matrix_2d(H2, W2, H1, W1, align_corners=False))
    R2 = jnp.asarray(resize_matrix_2d(H1, W1, H3, W3, align_corners=True))
    ref = jax.block_until_ready(reference(x1_in, x2_in, (R1, w1, b1, R2, w2, b2)))

    assert out.shape == (N, C_OUT, H3, W3), out.shape
    np.testing.assert_allclose(np.asarray(out), np.asarray(ref), rtol=2e-3, atol=2e-3)

    print("KERNEL_OK")
</pallas_src>

<mosaic_0001>
module attributes {stable_mosaic.version = 11 : i64} {
  func.func @recon_kernel(%arg0: memref<2x96x64xf32, #tpu.memory_space<vmem>>, %arg1: memref<2x96x16xf32, #tpu.memory_space<vmem>>, %arg2: memref<32x128xf32, #tpu.memory_space<vmem>>, %arg3: memref<288x96xf32, #tpu.memory_space<vmem>>, %arg4: memref<32x1xf32, #tpu.memory_space<vmem>>, %arg5: memref<576x64xf32, #tpu.memory_space<vmem>>, %arg6: memref<72x32xf32, #tpu.memory_space<vmem>>, %arg7: memref<16x1xf32, #tpu.memory_space<vmem>>, %arg8: memref<576x1024xf32, #tpu.memory_space<vmem>>, %arg9: memref<16x1024xf32, #tpu.memory_space<vmem>>) attributes {dimension_semantics = [], scalar_prefetch = 0 : i64, scratch_operands = 0 : i64, tpu.core_type = #tpu.core_type<tc>} {
    %c0 = arith.constant 0 : index
    %c0_0 = arith.constant 0 : index
    %c0_1 = arith.constant 0 : index
    %0 = vector.load %arg0[%c0, %c0_0, %c0_1] : memref<2x96x64xf32, #tpu.memory_space<vmem>>, vector<1x96x64xf32>
    %1 = vector.shape_cast %0 : vector<1x96x64xf32> to vector<96x64xf32>
    %c1 = arith.constant 1 : index
    %c0_2 = arith.constant 0 : index
    %c0_3 = arith.constant 0 : index
    %2 = vector.load %arg0[%c1, %c0_2, %c0_3] : memref<2x96x64xf32, #tpu.memory_space<vmem>>, vector<1x96x64xf32>
    %3 = vector.shape_cast %2 : vector<1x96x64xf32> to vector<96x64xf32>
    %4 = tpu.concatenate %1, %3 in 1 : vector<96x64xf32>, vector<96x64xf32> -> vector<96x128xf32>
    %c0_4 = arith.constant 0 : index
    %c0_5 = arith.constant 0 : index
    %c0_6 = arith.constant 0 : index
    %5 = vector.load %arg1[%c0_4, %c0_5, %c0_6] : memref<2x96x16xf32, #tpu.memory_space<vmem>>, vector<1x96x16xf32>
    %6 = vector.shape_cast %5 : vector<1x96x16xf32> to vector<96x16xf32>
    %c1_7 = arith.constant 1 : index
    %c0_8 = arith.constant 0 : index
    %c0_9 = arith.constant 0 : index
    %7 = vector.load %arg1[%c1_7, %c0_8, %c0_9] : memref<2x96x16xf32, #tpu.memory_space<vmem>>, vector<1x96x16xf32>
    %8 = vector.shape_cast %7 : vector<1x96x16xf32> to vector<96x16xf32>
    %9 = tpu.concatenate %6, %8 in 1 : vector<96x16xf32>, vector<96x16xf32> -> vector<96x32xf32>
    %c0_10 = arith.constant 0 : index
    %c0_11 = arith.constant 0 : index
    %10 = vector.load %arg2[%c0_10, %c0_11] : memref<32x128xf32, #tpu.memory_space<vmem>>, vector<32x128xf32>
    %cst = arith.constant dense<0.000000e+00> : vector<96x128xf32>
    %11 = tpu.matmul %9, %10, %cst {dimension_numbers = #tpu.dot_dimension_numbers<[1], [0], [0], [1], [0, 0, 1, 1], [], []>} : vector<96x32xf32>, vector<32x128xf32>, vector<96x128xf32> -> vector<96x128xf32>
    %12 = arith.addf %11, %4 : vector<96x128xf32>
    %c0_12 = arith.constant 0 : index
    %c0_13 = arith.constant 0 : index
    %13 = vector.load %arg3[%c0_12, %c0_13] : memref<288x96xf32, #tpu.memory_space<vmem>>, vector<288x96xf32>
    %cst_14 = arith.constant dense<0.000000e+00> : vector<288x128xf32>
    %14 = tpu.matmul %13, %12, %cst_14 {dimension_numbers = #tpu.dot_dimension_numbers<[1], [0], [0], [1], [0, 0, 1, 1], [], []>} : vector<288x96xf32>, vector<96x128xf32>, vector<288x128xf32> -> vector<288x128xf32>
    %15 = vector.extract_strided_slice %14 {offsets = [0, 0], sizes = [32, 64], strides = [1, 1]} : vector<288x128xf32> to vector<32x64xf32>
    %16 = vector.extract_strided_slice %14 {offsets = [32, 0], sizes = [32, 64], strides = [1, 1]} : vector<288x128xf32> to vector<32x64xf32>
    %17 = vector.extract_strided_slice %14 {offsets = [64, 0], sizes = [32, 64], strides = [1, 1]} : vector<288x128xf32> to vector<32x64xf32>
    %18 = vector.extract_strided_slice %14 {offsets = [96, 0], sizes = [32, 64], strides = [1, 1]} : vector<288x128xf32> to vector<32x64xf32>
    %19 = vector.extract_strided_slice %14 {offsets = [128, 0], sizes = [32, 64], strides = [1, 1]} : vector<288x128xf32> to vector<32x64xf32>
    %20 = vector.extract_strided_slice %14 {offsets = [160, 0], sizes = [32, 64], strides = [1, 1]} : vector<288x128xf32> to vector<32x64xf32>
    %21 = vector.extract_strided_slice %14 {offsets = [192, 0], sizes = [32, 64], strides = [1, 1]} : vector<288x128xf32> to vector<32x64xf32>
    %22 = vector.extract_strided_slice %14 {offsets = [224, 0], sizes = [32, 64], strides = [1, 1]} : vector<288x128xf32> to vector<32x64xf32>
    %23 = vector.extract_strided_slice %14 {offsets = [256, 0], sizes = [32, 64], strides = [1, 1]} : vector<288x128xf32> to vector<32x64xf32>
    %24 = tpu.concatenate %15, %16, %17, %18, %19, %20, %21, %22, %23 in 1 : vector<32x64xf32>, vector<32x64xf32>, vector<32x64xf32>, vector<32x64xf32>, vector<32x64xf32>, vector<32x64xf32>, vector<32x64xf32>, vector<32x64xf32>, vector<32x64xf32> -> vector<32x576xf32>
    %c0_15 = arith.constant 0 : index
    %c0_16 = arith.constant 0 : index
    %25 = vector.load %arg5[%c0_15, %c0_16] : memref<576x64xf32, #tpu.memory_space<vmem>>, vector<576x64xf32>
    %cst_17 = arith.constant dense<0.000000e+00> : vector<32x64xf32>
    %26 = tpu.matmul %24, %25, %cst_17 {dimension_numbers = #tpu.dot_dimension_numbers<[1], [0], [0], [1], [0, 0, 1, 1], [], []>} : vector<32x576xf32>, vector<576x64xf32>, vector<32x64xf32> -> vector<32x64xf32>
    %27 = vector.extract_strided_slice %14 {offsets = [0, 64], sizes = [32, 64], strides = [1, 1]} : vector<288x128xf32> to vector<32x64xf32>
    %28 = vector.extract_strided_slice %14 {offsets = [32, 64], sizes = [32, 64], strides = [1, 1]} : vector<288x128xf32> to vector<32x64xf32>
    %29 = vector.extract_strided_slice %14 {offsets = [64, 64], sizes = [32, 64], strides = [1, 1]} : vector<288x128xf32> to vector<32x64xf32>
    %30 = vector.extract_strided_slice %14 {offsets = [96, 64], sizes = [32, 64], strides = [1, 1]} : vector<288x128xf32> to vector<32x64xf32>
    %31 = vector.extract_strided_slice %14 {offsets = [128, 64], sizes = [32, 64], strides = [1, 1]} : vector<288x128xf32> to vector<32x64xf32>
    %32 = vector.extract_strided_slice %14 {offsets = [160, 64], sizes = [32, 64], strides = [1, 1]} : vector<288x128xf32> to vector<32x64xf32>
    %33 = vector.extract_strided_slice %14 {offsets = [192, 64], sizes = [32, 64], strides = [1, 1]} : vector<288x128xf32> to vector<32x64xf32>
    %34 = vector.extract_strided_slice %14 {offsets = [224, 64], sizes = [32, 64], strides = [1, 1]} : vector<288x128xf32> to vector<32x64xf32>
    %35 = vector.extract_strided_slice %14 {offsets = [256, 64], sizes = [32, 64], strides = [1, 1]} : vector<288x128xf32> to vector<32x64xf32>
    %36 = tpu.concatenate %27, %28, %29, %30, %31, %32, %33, %34, %35 in 1 : vector<32x64xf32>, vector<32x64xf32>, vector<32x64xf32>, vector<32x64xf32>, vector<32x64xf32>, vector<32x64xf32>, vector<32x64xf32>, vector<32x64xf32>, vector<32x64xf32> -> vector<32x576xf32>
    %c0_18 = arith.constant 0 : index
    %c0_19 = arith.constant 0 : index
    %37 = vector.load %arg5[%c0_18, %c0_19] : memref<576x64xf32, #tpu.memory_space<vmem>>, vector<576x64xf32>
    %cst_20 = arith.constant dense<0.000000e+00> : vector<32x64xf32>
    %38 = tpu.matmul %36, %37, %cst_20 {dimension_numbers = #tpu.dot_dimension_numbers<[1], [0], [0], [1], [0, 0, 1, 1], [], []>} : vector<32x576xf32>, vector<576x64xf32>, vector<32x64xf32> -> vector<32x64xf32>
    %39 = tpu.concatenate %26, %38 in 1 : vector<32x64xf32>, vector<32x64xf32> -> vector<32x128xf32>
    %c0_21 = arith.constant 0 : index
    %c0_22 = arith.constant 0 : index
    %40 = vector.load %arg4[%c0_21, %c0_22] : memref<32x1xf32, #tpu.memory_space<vmem>>, vector<32x1xf32>
    %41 = vector.broadcast %40 : vector<32x1xf32> to vector<32x128xf32>
    %42 = arith.addf %39, %41 : vector<32x128xf32>
    %cst_23 = arith.constant 0.000000e+00 : f32
    %43 = vector.broadcast %cst_23 : f32 to vector<32x128xf32>
    %44 = arith.maximumf %42, %43 : vector<32x128xf32>
    %c0_24 = arith.constant 0 : index
    %c0_25 = arith.constant 0 : index
    %45 = vector.load %arg6[%c0_24, %c0_25] : memref<72x32xf32, #tpu.memory_space<vmem>>, vector<72x32xf32>
    %cst_26 = arith.constant dense<0.000000e+00> : vector<72x128xf32>
    %46 = tpu.matmul %45, %44, %cst_26 {dimension_numbers = #tpu.dot_dimension_numbers<[1], [0], [0], [1], [0, 0, 1, 1], [], []>} : vector<72x32xf32>, vector<32x128xf32>, vector<72x128xf32> -> vector<72x128xf32>
    %47 = vector.extract_strided_slice %46 {offsets = [0, 0], sizes = [8, 64], strides = [1, 1]} : vector<72x128xf32> to vector<8x64xf32>
    %48 = vector.extract_strided_slice %46 {offsets = [8, 0], sizes = [8, 64], strides = [1, 1]} : vector<72x128xf32> to vector<8x64xf32>
    %49 = vector.extract_strided_slice %46 {offsets = [16, 0], sizes = [8, 64], strides = [1, 1]} : vector<72x128xf32> to vector<8x64xf32>
    %50 = vector.extract_strided_slice %46 {offsets = [24, 0], sizes = [8, 64], strides = [1, 1]} : vector<72x128xf32> to vector<8x64xf32>
    %51 = vector.extract_strided_slice %46 {offsets = [32, 0], sizes = [8, 64], strides = [1, 1]} : vector<72x128xf32> to vector<8x64xf32>
    %52 = vector.extract_strided_slice %46 {offsets = [40, 0], sizes = [8, 64], strides = [1, 1]} : vector<72x128xf32> to vector<8x64xf32>
    %53 = vector.extract_strided_slice %46 {offsets = [48, 0], sizes = [8, 64], strides = [1, 1]} : vector<72x128xf32> to vector<8x64xf32>
    %54 = vector.extract_strided_slice %46 {offsets = [56, 0], sizes = [8, 64], strides = [1, 1]} : vector<72x128xf32> to vector<8x64xf32>
    %55 = vector.extract_strided_slice %46 {offsets = [64, 0], sizes = [8, 64], strides = [1, 1]} : vector<72x128xf32> to vector<8x64xf32>
    %56 = tpu.concatenate %47, %48, %49, %50, %51, %52, %53, %54, %55 in 1 : vector<8x64xf32>, vector<8x64xf32>, vector<8x64xf32>, vector<8x64xf32>, vector<8x64xf32>, vector<8x64xf32>, vector<8x64xf32>, vector<8x64xf32>, vector<8x64xf32> -> vector<8x576xf32>
    %57 = vector.extract_strided_slice %46 {offsets = [0, 64], sizes = [8, 64], strides = [1, 1]} : vector<72x128xf32> to vector<8x64xf32>
    %58 = vector.extract_strided_slice %46 {offsets = [8, 64], sizes = [8, 64], strides = [1, 1]} : vector<72x128xf32> to vector<8x64xf32>
    %59 = vector.extract_strided_slice %46 {offsets = [16, 64], sizes = [8, 64], strides = [1, 1]} : vector<72x128xf32> to vector<8x64xf32>
    %60 = vector.extract_strided_slice %46 {offsets = [24, 64], sizes = [8, 64], strides = [1, 1]} : vector<72x128xf32> to vector<8x64xf32>
    %61 = vector.extract_strided_slice %46 {offsets = [32, 64], sizes = [8, 64], strides = [1, 1]} : vector<72x128xf32> to vector<8x64xf32>
    %62 = vector.extract_strided_slice %46 {offsets = [40, 64], sizes = [8, 64], strides = [1, 1]} : vector<72x128xf32> to vector<8x64xf32>
    %63 = vector.extract_strided_slice %46 {offsets = [48, 64], sizes = [8, 64], strides = [1, 1]} : vector<72x128xf32> to vector<8x64xf32>
    %64 = vector.extract_strided_slice %46 {offsets = [56, 64], sizes = [8, 64], strides = [1, 1]} : vector<72x128xf32> to vector<8x64xf32>
    %65 = vector.extract_strided_slice %46 {offsets = [64, 64], sizes = [8, 64], strides = [1, 1]} : vector<72x128xf32> to vector<8x64xf32>
    %66 = tpu.concatenate %57, %58, %59, %60, %61, %62, %63, %64, %65 in 1 : vector<8x64xf32>, vector<8x64xf32>, vector<8x64xf32>, vector<8x64xf32>, vector<8x64xf32>, vector<8x64xf32>, vector<8x64xf32>, vector<8x64xf32>, vector<8x64xf32> -> vector<8x576xf32>
    %67 = tpu.concatenate %56, %66 in 0 : vector<8x576xf32>, vector<8x576xf32> -> vector<16x576xf32>
    %c0_27 = arith.constant 0 : index
    %c0_28 = arith.constant 0 : index
    %68 = vector.load %arg8[%c0_27, %c0_28] : memref<576x1024xf32, #tpu.memory_space<vmem>>, vector<576x1024xf32>
    %cst_29 = arith.constant dense<0.000000e+00> : vector<16x1024xf32>
    %69 = tpu.matmul %67, %68, %cst_29 {dimension_numbers = #tpu.dot_dimension_numbers<[1], [0], [0], [1], [0, 0, 1, 1], [], []>} : vector<16x576xf32>, vector<576x1024xf32>, vector<16x1024xf32> -> vector<16x1024xf32>
    %c0_30 = arith.constant 0 : index
    %c0_31 = arith.constant 0 : index
    %70 = vector.load %arg7[%c0_30, %c0_31] : memref<16x1xf32, #tpu.memory_space<vmem>>, vector<16x1xf32>
    %71 = vector.broadcast %70 : vector<16x1xf32> to vector<16x1024xf32>
    %72 = arith.addf %69, %71 : vector<16x1024xf32>
    %cst_32 = arith.constant 0.000000e+00 : f32
    %73 = vector.broadcast %cst_32 : f32 to vector<16x1024xf32>
    %74 = arith.maximumf %72, %73 : vector<16x1024xf32>
    %c0_33 = arith.constant 0 : index
    %c0_34 = arith.constant 0 : index
    %75 = vector.load %arg9[%c0_33, %c0_34] : memref<16x1024xf32, #tpu.memory_space<vmem>>, vector<16x1024xf32>
    tpu.vector_store %arg9[%c0_33, %c0_34], %74 {strides = array<i32>} : memref<16x1024xf32, #tpu.memory_space<vmem>>, vector<16x1024xf32>,
    return
  }
}

</mosaic_0001>

<llo_original>
// kernel: tpu_custom_call.1
$region0: #{tpu_custom_call.1}
  #allocation0 [shape = 'u32[]', space=smem, size = 0x4, offset = 0x4, fixed_abs, tag = 'smem constant byte address 0x4 - core index']
  #allocation1 [shape = 'u32[144,128]{1,0:T(1,128)}', space=vmem, size = 0x12000, scoped, tag = 'internal scratch']
  %s0 = inlined_call_operand.vmem [shape: f32[2,96,64], index: 0, kind: input, shape index: {}]
  %s1 = inlined_call_operand.vmem [shape: f32[2,96,16], index: 1, kind: input, shape index: {}]
  %s2 = inlined_call_operand.hbm [shape: f32[32,128], index: 2, kind: input, shape index: {}]
  %s3 = inlined_call_operand.hbm [shape: f32[288,96], index: 3, kind: input, shape index: {}]
  %s4 = inlined_call_operand.vmem [shape: f32[32,1], index: 4, kind: input, shape index: {}]
  %s5 = inlined_call_operand.vmem [shape: f32[576,64], index: 5, kind: input, shape index: {}]
  %s6 = inlined_call_operand.vmem [shape: f32[72,32], index: 6, kind: input, shape index: {}]
  %s7 = inlined_call_operand.vmem [shape: f32[16,1], index: 7, kind: input, shape index: {}]
  %s8 = inlined_call_operand.hbm [shape: f32[576,1024], index: 8, kind: input, shape index: {}]
  %s9 = inlined_call_operand.hbm [shape: f32[16,1024], index: 9, kind: output, shape index: {}]
  %s10 = sld [smem:[#allocation0]]
  $region58: #{tpu_custom_call.1} parent=0
    _
  %s12 = ssub.s32 1, %s10
  %s13 = scalar_select 0, %s12, %s10
  $region1: #{tpu_custom_call.1} parent=0
    #allocation2 [shape = 'u8[16384]{0}', space=vmem, size = 0x4000, scoped, tag = 'input window, operand 2, single buffered']
    #allocation3 [shape = 's32[1]{0}', space=sflag, size = 0x4, scoped, tag = 'scoped memory for tpu_custom_call.1']
    #allocation4 [shape = 's32[1]{0}', space=sflag, size = 0x4, scoped, tag = 'scoped memory for tpu_custom_call.1']
    #allocation5 [shape = 'u8[147456]{0}', space=vmem, size = 0x24000, scoped, tag = 'input window, operand 3, single buffered']
    #allocation6 [shape = 's32[1]{0}', space=sflag, size = 0x4, scoped, tag = 'scoped memory for tpu_custom_call.1']
    #allocation7 [shape = 'u8[2359296]{0}', space=vmem, size = 0x240000, scoped, tag = 'input window, operand 8, single buffered']
    #allocation8 [shape = 'u8[65536]{0}', space=vmem, size = 0x10000, scoped, tag = 'output window, operand 0, single buffered']
    %14 = vsyncpa [#allocation3], 0
    %15 = vsyncpa [#allocation6], 0
    %16 = vsyncpa [#allocation4], 0
    // Predicated region
    $region2: #{tpu_custom_call.1} parent=1 // pred_check
      _
    $region3: #{tpu_custom_call.1} parent=1 // pred_check_branch
      %18 = sbr.rel (0) target = $region5
    $region4: #{tpu_custom_call.1} parent=1 // pred_region
      _
    $region5: #{tpu_custom_call.1} parent=1 // pred_fallthru
      _
    // Predicated region
    $region6: #{tpu_custom_call.1} parent=1 // pred_check
      _
    $region7: #{tpu_custom_call.1} parent=1 // pred_check_branch
      %20 = sbr.rel (0) target = $region9
    $region8: #{tpu_custom_call.1} parent=1 // pred_region
      _
    $region9: #{tpu_custom_call.1} parent=1 // pred_fallthru
      _
    // Predicated region
    $region10: #{tpu_custom_call.1} parent=1 // pred_check
      _
    $region11: #{tpu_custom_call.1} parent=1 // pred_check_branch
      %22 = sbr.rel (0) target = $region13
    $region12: #{tpu_custom_call.1} parent=1 // pred_region
      %s24 = ssub.s32 512, 512
      %25 = vsyncadd [#allocation3], %s24
      %s26 = sshll.u32 [#allocation2], 4
      %s27 = int_to_ptr.vmem [resolvable:$true] %s26
      %32 = dma.hbm_to_vmem [thread:$0]  %s2, 512, %s27, [#allocation3], 128, 128, 8
    $region13: #{tpu_custom_call.1} parent=1 // pred_fallthru
      _
    // Predicated region
    $region14: #{tpu_custom_call.1} parent=1 // pred_check
      _
    $region15: #{tpu_custom_call.1} parent=1 // pred_check_branch
      %34 = sbr.rel (0) target = $region17
    $region16: #{tpu_custom_call.1} parent=1 // pred_region
      %s36 = ssub.s32 4608, 4608
      %37 = vsyncadd [#allocation6], %s36
      %s38 = sshll.u32 [#allocation5], 4
      %s39 = int_to_ptr.vmem [resolvable:$true] %s38
      %44 = dma.hbm_to_vmem [thread:$0]  %s3, 4608, %s39, [#allocation6], 128, 128, 8
    $region17: #{tpu_custom_call.1} parent=1 // pred_fallthru
      _
    // Predicated region
    $region18: #{tpu_custom_call.1} parent=1 // pred_check
      _
    $region19: #{tpu_custom_call.1} parent=1 // pred_check_branch
      %46 = sbr.rel (0) target = $region21
    $region20: #{tpu_custom_call.1} parent=1 // pred_region
      _
    $region21: #{tpu_custom_call.1} parent=1 // pred_fallthru
      _
    // Predicated region
    $region22: #{tpu_custom_call.1} parent=1 // pred_check
      _
    $region23: #{tpu_custom_call.1} parent=1 // pred_check_branch
      %48 = sbr.rel (0) target = $region25
    $region24: #{tpu_custom_call.1} parent=1 // pred_region
      _
    $region25: #{tpu_custom_call.1} parent=1 // pred_fallthru
      _
    // Predicated region
    $region26: #{tpu_custom_call.1} parent=1 // pred_check
      _
    $region27: #{tpu_custom_call.1} parent=1 // pred_check_branch
      %50 = sbr.rel (0) target = $region29
    $region28: #{tpu_custom_call.1} parent=1 // pred_region
      _
    $region29: #{tpu_custom_call.1} parent=1 // pred_fallthru
      _
    // Predicated region
    $region30: #{tpu_custom_call.1} parent=1 // pred_check
      _
    $region31: #{tpu_custom_call.1} parent=1 // pred_check_branch
      %52 = sbr.rel (0) target = $region33
    $region32: #{tpu_custom_call.1} parent=1 // pred_region
      _
    $region33: #{tpu_custom_call.1} parent=1 // pred_fallthru
      _
    // Predicated region
    $region34: #{tpu_custom_call.1} parent=1 // pred_check
      _
    $region35: #{tpu_custom_call.1} parent=1 // pred_check_branch
      %54 = sbr.rel (0) target = $region37
    $region36: #{tpu_custom_call.1} parent=1 // pred_region
      %s56 = ssub.s32 73728, 73728
      %57 = vsyncadd [#allocation6], %s56
      %s58 = sshll.u32 [#allocation7], 4
      %s59 = int_to_ptr.vmem [resolvable:$true] %s58
      %64 = dma.hbm_to_vmem [thread:$0]  %s8, 73728, %s59, [#allocation6], 1024, 1024, 64
    $region37: #{tpu_custom_call.1} parent=1 // pred_fallthru
      _
    // Predicated region
    $region38: #{tpu_custom_call.1} parent=1 // pred_check
      _
    $region39: #{tpu_custom_call.1} parent=1 // pred_check_branch
      %66 = sbr.rel (0) target = $region41
    $region40: #{tpu_custom_call.1} parent=1 // pred_region
      %67 = dma.done [#allocation3], 512
    $region41: #{tpu_custom_call.1} parent=1 // pred_fallthru
      _
    // Predicated region
    $region42: #{tpu_custom_call.1} parent=1 // pred_check
      _
    $region43: #{tpu_custom_call.1} parent=1 // pred_check_branch
      %69 = sbr.rel (0) target = $region45
    $region44: #{tpu_custom_call.1} parent=1 // pred_region
      %70 = dma.done [#allocation6], 4608
    $region45: #{tpu_custom_call.1} parent=1 // pred_fallthru
      _
    // Predicated region
    $region46: #{tpu_custom_call.1} parent=1 // pred_check
      _
    $region47: #{tpu_custom_call.1} parent=1 // pred_check_branch
      %72 = sbr.rel (0) target = $region49
    $region48: #{tpu_custom_call.1} parent=1 // pred_region
      %73 = dma.done [#allocation6], 73728
    $region49: #{tpu_custom_call.1} parent=1 // pred_fallthru
      _
    %v74 = vld [vmem:[%s0] sm:$0xff]
    %v75 = vld [vmem:[%s0 + $0x8] sm:$0xff]
    %v76 = vld [vmem:[%s0 + $0x10] sm:$0xff]
    %v77 = vld [vmem:[%s0 + $0x18] sm:$0xff]
    %v78 = vld [vmem:[%s0 + $0x20] sm:$0xff]
    %v79 = vld [vmem:[%s0 + $0x28] sm:$0xff]
    %v80 = vld [vmem:[%s0 + $0x30] sm:$0xff]
    %v81 = vld [vmem:[%s0 + $0x38] sm:$0xff]
    %v82 = vld [vmem:[%s0 + $0x40] sm:$0xff]
    %v83 = vld [vmem:[%s0 + $0x48] sm:$0xff]
    %v84 = vld [vmem:[%s0 + $0x50] sm:$0xff]
    %v85 = vld [vmem:[%s0 + $0x58] sm:$0xff]
    %s86 = scalar_lea.vmem %s0, 96
    %v87 = vld [vmem:[%s86] sm:$0xff]
    %v88 = vld [vmem:[%s86 + $0x8] sm:$0xff]
    %v89 = vld [vmem:[%s86 + $0x10] sm:$0xff]
    %v90 = vld [vmem:[%s86 + $0x18] sm:$0xff]
    %v91 = vld [vmem:[%s86 + $0x20] sm:$0xff]
    %v92 = vld [vmem:[%s86 + $0x28] sm:$0xff]
    %v93 = vld [vmem:[%s86 + $0x30] sm:$0xff]
    %v94 = vld [vmem:[%s86 + $0x38] sm:$0xff]
    %v95 = vld [vmem:[%s86 + $0x40] sm:$0xff]
    %v96 = vld [vmem:[%s86 + $0x48] sm:$0xff]
    %v97 = vld [vmem:[%s86 + $0x50] sm:$0xff]
    %v98 = vld [vmem:[%s86 + $0x58] sm:$0xff]
    %111 = vrot.lane.b32.xlu0 %v87, 64
    %v112 = vpop.permute.xlu0 %111
    %113 = vrot.lane.b32.xlu0 %v88, 64
    %v114 = vpop.permute.xlu0 %113
    %115 = vrot.lane.b32.xlu0 %v89, 64
    %v116 = vpop.permute.xlu0 %115
    %117 = vrot.lane.b32.xlu0 %v90, 64
    %v118 = vpop.permute.xlu0 %117
    %119 = vrot.lane.b32.xlu0 %v91, 64
    %v120 = vpop.permute.xlu0 %119
    %121 = vrot.lane.b32.xlu0 %v92, 64
    %v122 = vpop.permute.xlu0 %121
    %123 = vrot.lane.b32.xlu0 %v93, 64
    %v124 = vpop.permute.xlu0 %123
    %125 = vrot.lane.b32.xlu0 %v94, 64
    %v126 = vpop.permute.xlu0 %125
    %127 = vrot.lane.b32.xlu0 %v95, 64
    %v128 = vpop.permute.xlu0 %127
    %129 = vrot.lane.b32.xlu0 %v96, 64
    %v130 = vpop.permute.xlu0 %129
    %131 = vrot.lane.b32.xlu0 %v97, 64
    %v132 = vpop.permute.xlu0 %131
    %133 = vrot.lane.b32.xlu0 %v98, 64
    %v134 = vpop.permute.xlu0 %133
    %vm147 = vcmask 523264
    %v148 = vsel %vm147, %v74, %v112
    %v149 = vsel %vm147, %v75, %v114
    %v150 = vsel %vm147, %v76, %v116
    %v151 = vsel %vm147, %v77, %v118
    %v152 = vsel %vm147, %v78, %v120
    %v153 = vsel %vm147, %v79, %v122
    %v154 = vsel %vm147, %v80, %v124
    %v155 = vsel %vm147, %v81, %v126
    %v156 = vsel %vm147, %v82, %v128
    %v157 = vsel %vm147, %v83, %v130
    %v158 = vsel %vm147, %v84, %v132
    %v159 = vsel %vm147, %v85, %v134
    %v160 = vld [vmem:[%s1] sm:$0xff]
    %v161 = vld [vmem:[%s1 + $0x8] sm:$0xff]
    %v162 = vld [vmem:[%s1 + $0x10] sm:$0xff]
    %v163 = vld [vmem:[%s1 + $0x18] sm:$0xff]
    %v164 = vld [vmem:[%s1 + $0x20] sm:$0xff]
    %v165 = vld [vmem:[%s1 + $0x28] sm:$0xff]
    %v166 = vld [vmem:[%s1 + $0x30] sm:$0xff]
    %v167 = vld [vmem:[%s1 + $0x38] sm:$0xff]
    %v168 = vld [vmem:[%s1 + $0x40] sm:$0xff]
    %v169 = vld [vmem:[%s1 + $0x48] sm:$0xff]
    %v170 = vld [vmem:[%s1 + $0x50] sm:$0xff]
    %v171 = vld [vmem:[%s1 + $0x58] sm:$0xff]
    %s172 = scalar_lea.vmem %s1, 96
    %v173 = vld [vmem:[%s172] sm:$0xff]
    %v174 = vld [vmem:[%s172 + $0x8] sm:$0xff]
    %v175 = vld [vmem:[%s172 + $0x10] sm:$0xff]
    %v176 = vld [vmem:[%s172 + $0x18] sm:$0xff]
    %v177 = vld [vmem:[%s172 + $0x20] sm:$0xff]
    %v178 = vld [vmem:[%s172 + $0x28] sm:$0xff]
    %v179 = vld [vmem:[%s172 + $0x30] sm:$0xff]
    %v180 = vld [vmem:[%s172 + $0x38] sm:$0xff]
    %v181 = vld [vmem:[%s172 + $0x40] sm:$0xff]
    %v182 = vld [vmem:[%s172 + $0x48] sm:$0xff]
    %v183 = vld [vmem:[%s172 + $0x50] sm:$0xff]
    %v184 = vld [vmem:[%s172 + $0x58] sm:$0xff]
    %197 = vrot.lane.b32.xlu0 %v173, 16
    %v198 = vpop.permute.xlu0 %197
    %199 = vrot.lane.b32.xlu0 %v174, 16
    %v200 = vpop.permute.xlu0 %199
    %201 = vrot.lane.b32.xlu0 %v175, 16
    %v202 = vpop.permute.xlu0 %201
    %203 = vrot.lane.b32.xlu0 %v176, 16
    %v204 = vpop.permute.xlu0 %203
    %205 = vrot.lane.b32.xlu0 %v177, 16
    %v206 = vpop.permute.xlu0 %205
    %207 = vrot.lane.b32.xlu0 %v178, 16
    %v208 = vpop.permute.xlu0 %207
    %209 = vrot.lane.b32.xlu0 %v179, 16
    %v210 = vpop.permute.xlu0 %209
    %211 = vrot.lane.b32.xlu0 %v180, 16
    %v212 = vpop.permute.xlu0 %211
    %213 = vrot.lane.b32.xlu0 %v181, 16
    %v214 = vpop.permute.xlu0 %213
    %215 = vrot.lane.b32.xlu0 %v182, 16
    %v216 = vpop.permute.xlu0 %215
    %217 = vrot.lane.b32.xlu0 %v183, 16
    %v218 = vpop.permute.xlu0 %217
    %219 = vrot.lane.b32.xlu0 %v184, 16
    %v220 = vpop.permute.xlu0 %219
    %vm233 = vcmask 130048
    %v234 = vsel %vm233, %v160, %v198
    %v235 = vsel %vm233, %v161, %v200
    %v236 = vsel %vm233, %v162, %v202
    %v237 = vsel %vm233, %v163, %v204
    %v238 = vsel %vm233, %v164, %v206
    %v239 = vsel %vm233, %v165, %v208
    %v240 = vsel %vm233, %v166, %v210
    %v241 = vsel %vm233, %v167, %v212
    %v242 = vsel %vm233, %v168, %v214
    %v243 = vsel %vm233, %v169, %v216
    %v244 = vsel %vm233, %v170, %v218
    %v245 = vsel %vm233, %v171, %v220
    %v246 = vld [vmem:[#allocation2] sm:$0xff]
    %v247 = vld [vmem:[#allocation2 + $0x8] sm:$0xff]
    %v248 = vld [vmem:[#allocation2 + $0x10] sm:$0xff]
    %v249 = vld [vmem:[#allocation2 + $0x18] sm:$0xff]
    %vm250 = vcmask 261120
    %v252 = vsel %vm250, %v234, 0
    %v255 = vsel %vm250, %v235, 0
    %v258 = vsel %vm250, %v236, 0
    %v261 = vsel %vm250, %v237, 0
    %v264 = vsel %vm250, %v238, 0
    %v267 = vsel %vm250, %v239, 0
    %v270 = vsel %vm250, %v240, 0
    %v273 = vsel %vm250, %v241, 0
    %v276 = vsel %vm250, %v242, 0
    %v279 = vsel %vm250, %v243, 0
    %v282 = vsel %vm250, %v244, 0
    %v285 = vsel %vm250, %v245, 0
    %287 = vmatprep.subr.mxu0 0.0
    %288 = vmatpush1.msra.mxu0 0.0
    %289 = vmatprep.subr.mxu0 0.0
    %290 = vmatpush1.msra.mxu0 0.0
    %291 = vmatprep.subr.mxu0 0.0
    %292 = vmatpush1.msra.mxu0 0.0
    %293 = vmatprep.subr.mxu0 0.0
    %294 = vmatpush1.msra.mxu0 0.0
    %295 = vmatprep.subr.mxu0 0.0
    %296 = vmatpush1.msra.mxu0 0.0
    %297 = vmatprep.subr.mxu0 0.0
    %298 = vmatpush1.msra.mxu0 0.0
    %299 = vmatprep.subr.mxu0 0.0
    %300 = vmatpush1.msra.mxu0 0.0
    %301 = vmatprep.subr.mxu0 0.0
    %302 = vmatpush1.msra.mxu0 0.0
    %303 = vmatprep.subr.mxu0 0.0
    %304 = vmatpush1.msra.mxu0 0.0
    %305 = vmatprep.subr.mxu0 0.0
    %306 = vmatpush1.msra.mxu0 0.0
    %307 = vmatprep.subr.mxu0 0.0
    %308 = vmatpush1.msra.mxu0 0.0
    %309 = vmatprep.subr.mxu0 0.0
    %310 = vmatpush1.msra.mxu0 0.0
    %311 = vmatprep.subr.mxu0 0.0
    %312 = vmatpush1.msra.mxu0 %v249
    %313 = vmatprep.subr.mxu0 0.0
    %314 = vmatpush1.msra.mxu0 %v248
    %315 = vmatprep.subr.mxu0 0.0
    %316 = vmatpush1.msra.mxu0 %v247
    %317 = vmatprep.subr.mxu0 0.0
    %318 = vmatpush1.msra.mxu0 %v246
    %319 = vmatprep.subr.mxu0 0.0
    %320 = vmatpush2.msra.mxu0 0.0
    %321 = vmatprep.subr.mxu0 0.0
    %322 = vmatpush2.msra.mxu0 0.0
    %323 = vmatprep.subr.mxu0 0.0
    %324 = vmatpush2.msra.mxu0 0.0
    %325 = vmatprep.subr.mxu0 0.0
    %326 = vmatpush2.msra.mxu0 0.0
    %327 = vmatprep.subr.mxu0 0.0
    %328 = vmatpush2.msra.mxu0 0.0
    %329 = vmatprep.subr.mxu0 0.0
    %330 = vmatpush2.msra.mxu0 0.0
    %331 = vmatprep.subr.mxu0 0.0
    %332 = vmatpush2.msra.mxu0 0.0
    %333 = vmatprep.subr.mxu0 0.0
    %334 = vmatpush2.msra.mxu0 0.0
    %335 = vmatprep.subr.mxu0 0.0
    %336 = vmatpush2.msra.mxu0 0.0
    %337 = vmatprep.subr.mxu0 0.0
    %338 = vmatpush2.msra.mxu0 0.0
    %339 = vmatprep.subr.mxu0 0.0
    %340 = vmatpush2.msra.mxu0 0.0
    %341 = vmatprep.subr.mxu0 0.0
    %342 = vmatpush2.msra.mxu0 0.0
    %343 = vmatprep.subr.mxu0 0.0
    %344 = vmatpush2.msra.mxu0 0.0
    %345 = vmatprep.subr.mxu0 0.0
    %346 = vmatpush2.msra.mxu0 0.0
    %347 = vmatprep.subr.mxu0 0.0
    %348 = vmatpush2.msra.mxu0 0.0
    %349 = vmatprep.subr.mxu0 0.0
    %350 = vmatpush2.msra.mxu0 0.0
    %351 = vmatprep.mubr.f32.mxu0 0.0
    %352 = vmatmul.mubr.f32.gmra.mxu0 %v252
    %v353 = vpop.f32.mrf.mxu0
    %v354 = vadd.f32 %v148, %v353
    %v355 = vpop.f32.mrf.mxu0
    %356 = vmatprep.mubr.f32.mxu0 0.0
    %357 = vmatmul.mubr.f32.gmra.mxu0 %v255
    %v358 = vpop.f32.mrf.mxu0
    %v359 = vadd.f32 %v149, %v358
    %v360 = vpop.f32.mrf.mxu0
    %361 = vmatprep.mubr.f32.mxu0 0.0
    %362 = vmatmul.mubr.f32.gmra.mxu0 %v258
    %v363 = vpop.f32.mrf.mxu0
    %v364 = vadd.f32 %v150, %v363
    %v365 = vpop.f32.mrf.mxu0
    %366 = vmatprep.mubr.f32.mxu0 0.0
    %367 = vmatmul.mubr.f32.gmra.mxu0 %v261
    %v368 = vpop.f32.mrf.mxu0
    %v369 = vadd.f32 %v151, %v368
    %v370 = vpop.f32.mrf.mxu0
    %371 = vmatprep.mubr.f32.mxu0 0.0
    %372 = vmatmul.mubr.f32.gmra.mxu0 %v264
    %v373 = vpop.f32.mrf.mxu0
    %v374 = vadd.f32 %v152, %v373
    %v375 = vpop.f32.mrf.mxu0
    %376 = vmatprep.mubr.f32.mxu0 0.0
    %377 = vmatmul.mubr.f32.gmra.mxu0 %v267
    %v378 = vpop.f32.mrf.mxu0
    %v379 = vadd.f32 %v153, %v378
    %v380 = vpop.f32.mrf.mxu0
    %381 = vmatprep.mubr.f32.mxu0 0.0
    %382 = vmatmul.mubr.f32.gmra.mxu0 %v270
    %v383 = vpop.f32.mrf.mxu0
    %v384 = vadd.f32 %v154, %v383
    %v385 = vpop.f32.mrf.mxu0
    %386 = vmatprep.mubr.f32.mxu0 0.0
    %387 = vmatmul.mubr.f32.gmra.mxu0 %v273
    %v388 = vpop.f32.mrf.mxu0
    %v389 = vadd.f32 %v155, %v388
    %v390 = vpop.f32.mrf.mxu0
    %391 = vmatprep.mubr.f32.mxu0 0.0
    %392 = vmatmul.mubr.f32.gmra.mxu0 %v276
    %v393 = vpop.f32.mrf.mxu0
    %v394 = vadd.f32 %v156, %v393
    %v395 = vpop.f32.mrf.mxu0
    %396 = vmatprep.mubr.f32.mxu0 0.0
    %397 = vmatmul.mubr.f32.gmra.mxu0 %v279
    %v398 = vpop.f32.mrf.mxu0
    %v399 = vadd.f32 %v157, %v398
    %v400 = vpop.f32.mrf.mxu0
    %401 = vmatprep.mubr.f32.mxu0 0.0
    %402 = vmatmul.mubr.f32.gmra.mxu0 %v282
    %v403 = vpop.f32.mrf.mxu0
    %v404 = vadd.f32 %v158, %v403
    %v405 = vpop.f32.mrf.mxu0
    %406 = vmatprep.mubr.f32.mxu0 0.0
    %407 = vmatmul.mubr.f32.gmra.mxu0 %v285
    %v408 = vpop.f32.mrf.mxu0
    %v409 = vadd.f32 %v159, %v408
    %v410 = vpop.f32.mrf.mxu0
    %411 = vdwg.mxu0
    %v412 = vld [vmem:[#allocation5] sm:$0xff]
    %v413 = vld [vmem:[#allocation5 + $0x8] sm:$0xff]
    %v414 = vld [vmem:[#allocation5 + $0x10] sm:$0xff]
    %v415 = vld [vmem:[#allocation5 + $0x18] sm:$0xff]
    %v416 = vld [vmem:[#allocation5 + $0x20] sm:$0xff]
    %v417 = vld [vmem:[#allocation5 + $0x28] sm:$0xff]
    %v418 = vld [vmem:[#allocation5 + $0x30] sm:$0xff]
    %v419 = vld [vmem:[#allocation5 + $0x38] sm:$0xff]
    %v420 = vld [vmem:[#allocation5 + $0x40] sm:$0xff]
    %v421 = vld [vmem:[#allocation5 + $0x48] sm:$0xff]
    %v422 = vld [vmem:[#allocation5 + $0x50] sm:$0xff]
    %v423 = vld [vmem:[#allocation5 + $0x58] sm:$0xff]
    %v424 = vld [vmem:[#allocation5 + $0x60] sm:$0xff]
    %v425 = vld [vmem:[#allocation5 + $0x68] sm:$0xff]
    %v426 = vld [vmem:[#allocation5 + $0x70] sm:$0xff]
    %v427 = vld [vmem:[#allocation5 + $0x78] sm:$0xff]
    %v428 = vld [vmem:[#allocation5 + $0x80] sm:$0xff]
    %v429 = vld [vmem:[#allocation5 + $0x88] sm:$0xff]
    %v430 = vld [vmem:[#allocation5 + $0x90] sm:$0xff]
    %v431 = vld [vmem:[#allocation5 + $0x98] sm:$0xff]
    %v432 = vld [vmem:[#allocation5 + $0xa0] sm:$0xff]
    %v433 = vld [vmem:[#allocation5 + $0xa8] sm:$0xff]
    %v434 = vld [vmem:[#allocation5 + $0xb0] sm:$0xff]
    %v435 = vld [vmem:[#allocation5 + $0xb8] sm:$0xff]
    %v436 = vld [vmem:[#allocation5 + $0xc0] sm:$0xff]
    %v437 = vld [vmem:[#allocation5 + $0xc8] sm:$0xff]
    %v438 = vld [vmem:[#allocation5 + $0xd0] sm:$0xff]
    %v439 = vld [vmem:[#allocation5 + $0xd8] sm:$0xff]
    %v440 = vld [vmem:[#allocation5 + $0xe0] sm:$0xff]
    %v441 = vld [vmem:[#allocation5 + $0xe8] sm:$0xff]
    %v442 = vld [vmem:[#allocation5 + $0xf0] sm:$0xff]
    %v443 = vld [vmem:[#allocation5 + $0xf8] sm:$0xff]
    %v444 = vld [vmem:[#allocation5 + $0x100] sm:$0xff]
    %v445 = vld [vmem:[#allocation5 + $0x108] sm:$0xff]
    %v446 = vld [vmem:[#allocation5 + $0x110] sm:$0xff]
    %v447 = vld [vmem:[#allocation5 + $0x118] sm:$0xff]
    %vm448 = vcmask 785408
    %v450 = vsel %vm448, %v412, 0
    %v453 = vsel %vm448, %v413, 0
    %v456 = vsel %vm448, %v414, 0
    %v459 = vsel %vm448, %v415, 0
    %v462 = vsel %vm448, %v416, 0
    %v465 = vsel %vm448, %v417, 0
    %v468 = vsel %vm448, %v418, 0
    %v471 = vsel %vm448, %v419, 0
    %v474 = vsel %vm448, %v420, 0
    %v477 = vsel %vm448, %v421, 0
    %v480 = vsel %vm448, %v422, 0
    %v483 = vsel %vm448, %v423, 0
    %v486 = vsel %vm448, %v424, 0
    %v489 = vsel %vm448, %v425, 0
    %v492 = vsel %vm448, %v426, 0
    %v495 = vsel %vm448, %v427, 0
    %v498 = vsel %vm448, %v428, 0
    %v501 = vsel %vm448, %v429, 0
    %v504 = vsel %vm448, %v430, 0
    %v507 = vsel %vm448, %v431, 0
    %v510 = vsel %vm448, %v432, 0
    %v513 = vsel %vm448, %v433, 0
    %v516 = vsel %vm448, %v434, 0
    %v519 = vsel %vm448, %v435, 0
    %v522 = vsel %vm448, %v436, 0
    %v525 = vsel %vm448, %v437, 0
    %v528 = vsel %vm448, %v438, 0
    %v531 = vsel %vm448, %v439, 0
    %v534 = vsel %vm448, %v440, 0
    %v537 = vsel %vm448, %v441, 0
    %v540 = vsel %vm448, %v442, 0
    %v543 = vsel %vm448, %v443, 0
    %v546 = vsel %vm448, %v444, 0
    %v549 = vsel %vm448, %v445, 0
    %v552 = vsel %vm448, %v446, 0
    %v555 = vsel %vm448, %v447, 0
    %557 = vmatprep.subr.mxu0 0.0
    %558 = vmatpush1.msra.mxu0 0.0
    %559 = vmatprep.subr.mxu0 0.0
    %560 = vmatpush1.msra.mxu0 0.0
    %561 = vmatprep.subr.mxu0 0.0
    %562 = vmatpush1.msra.mxu0 0.0
    %563 = vmatprep.subr.mxu0 0.0
    %564 = vmatpush1.msra.mxu0 0.0
    %565 = vmatprep.subr.mxu0 0.0
    %566 = vmatpush1.msra.mxu0 %v409
    %567 = vmatprep.subr.mxu0 0.0
    %568 = vmatpush1.msra.mxu0 %v404
    %569 = vmatprep.subr.mxu0 0.0
    %570 = vmatpush1.msra.mxu0 %v399
    %571 = vmatprep.subr.mxu0 0.0
    %572 = vmatpush1.msra.mxu0 %v394
    %573 = vmatprep.subr.mxu0 0.0
    %574 = vmatpush1.msra.mxu0 %v389
    %575 = vmatprep.subr.mxu0 0.0
    %576 = vmatpush1.msra.mxu0 %v384
    %577 = vmatprep.subr.mxu0 0.0
    %578 = vmatpush1.msra.mxu0 %v379
    %579 = vmatprep.subr.mxu0 0.0
    %580 = vmatpush1.msra.mxu0 %v374
    %581 = vmatprep.subr.mxu0 0.0
    %582 = vmatpush1.msra.mxu0 %v369
    %583 = vmatprep.subr.mxu0 0.0
    %584 = vmatpush1.msra.mxu0 %v364
    %585 = vmatprep.subr.mxu0 0.0
    %586 = vmatpush1.msra.mxu0 %v359
    %587 = vmatprep.subr.mxu0 0.0
    %588 = vmatpush1.msra.mxu0 %v354
    %589 = vmatprep.subr.mxu0 0.0
    %590 = vmatpush2.msra.mxu0 0.0
    %591 = vmatprep.subr.mxu0 0.0
    %592 = vmatpush2.msra.mxu0 0.0
    %593 = vmatprep.subr.mxu0 0.0
    %594 = vmatpush2.msra.mxu0 0.0
    %595 = vmatprep.subr.mxu0 0.0
    %596 = vmatpush2.msra.mxu0 0.0
    %597 = vmatprep.subr.mxu0 0.0
    %598 = vmatpush2.msra.mxu0 0.0
    %599 = vmatprep.subr.mxu0 0.0
    %600 = vmatpush2.msra.mxu0 0.0
    %601 = vmatprep.subr.mxu0 0.0
    %602 = vmatpush2.msra.mxu0 0.0
    %603 = vmatprep.subr.mxu0 0.0
    %604 = vmatpush2.msra.mxu0 0.0
    %605 = vmatprep.subr.mxu0 0.0
    %606 = vmatpush2.msra.mxu0 0.0
    %607 = vmatprep.subr.mxu0 0.0
    %608 = vmatpush2.msra.mxu0 0.0
    %609 = vmatprep.subr.mxu0 0.0
    %610 = vmatpush2.msra.mxu0 0.0
    %611 = vmatprep.subr.mxu0 0.0
    %612 = vmatpush2.msra.mxu0 0.0
    %613 = vmatprep.subr.mxu0 0.0
    %614 = vmatpush2.msra.mxu0 0.0
    %615 = vmatprep.subr.mxu0 0.0
    %616 = vmatpush2.msra.mxu0 0.0
    %617 = vmatprep.subr.mxu0 0.0
    %618 = vmatpush2.msra.mxu0 0.0
    %619 = vmatprep.subr.mxu0 0.0
    %620 = vmatpush2.msra.mxu0 0.0
    %621 = vmatprep.mubr.f32.mxu0 0.0
    %622 = vmatmul.mubr.f32.gmra.mxu0 %v450
    %v623 = vpop.f32.mrf.mxu0
    %v624 = vadd.f32 0.0, %v623
    %v625 = vpop.f32.mrf.mxu0
    %626 = vmatprep.mubr.f32.mxu0 0.0
    %627 = vmatmul.mubr.f32.gmra.mxu0 %v453
    %v628 = vpop.f32.mrf.mxu0
    %v629 = vadd.f32 0.0, %v628
    %v630 = vpop.f32.mrf.mxu0
    %631 = vmatprep.mubr.f32.mxu0 0.0
    %632 = vmatmul.mubr.f32.gmra.mxu0 %v456
    %v633 = vpop.f32.mrf.mxu0
    %v634 = vadd.f32 0.0, %v633
    %v635 = vpop.f32.mrf.mxu0
    %636 = vmatprep.mubr.f32.mxu0 0.0
    %637 = vmatmul.mubr.f32.gmra.mxu0 %v459
    %v638 = vpop.f32.mrf.mxu0
    %v639 = vadd.f32 0.0, %v638
    %v640 = vpop.f32.mrf.mxu0
    %641 = vmatprep.mubr.f32.mxu0 0.0
    %642 = vmatmul.mubr.f32.gmra.mxu0 %v462
    %v643 = vpop.f32.mrf.mxu0
    %v644 = vadd.f32 0.0, %v643
    %v645 = vpop.f32.mrf.mxu0
    %646 = vmatprep.mubr.f32.mxu0 0.0
    %647 = vmatmul.mubr.f32.gmra.mxu0 %v465
    %v648 = vpop.f32.mrf.mxu0
    %v649 = vadd.f32 0.0, %v648
    %v650 = vpop.f32.mrf.mxu0
    %651 = vmatprep.mubr.f32.mxu0 0.0
    %652 = vmatmul.mubr.f32.gmra.mxu0 %v468
    %v653 = vpop.f32.mrf.mxu0
    %v654 = vadd.f32 0.0, %v653
    %v655 = vpop.f32.mrf.mxu0
    %656 = vmatprep.mubr.f32.mxu0 0.0
    %657 = vmatmul.mubr.f32.gmra.mxu0 %v471
    %v658 = vpop.f32.mrf.mxu0
    %v659 = vadd.f32 0.0, %v658
    %v660 = vpop.f32.mrf.mxu0
    %661 = vmatprep.mubr.f32.mxu0 0.0
    %662 = vmatmul.mubr.f32.gmra.mxu0 %v474
    %v663 = vpop.f32.mrf.mxu0
    %v664 = vadd.f32 0.0, %v663
    %v665 = vpop.f32.mrf.mxu0
    %666 = vmatprep.mubr.f32.mxu0 0.0
    %667 = vmatmul.mubr.f32.gmra.mxu0 %v477
    %v668 = vpop.f32.mrf.mxu0
    %v669 = vadd.f32 0.0, %v668
    %v670 = vpop.f32.mrf.mxu0
    %671 = vmatprep.mubr.f32.mxu0 0.0
    %672 = vmatmul.mubr.f32.gmra.mxu0 %v480
    %v673 = vpop.f32.mrf.mxu0
    %v674 = vadd.f32 0.0, %v673
    %v675 = vpop.f32.mrf.mxu0
    %676 = vmatprep.mubr.f32.mxu0 0.0
    %677 = vmatmul.mubr.f32.gmra.mxu0 %v483
    %v678 = vpop.f32.mrf.mxu0
    %v679 = vadd.f32 0.0, %v678
    %v680 = vpop.f32.mrf.mxu0
    %681 = vmatprep.mubr.f32.mxu0 0.0
    %682 = vmatmul.mubr.f32.gmra.mxu0 %v486
    %v683 = vpop.f32.mrf.mxu0
    %v684 = vadd.f32 0.0, %v683
    %v685 = vpop.f32.mrf.mxu0
    %686 = vmatprep.mubr.f32.mxu0 0.0
    %687 = vmatmul.mubr.f32.gmra.mxu0 %v489
    %v688 = vpop.f32.mrf.mxu0
    %v689 = vadd.f32 0.0, %v688
    %v690 = vpop.f32.mrf.mxu0
    %691 = vmatprep.mubr.f32.mxu0 0.0
    %692 = vmatmul.mubr.f32.gmra.mxu0 %v492
    %v693 = vpop.f32.mrf.mxu0
    %v694 = vadd.f32 0.0, %v693
    %v695 = vpop.f32.mrf.mxu0
    %696 = vmatprep.mubr.f32.mxu0 0.0
    %697 = vmatmul.mubr.f32.gmra.mxu0 %v495
    %v698 = vpop.f32.mrf.mxu0
    %v699 = vadd.f32 0.0, %v698
    %v700 = vpop.f32.mrf.mxu0
    %701 = vmatprep.mubr.f32.mxu0 0.0
    %702 = vmatmul.mubr.f32.gmra.mxu0 %v498
    %v703 = vpop.f32.mrf.mxu0
    %v704 = vadd.f32 0.0, %v703
    %v705 = vpop.f32.mrf.mxu0
    %706 = vmatprep.mubr.f32.mxu0 0.0
    %707 = vmatmul.mubr.f32.gmra.mxu0 %v501
    %v708 = vpop.f32.mrf.mxu0
    %v709 = vadd.f32 0.0, %v708
    %v710 = vpop.f32.mrf.mxu0
    %711 = vmatprep.mubr.f32.mxu0 0.0
    %712 = vmatmul.mubr.f32.gmra.mxu0 %v504
    %v713 = vpop.f32.mrf.mxu0
    %v714 = vadd.f32 0.0, %v713
    %v715 = vpop.f32.mrf.mxu0
    %716 = vmatprep.mubr.f32.mxu0 0.0
    %717 = vmatmul.mubr.f32.gmra.mxu0 %v507
    %v718 = vpop.f32.mrf.mxu0
    %v719 = vadd.f32 0.0, %v718
    %v720 = vpop.f32.mrf.mxu0
    %721 = vmatprep.mubr.f32.mxu0 0.0
    %722 = vmatmul.mubr.f32.gmra.mxu0 %v510
    %v723 = vpop.f32.mrf.mxu0
    %v724 = vadd.f32 0.0, %v723
    %v725 = vpop.f32.mrf.mxu0
    %726 = vmatprep.mubr.f32.mxu0 0.0
    %727 = vmatmul.mubr.f32.gmra.mxu0 %v513
    %v728 = vpop.f32.mrf.mxu0
    %v729 = vadd.f32 0.0, %v728
    %v730 = vpop.f32.mrf.mxu0
    %731 = vmatprep.mubr.f32.mxu0 0.0
    %732 = vmatmul.mubr.f32.gmra.mxu0 %v516
    %v733 = vpop.f32.mrf.mxu0
    %v734 = vadd.f32 0.0, %v733
    %v735 = vpop.f32.mrf.mxu0
    %736 = vmatprep.mubr.f32.mxu0 0.0
    %737 = vmatmul.mubr.f32.gmra.mxu0 %v519
    %v738 = vpop.f32.mrf.mxu0
    %v739 = vadd.f32 0.0, %v738
    %v740 = vpop.f32.mrf.mxu0
    %741 = vmatprep.mubr.f32.mxu0 0.0
    %742 = vmatmul.mubr.f32.gmra.mxu0 %v522
    %v743 = vpop.f32.mrf.mxu0
    %v744 = vadd.f32 0.0, %v743
    %v745 = vpop.f32.mrf.mxu0
    %746 = vmatprep.mubr.f32.mxu0 0.0
    %747 = vmatmul.mubr.f32.gmra.mxu0 %v525
    %v748 = vpop.f32.mrf.mxu0
    %v749 = vadd.f32 0.0, %v748
    %v750 = vpop.f32.mrf.mxu0
    %751 = vmatprep.mubr.f32.mxu0 0.0
    %752 = vmatmul.mubr.f32.gmra.mxu0 %v528
    %v753 = vpop.f32.mrf.mxu0
    %v754 = vadd.f32 0.0, %v753
    %v755 = vpop.f32.mrf.mxu0
    %756 = vmatprep.mubr.f32.mxu0 0.0
    %757 = vmatmul.mubr.f32.gmra.mxu0 %v531
    %v758 = vpop.f32.mrf.mxu0
    %v759 = vadd.f32 0.0, %v758
    %v760 = vpop.f32.mrf.mxu0
    %761 = vmatprep.mubr.f32.mxu0 0.0
    %762 = vmatmul.mubr.f32.gmra.mxu0 %v534
    %v763 = vpop.f32.mrf.mxu0
    %v764 = vadd.f32 0.0, %v763
    %v765 = vpop.f32.mrf.mxu0
    %766 = vmatprep.mubr.f32.mxu0 0.0
    %767 = vmatmul.mubr.f32.gmra.mxu0 %v537
    %v768 = vpop.f32.mrf.mxu0
    %v769 = vadd.f32 0.0, %v768
    %v770 = vpop.f32.mrf.mxu0
    %771 = vmatprep.mubr.f32.mxu0 0.0
    %772 = vmatmul.mubr.f32.gmra.mxu0 %v540
    %v773 = vpop.f32.mrf.mxu0
    %v774 = vadd.f32 0.0, %v773
    %v775 = vpop.f32.mrf.mxu0
    %776 = vmatprep.mubr.f32.mxu0 0.0
    %777 = vmatmul.mubr.f32.gmra.mxu0 %v543
    %v778 = vpop.f32.mrf.mxu0
    %v779 = vadd.f32 0.0, %v778
    %v780 = vpop.f32.mrf.mxu0
    %781 = vmatprep.mubr.f32.mxu0 0.0
    %782 = vmatmul.mubr.f32.gmra.mxu0 %v546
    %v783 = vpop.f32.mrf.mxu0
    %v784 = vadd.f32 0.0, %v783
    %v785 = vpop.f32.mrf.mxu0
    %786 = vmatprep.mubr.f32.mxu0 0.0
    %787 = vmatmul.mubr.f32.gmra.mxu0 %v549
    %v788 = vpop.f32.mrf.mxu0
    %v789 = vadd.f32 0.0, %v788
    %v790 = vpop.f32.mrf.mxu0
    %791 = vmatprep.mubr.f32.mxu0 0.0
    %792 = vmatmul.mubr.f32.gmra.mxu0 %v552
    %v793 = vpop.f32.mrf.mxu0
    %v794 = vadd.f32 0.0, %v793
    %v795 = vpop.f32.mrf.mxu0
    %796 = vmatprep.mubr.f32.mxu0 0.0
    %797 = vmatmul.mubr.f32.gmra.mxu0 %v555
    %v798 = vpop.f32.mrf.mxu0
    %v799 = vadd.f32 0.0, %v798
    %v800 = vpop.f32.mrf.mxu0
    %801 = vdwg.mxu0
    %806 = vrot.lane.b32.xlu0 %v644, 64
    %v807 = vpop.permute.xlu0 %806
    %808 = vrot.lane.b32.xlu0 %v649, 64
    %v809 = vpop.permute.xlu0 %808
    %810 = vrot.lane.b32.xlu0 %v654, 64
    %v811 = vpop.permute.xlu0 %810
    %812 = vrot.lane.b32.xlu0 %v659, 64
    %v813 = vpop.permute.xlu0 %812
    %822 = vrot.lane.b32.xlu0 %v684, 64
    %v823 = vpop.permute.xlu0 %822
    %824 = vrot.lane.b32.xlu0 %v689, 64
    %v825 = vpop.permute.xlu0 %824
    %826 = vrot.lane.b32.xlu0 %v694, 64
    %v827 = vpop.permute.xlu0 %826
    %828 = vrot.lane.b32.xlu0 %v699, 64
    %v829 = vpop.permute.xlu0 %828
    %838 = vrot.lane.b32.xlu0 %v724, 64
    %v839 = vpop.permute.xlu0 %838
    %840 = vrot.lane.b32.xlu0 %v729, 64
    %v841 = vpop.permute.xlu0 %840
    %842 = vrot.lane.b32.xlu0 %v734, 64
    %v843 = vpop.permute.xlu0 %842
    %844 = vrot.lane.b32.xlu0 %v739, 64
    %v845 = vpop.permute.xlu0 %844
    %854 = vrot.lane.b32.xlu0 %v764, 64
    %v855 = vpop.permute.xlu0 %854
    %856 = vrot.lane.b32.xlu0 %v769, 64
    %v857 = vpop.permute.xlu0 %856
    %858 = vrot.lane.b32.xlu0 %v774, 64
    %v859 = vpop.permute.xlu0 %858
    %860 = vrot.lane.b32.xlu0 %v779, 64
    %v861 = vpop.permute.xlu0 %860
    %v866 = vsel %vm147, %v624, %v807
    %v867 = vsel %vm147, %v629, %v809
    %v868 = vsel %vm147, %v634, %v811
    %v869 = vsel %vm147, %v639, %v813
    %v870 = vsel %vm147, %v664, %v823
    %v871 = vsel %vm147, %v669, %v825
    %v872 = vsel %vm147, %v674, %v827
    %v873 = vsel %vm147, %v679, %v829
    %v874 = vsel %vm147, %v704, %v839
    %v875 = vsel %vm147, %v709, %v841
    %v876 = vsel %vm147, %v714, %v843
    %v877 = vsel %vm147, %v719, %v845
    %v878 = vsel %vm147, %v744, %v855
    %v879 = vsel %vm147, %v749, %v857
    %v880 = vsel %vm147, %v754, %v859
    %v881 = vsel %vm147, %v759, %v861
    %v882 = vld [vmem:[%s5] sm:$0xff]
    %v883 = vld [vmem:[%s5 + $0x8] sm:$0xff]
    %v884 = vld [vmem:[%s5 + $0x10] sm:$0xff]
    %v885 = vld [vmem:[%s5 + $0x18] sm:$0xff]
    %v886 = vld [vmem:[%s5 + $0x20] sm:$0xff]
    %v887 = vld [vmem:[%s5 + $0x28] sm:$0xff]
    %v888 = vld [vmem:[%s5 + $0x30] sm:$0xff]
    %v889 = vld [vmem:[%s5 + $0x38] sm:$0xff]
    %v890 = vld [vmem:[%s5 + $0x40] sm:$0xff]
    %v891 = vld [vmem:[%s5 + $0x48] sm:$0xff]
    %v892 = vld [vmem:[%s5 + $0x50] sm:$0xff]
    %v893 = vld [vmem:[%s5 + $0x58] sm:$0xff]
    %v894 = vld [vmem:[%s5 + $0x60] sm:$0xff]
    %v895 = vld [vmem:[%s5 + $0x68] sm:$0xff]
    %v896 = vld [vmem:[%s5 + $0x70] sm:$0xff]
    %v897 = vld [vmem:[%s5 + $0x78] sm:$0xff]
    %v898 = vld [vmem:[%s5 + $0x80] sm:$0xff]
    %v899 = vld [vmem:[%s5 + $0x88] sm:$0xff]
    %v900 = vld [vmem:[%s5 + $0x90] sm:$0xff]
    %v901 = vld [vmem:[%s5 + $0x98] sm:$0xff]
    %v902 = vld [vmem:[%s5 + $0xa0] sm:$0xff]
    %v903 = vld [vmem:[%s5 + $0xa8] sm:$0xff]
    %v904 = vld [vmem:[%s5 + $0xb0] sm:$0xff]
    %v905 = vld [vmem:[%s5 + $0xb8] sm:$0xff]
    %v906 = vld [vmem:[%s5 + $0xc0] sm:$0xff]
    %v907 = vld [vmem:[%s5 + $0xc8] sm:$0xff]
    %v908 = vld [vmem:[%s5 + $0xd0] sm:$0xff]
    %v909 = vld [vmem:[%s5 + $0xd8] sm:$0xff]
    %v910 = vld [vmem:[%s5 + $0xe0] sm:$0xff]
    %v911 = vld [vmem:[%s5 + $0xe8] sm:$0xff]
    %v912 = vld [vmem:[%s5 + $0xf0] sm:$0xff]
    %v913 = vld [vmem:[%s5 + $0xf8] sm:$0xff]
    %v914 = vld [vmem:[%s5 + $0x100] sm:$0xff]
    %v915 = vld [vmem:[%s5 + $0x108] sm:$0xff]
    %v916 = vld [vmem:[%s5 + $0x110] sm:$0xff]
    %v917 = vld [vmem:[%s5 + $0x118] sm:$0xff]
    %v918 = vld [vmem:[%s5 + $0x120] sm:$0xff]
    %v919 = vld [vmem:[%s5 + $0x128] sm:$0xff]
    %v920 = vld [vmem:[%s5 + $0x130] sm:$0xff]
    %v921 = vld [vmem:[%s5 + $0x138] sm:$0xff]
    %v922 = vld [vmem:[%s5 + $0x140] sm:$0xff]
    %v923 = vld [vmem:[%s5 + $0x148] sm:$0xff]
    %v924 = vld [vmem:[%s5 + $0x150] sm:$0xff]
    %v925 = vld [vmem:[%s5 + $0x158] sm:$0xff]
    %v926 = vld [vmem:[%s5 + $0x160] sm:$0xff]
    %v927 = vld [vmem:[%s5 + $0x168] sm:$0xff]
    %v928 = vld [vmem:[%s5 + $0x170] sm:$0xff]
    %v929 = vld [vmem:[%s5 + $0x178] sm:$0xff]
    %v930 = vld [vmem:[%s5 + $0x180] sm:$0xff]
    %v931 = vld [vmem:[%s5 + $0x188] sm:$0xff]
    %v932 = vld [vmem:[%s5 + $0x190] sm:$0xff]
    %v933 = vld [vmem:[%s5 + $0x198] sm:$0xff]
    %v934 = vld [vmem:[%s5 + $0x1a0] sm:$0xff]
    %v935 = vld [vmem:[%s5 + $0x1a8] sm:$0xff]
    %v936 = vld [vmem:[%s5 + $0x1b0] sm:$0xff]
    %v937 = vld [vmem:[%s5 + $0x1b8] sm:$0xff]
    %v938 = vld [vmem:[%s5 + $0x1c0] sm:$0xff]
    %v939 = vld [vmem:[%s5 + $0x1c8] sm:$0xff]
    %v940 = vld [vmem:[%s5 + $0x1d0] sm:$0xff]
    %v941 = vld [vmem:[%s5 + $0x1d8] sm:$0xff]
    %v942 = vld [vmem:[%s5 + $0x1e0] sm:$0xff]
    %v943 = vld [vmem:[%s5 + $0x1e8] sm:$0xff]
    %v944 = vld [vmem:[%s5 + $0x1f0] sm:$0xff]
    %v945 = vld [vmem:[%s5 + $0x1f8] sm:$0xff]
    %v946 = vld [vmem:[%s5 + $0x200] sm:$0xff]
    %v947 = vld [vmem:[%s5 + $0x208] sm:$0xff]
    %v948 = vld [vmem:[%s5 + $0x210] sm:$0xff]
    %v949 = vld [vmem:[%s5 + $0x218] sm:$0xff]
    %v950 = vld [vmem:[%s5 + $0x220] sm:$0xff]
    %v951 = vld [vmem:[%s5 + $0x228] sm:$0xff]
    %v952 = vld [vmem:[%s5 + $0x230] sm:$0xff]
    %v953 = vld [vmem:[%s5 + $0x238] sm:$0xff]
    %v955 = vsel %vm147, %v784, 0
    %v958 = vsel %vm147, %v789, 0
    %v961 = vsel %vm147, %v794, 0
    %v964 = vsel %vm147, %v799, 0
    %966 = vmatprep.subr.mxu0 0.0
    %967 = vmatpush1.msra.mxu0 %v897
    %968 = vmatprep.subr.mxu0 0.0
    %969 = vmatpush1.msra.mxu0 %v896
    %970 = vmatprep.subr.mxu0 0.0
    %971 = vmatpush1.msra.mxu0 %v895
    %972 = vmatprep.subr.mxu0 0.0
    %973 = vmatpush1.msra.mxu0 %v894
    %974 = vmatprep.subr.mxu0 0.0
    %975 = vmatpush1.msra.mxu0 %v893
    %976 = vmatprep.subr.mxu0 0.0
    %977 = vmatpush1.msra.mxu0 %v892
    %978 = vmatprep.subr.mxu0 0.0
    %979 = vmatpush1.msra.mxu0 %v891
    %980 = vmatprep.subr.mxu0 0.0
    %981 = vmatpush1.msra.mxu0 %v890
    %982 = vmatprep.subr.mxu0 0.0
    %983 = vmatpush1.msra.mxu0 %v889
    %984 = vmatprep.subr.mxu0 0.0
    %985 = vmatpush1.msra.mxu0 %v888
    %986 = vmatprep.subr.mxu0 0.0
    %987 = vmatpush1.msra.mxu0 %v887
    %988 = vmatprep.subr.mxu0 0.0
    %989 = vmatpush1.msra.mxu0 %v886
    %990 = vmatprep.subr.mxu0 0.0
    %991 = vmatpush1.msra.mxu0 %v885
    %992 = vmatprep.subr.mxu0 0.0
    %993 = vmatpush1.msra.mxu0 %v884
    %994 = vmatprep.subr.mxu0 0.0
    %995 = vmatpush1.msra.mxu0 %v883
    %996 = vmatprep.subr.mxu0 0.0
    %997 = vmatpush1.msra.mxu0 %v882
    %998 = vmatprep.subr.mxu0 0.0
    %999 = vmatpush2.msra.mxu0 %v913
    %1000 = vmatprep.subr.mxu0 0.0
    %1001 = vmatpush2.msra.mxu0 %v912
    %1002 = vmatprep.subr.mxu0 0.0
    %1003 = vmatpush2.msra.mxu0 %v911
    %1004 = vmatprep.subr.mxu0 0.0
    %1005 = vmatpush2.msra.mxu0 %v910
    %1006 = vmatprep.subr.mxu0 0.0
    %1007 = vmatpush2.msra.mxu0 %v909
    %1008 = vmatprep.subr.mxu0 0.0
    %1009 = vmatpush2.msra.mxu0 %v908
    %1010 = vmatprep.subr.mxu0 0.0
    %1011 = vmatpush2.msra.mxu0 %v907
    %1012 = vmatprep.subr.mxu0 0.0
    %1013 = vmatpush2.msra.mxu0 %v906
    %1014 = vmatprep.subr.mxu0 0.0
    %1015 = vmatpush2.msra.mxu0 %v905
    %1016 = vmatprep.subr.mxu0 0.0
    %1017 = vmatpush2.msra.mxu0 %v904
    %1018 = vmatprep.subr.mxu0 0.0
    %1019 = vmatpush2.msra.mxu0 %v903
    %1020 = vmatprep.subr.mxu0 0.0
    %1021 = vmatpush2.msra.mxu0 %v902
    %1022 = vmatprep.subr.mxu0 0.0
    %1023 = vmatpush2.msra.mxu0 %v901
    %1024 = vmatprep.subr.mxu0 0.0
    %1025 = vmatpush2.msra.mxu0 %v900
    %1026 = vmatprep.subr.mxu0 0.0
    %1027 = vmatpush2.msra.mxu0 %v899
    %1028 = vmatprep.subr.mxu0 0.0
    %1029 = vmatpush2.msra.mxu0 %v898
    %1030 = vmatprep.mubr.f32.mxu0 %v870
    %1031 = vmatmul.mubr.f32.gmra.mxu0 %v866
    %v1032 = vpop.f32.mrf.mxu0
    %v1033 = vadd.f32 0.0, %v1032
    %v1034 = vpop.f32.mrf.mxu0
    %1035 = vmatprep.mubr.f32.mxu0 %v871
    %1036 = vmatmul.mubr.f32.gmra.mxu0 %v867
    %v1037 = vpop.f32.mrf.mxu0
    %v1038 = vadd.f32 0.0, %v1037
    %v1039 = vpop.f32.mrf.mxu0
    %1040 = vmatprep.mubr.f32.mxu0 %v872
    %1041 = vmatmul.mubr.f32.gmra.mxu0 %v868
    %v1042 = vpop.f32.mrf.mxu0
    %v1043 = vadd.f32 0.0, %v1042
    %v1044 = vpop.f32.mrf.mxu0
    %1045 = vmatprep.mubr.f32.mxu0 %v873
    %1046 = vmatmul.mubr.f32.gmra.mxu0 %v869
    %v1047 = vpop.f32.mrf.mxu0
    %v1048 = vadd.f32 0.0, %v1047
    %v1049 = vpop.f32.mrf.mxu0
    %1050 = vdwg.mxu0
    %1051 = vmatprep.subr.mxu0 0.0
    %1052 = vmatpush1.msra.mxu0 %v929
    %1053 = vmatprep.subr.mxu0 0.0
    %1054 = vmatpush1.msra.mxu0 %v928
    %1055 = vmatprep.subr.mxu0 0.0
    %1056 = vmatpush1.msra.mxu0 %v927
    %1057 = vmatprep.subr.mxu0 0.0
    %1058 = vmatpush1.msra.mxu0 %v926
    %1059 = vmatprep.subr.mxu0 0.0
    %1060 = vmatpush1.msra.mxu0 %v925
    %1061 = vmatprep.subr.mxu0 0.0
    %1062 = vmatpush1.msra.mxu0 %v924
    %1063 = vmatprep.subr.mxu0 0.0
    %1064 = vmatpush1.msra.mxu0 %v923
    %1065 = vmatprep.subr.mxu0 0.0
    %1066 = vmatpush1.msra.mxu0 %v922
    %1067 = vmatprep.subr.mxu0 0.0
    %1068 = vmatpush1.msra.mxu0 %v921
    %1069 = vmatprep.subr.mxu0 0.0
    %1070 = vmatpush1.msra.mxu0 %v920
    %1071 = vmatprep.subr.mxu0 0.0
    %1072 = vmatpush1.msra.mxu0 %v919
    %1073 = vmatprep.subr.mxu0 0.0
    %1074 = vmatpush1.msra.mxu0 %v918
    %1075 = vmatprep.subr.mxu0 0.0
    %1076 = vmatpush1.msra.mxu0 %v917
    %1077 = vmatprep.subr.mxu0 0.0
    %1078 = vmatpush1.msra.mxu0 %v916
    %1079 = vmatprep.subr.mxu0 0.0
    %1080 = vmatpush1.msra.mxu0 %v915
    %1081 = vmatprep.subr.mxu0 0.0
    %1082 = vmatpush1.msra.mxu0 %v914
    %1083 = vmatprep.subr.mxu0 0.0
    %1084 = vmatpush2.msra.mxu0 %v945
    %1085 = vmatprep.subr.mxu0 0.0
    %1086 = vmatpush2.msra.mxu0 %v944
    %1087 = vmatprep.subr.mxu0 0.0
    %1088 = vmatpush2.msra.mxu0 %v943
    %1089 = vmatprep.subr.mxu0 0.0
    %1090 = vmatpush2.msra.mxu0 %v942
    %1091 = vmatprep.subr.mxu0 0.0
    %1092 = vmatpush2.msra.mxu0 %v941
    %1093 = vmatprep.subr.mxu0 0.0
    %1094 = vmatpush2.msra.mxu0 %v940
    %1095 = vmatprep.subr.mxu0 0.0
    %1096 = vmatpush2.msra.mxu0 %v939
    %1097 = vmatprep.subr.mxu0 0.0
    %1098 = vmatpush2.msra.mxu0 %v938
    %1099 = vmatprep.subr.mxu0 0.0
    %1100 = vmatpush2.msra.mxu0 %v937
    %1101 = vmatprep.subr.mxu0 0.0
    %1102 = vmatpush2.msra.mxu0 %v936
    %1103 = vmatprep.subr.mxu0 0.0
    %1104 = vmatpush2.msra.mxu0 %v935
    %1105 = vmatprep.subr.mxu0 0.0
    %1106 = vmatpush2.msra.mxu0 %v934
    %1107 = vmatprep.subr.mxu0 0.0
    %1108 = vmatpush2.msra.mxu0 %v933
    %1109 = vmatprep.subr.mxu0 0.0
    %1110 = vmatpush2.msra.mxu0 %v932
    %1111 = vmatprep.subr.mxu0 0.0
    %1112 = vmatpush2.msra.mxu0 %v931
    %1113 = vmatprep.subr.mxu0 0.0
    %1114 = vmatpush2.msra.mxu0 %v930
    %1115 = vmatprep.mubr.f32.mxu0 %v878
    %1116 = vmatmul.mubr.f32.gmra.mxu0 %v874
    %v1117 = vpop.f32.mrf.mxu0
    %v1118 = vadd.f32 %v1033, %v1117
    %v1119 = vpop.f32.mrf.mxu0
    %1120 = vmatprep.mubr.f32.mxu0 %v879
    %1121 = vmatmul.mubr.f32.gmra.mxu0 %v875
    %v1122 = vpop.f32.mrf.mxu0
    %v1123 = vadd.f32 %v1038, %v1122
    %v1124 = vpop.f32.mrf.mxu0
    %1125 = vmatprep.mubr.f32.mxu0 %v880
    %1126 = vmatmul.mubr.f32.gmra.mxu0 %v876
    %v1127 = vpop.f32.mrf.mxu0
    %v1128 = vadd.f32 %v1043, %v1127
    %v1129 = vpop.f32.mrf.mxu0
    %1130 = vmatprep.mubr.f32.mxu0 %v881
    %1131 = vmatmul.mubr.f32.gmra.mxu0 %v877
    %v1132 = vpop.f32.mrf.mxu0
    %v1133 = vadd.f32 %v1048, %v1132
    %v1134 = vpop.f32.mrf.mxu0
    %1135 = vdwg.mxu0
    %1136 = vmatprep.subr.mxu0 0.0
    %1137 = vmatpush1.msra.mxu0 0.0
    %1138 = vmatprep.subr.mxu0 0.0
    %1139 = vmatpush1.msra.mxu0 0.0
    %1140 = vmatprep.subr.mxu0 0.0
    %1141 = vmatpush1.msra.mxu0 0.0
    %1142 = vmatprep.subr.mxu0 0.0
    %1143 = vmatpush1.msra.mxu0 0.0
    %1144 = vmatprep.subr.mxu0 0.0
    %1145 = vmatpush1.msra.mxu0 0.0
    %1146 = vmatprep.subr.mxu0 0.0
    %1147 = vmatpush1.msra.mxu0 0.0
    %1148 = vmatprep.subr.mxu0 0.0
    %1149 = vmatpush1.msra.mxu0 0.0
    %1150 = vmatprep.subr.mxu0 0.0
    %1151 = vmatpush1.msra.mxu0 0.0
    %1152 = vmatprep.subr.mxu0 0.0
    %1153 = vmatpush1.msra.mxu0 %v953
    %1154 = vmatprep.subr.mxu0 0.0
    %1155 = vmatpush1.msra.mxu0 %v952
    %1156 = vmatprep.subr.mxu0 0.0
    %1157 = vmatpush1.msra.mxu0 %v951
    %1158 = vmatprep.subr.mxu0 0.0
    %1159 = vmatpush1.msra.mxu0 %v950
    %1160 = vmatprep.subr.mxu0 0.0
    %1161 = vmatpush1.msra.mxu0 %v949
    %1162 = vmatprep.subr.mxu0 0.0
    %1163 = vmatpush1.msra.mxu0 %v948
    %1164 = vmatprep.subr.mxu0 0.0
    %1165 = vmatpush1.msra.mxu0 %v947
    %1166 = vmatprep.subr.mxu0 0.0
    %1167 = vmatpush1.msra.mxu0 %v946
    %1168 = vmatprep.subr.mxu0 0.0
    %1169 = vmatpush2.msra.mxu0 0.0
    %1170 = vmatprep.subr.mxu0 0.0
    %1171 = vmatpush2.msra.mxu0 0.0
    %1172 = vmatprep.subr.mxu0 0.0
    %1173 = vmatpush2.msra.mxu0 0.0
    %1174 = vmatprep.subr.mxu0 0.0
    %1175 = vmatpush2.msra.mxu0 0.0
    %1176 = vmatprep.subr.mxu0 0.0
    %1177 = vmatpush2.msra.mxu0 0.0
    %1178 = vmatprep.subr.mxu0 0.0
    %1179 = vmatpush2.msra.mxu0 0.0
    %1180 = vmatprep.subr.mxu0 0.0
    %1181 = vmatpush2.msra.mxu0 0.0
    %1182 = vmatprep.subr.mxu0 0.0
    %1183 = vmatpush2.msra.mxu0 0.0
    %1184 = vmatprep.subr.mxu0 0.0
    %1185 = vmatpush2.msra.mxu0 0.0
    %1186 = vmatprep.subr.mxu0 0.0
    %1187 = vmatpush2.msra.mxu0 0.0
    %1188 = vmatprep.subr.mxu0 0.0
    %1189 = vmatpush2.msra.mxu0 0.0
    %1190 = vmatprep.subr.mxu0 0.0
    %1191 = vmatpush2.msra.mxu0 0.0
    %1192 = vmatprep.subr.mxu0 0.0
    %1193 = vmatpush2.msra.mxu0 0.0
    %1194 = vmatprep.subr.mxu0 0.0
    %1195 = vmatpush2.msra.mxu0 0.0
    %1196 = vmatprep.subr.mxu0 0.0
    %1197 = vmatpush2.msra.mxu0 0.0
    %1198 = vmatprep.subr.mxu0 0.0
    %1199 = vmatpush2.msra.mxu0 0.0
    %1200 = vmatprep.mubr.f32.mxu0 0.0
    %1201 = vmatmul.mubr.f32.gmra.mxu0 %v955
    %v1202 = vpop.f32.mrf.mxu0
    %v1203 = vadd.f32 %v1118, %v1202
    %v1204 = vpop.f32.mrf.mxu0
    %1205 = vmatprep.mubr.f32.mxu0 0.0
    %1206 = vmatmul.mubr.f32.gmra.mxu0 %v958
    %v1207 = vpop.f32.mrf.mxu0
    %v1208 = vadd.f32 %v1123, %v1207
    %v1209 = vpop.f32.mrf.mxu0
    %1210 = vmatprep.mubr.f32.mxu0 0.0
    %1211 = vmatmul.mubr.f32.gmra.mxu0 %v961
    %v1212 = vpop.f32.mrf.mxu0
    %v1213 = vadd.f32 %v1128, %v1212
    %v1214 = vpop.f32.mrf.mxu0
    %1215 = vmatprep.mubr.f32.mxu0 0.0
    %1216 = vmatmul.mubr.f32.gmra.mxu0 %v964
    %v1217 = vpop.f32.mrf.mxu0
    %v1218 = vadd.f32 %v1133, %v1217
    %v1219 = vpop.f32.mrf.mxu0
    %1220 = vdwg.mxu0
    %1225 = vrot.lane.b32.xlu0 %v624, 64
    %v1226 = vpop.permute.xlu0 %1225
    %1227 = vrot.lane.b32.xlu0 %v629, 64
    %v1228 = vpop.permute.xlu0 %1227
    %1229 = vrot.lane.b32.xlu0 %v634, 64
    %v1230 = vpop.permute.xlu0 %1229
    %1231 = vrot.lane.b32.xlu0 %v639, 64
    %v1232 = vpop.permute.xlu0 %1231
    %1241 = vrot.lane.b32.xlu0 %v664, 64
    %v1242 = vpop.permute.xlu0 %1241
    %1243 = vrot.lane.b32.xlu0 %v669, 64
    %v1244 = vpop.permute.xlu0 %1243
    %1245 = vrot.lane.b32.xlu0 %v674, 64
    %v1246 = vpop.permute.xlu0 %1245
    %1247 = vrot.lane.b32.xlu0 %v679, 64
    %v1248 = vpop.permute.xlu0 %1247
    %1257 = vrot.lane.b32.xlu0 %v704, 64
    %v1258 = vpop.permute.xlu0 %1257
    %1259 = vrot.lane.b32.xlu0 %v709, 64
    %v1260 = vpop.permute.xlu0 %1259
    %1261 = vrot.lane.b32.xlu0 %v714, 64
    %v1262 = vpop.permute.xlu0 %1261
    %1263 = vrot.lane.b32.xlu0 %v719, 64
    %v1264 = vpop.permute.xlu0 %1263
    %1273 = vrot.lane.b32.xlu0 %v744, 64
    %v1274 = vpop.permute.xlu0 %1273
    %1275 = vrot.lane.b32.xlu0 %v749, 64
    %v1276 = vpop.permute.xlu0 %1275
    %1277 = vrot.lane.b32.xlu0 %v754, 64
    %v1278 = vpop.permute.xlu0 %1277
    %1279 = vrot.lane.b32.xlu0 %v759, 64
    %v1280 = vpop.permute.xlu0 %1279
    %1285 = vrot.lane.b32.xlu0 %v784, 64
    %v1286 = vpop.permute.xlu0 %1285
    %1287 = vrot.lane.b32.xlu0 %v789, 64
    %v1288 = vpop.permute.xlu0 %1287
    %1289 = vrot.lane.b32.xlu0 %v794, 64
    %v1290 = vpop.permute.xlu0 %1289
    %1291 = vrot.lane.b32.xlu0 %v799, 64
    %v1292 = vpop.permute.xlu0 %1291
    %v1293 = vsel %vm147, %v1226, %v644
    %v1294 = vsel %vm147, %v1228, %v649
    %v1295 = vsel %vm147, %v1230, %v654
    %v1296 = vsel %vm147, %v1232, %v659
    %v1297 = vsel %vm147, %v1242, %v684
    %v1298 = vsel %vm147, %v1244, %v689
    %v1299 = vsel %vm147, %v1246, %v694
    %v1300 = vsel %vm147, %v1248, %v699
    %v1301 = vsel %vm147, %v1258, %v724
    %v1302 = vsel %vm147, %v1260, %v729
    %v1303 = vsel %vm147, %v1262, %v734
    %v1304 = vsel %vm147, %v1264, %v739
    %v1305 = vsel %vm147, %v1274, %v764
    %v1306 = vsel %vm147, %v1276, %v769
    %v1307 = vsel %vm147, %v1278, %v774
    %v1308 = vsel %vm147, %v1280, %v779
    %v1309 = vsel %vm147, %v1286, 0
    %v1311 = vsel %vm147, %v1288, 0
    %v1313 = vsel %vm147, %v1290, 0
    %v1315 = vsel %vm147, %v1292, 0
    %1317 = vmatprep.subr.mxu0 0.0
    %1318 = vmatpush1.msra.mxu0 %v897
    %1319 = vmatprep.subr.mxu0 0.0
    %1320 = vmatpush1.msra.mxu0 %v896
    %1321 = vmatprep.subr.mxu0 0.0
    %1322 = vmatpush1.msra.mxu0 %v895
    %1323 = vmatprep.subr.mxu0 0.0
    %1324 = vmatpush1.msra.mxu0 %v894
    %1325 = vmatprep.subr.mxu0 0.0
    %1326 = vmatpush1.msra.mxu0 %v893
    %1327 = vmatprep.subr.mxu0 0.0
    %1328 = vmatpush1.msra.mxu0 %v892
    %1329 = vmatprep.subr.mxu0 0.0
    %1330 = vmatpush1.msra.mxu0 %v891
    %1331 = vmatprep.subr.mxu0 0.0
    %1332 = vmatpush1.msra.mxu0 %v890
    %1333 = vmatprep.subr.mxu0 0.0
    %1334 = vmatpush1.msra.mxu0 %v889
    %1335 = vmatprep.subr.mxu0 0.0
    %1336 = vmatpush1.msra.mxu0 %v888
    %1337 = vmatprep.subr.mxu0 0.0
    %1338 = vmatpush1.msra.mxu0 %v887
    %1339 = vmatprep.subr.mxu0 0.0
    %1340 = vmatpush1.msra.mxu0 %v886
    %1341 = vmatprep.subr.mxu0 0.0
    %1342 = vmatpush1.msra.mxu0 %v885
    %1343 = vmatprep.subr.mxu0 0.0
    %1344 = vmatpush1.msra.mxu0 %v884
    %1345 = vmatprep.subr.mxu0 0.0
    %1346 = vmatpush1.msra.mxu0 %v883
    %1347 = vmatprep.subr.mxu0 0.0
    %1348 = vmatpush1.msra.mxu0 %v882
    %1349 = vmatprep.subr.mxu0 0.0
    %1350 = vmatpush2.msra.mxu0 %v913
    %1351 = vmatprep.subr.mxu0 0.0
    %1352 = vmatpush2.msra.mxu0 %v912
    %1353 = vmatprep.subr.mxu0 0.0
    %1354 = vmatpush2.msra.mxu0 %v911
    %1355 = vmatprep.subr.mxu0 0.0
    %1356 = vmatpush2.msra.mxu0 %v910
    %1357 = vmatprep.subr.mxu0 0.0
    %1358 = vmatpush2.msra.mxu0 %v909
    %1359 = vmatprep.subr.mxu0 0.0
    %1360 = vmatpush2.msra.mxu0 %v908
    %1361 = vmatprep.subr.mxu0 0.0
    %1362 = vmatpush2.msra.mxu0 %v907
    %1363 = vmatprep.subr.mxu0 0.0
    %1364 = vmatpush2.msra.mxu0 %v906
    %1365 = vmatprep.subr.mxu0 0.0
    %1366 = vmatpush2.msra.mxu0 %v905
    %1367 = vmatprep.subr.mxu0 0.0
    %1368 = vmatpush2.msra.mxu0 %v904
    %1369 = vmatprep.subr.mxu0 0.0
    %1370 = vmatpush2.msra.mxu0 %v903
    %1371 = vmatprep.subr.mxu0 0.0
    %1372 = vmatpush2.msra.mxu0 %v902
    %1373 = vmatprep.subr.mxu0 0.0
    %1374 = vmatpush2.msra.mxu0 %v901
    %1375 = vmatprep.subr.mxu0 0.0
    %1376 = vmatpush2.msra.mxu0 %v900
    %1377 = vmatprep.subr.mxu0 0.0
    %1378 = vmatpush2.msra.mxu0 %v899
    %1379 = vmatprep.subr.mxu0 0.0
    %1380 = vmatpush2.msra.mxu0 %v898
    %1381 = vmatprep.mubr.f32.mxu0 %v1297
    %1382 = vmatmul.mubr.f32.gmra.mxu0 %v1293
    %v1383 = vpop.f32.mrf.mxu0
    %v1384 = vadd.f32 0.0, %v1383
    %v1385 = vpop.f32.mrf.mxu0
    %1386 = vmatprep.mubr.f32.mxu0 %v1298
    %1387 = vmatmul.mubr.f32.gmra.mxu0 %v1294
    %v1388 = vpop.f32.mrf.mxu0
    %v1389 = vadd.f32 0.0, %v1388
    %v1390 = vpop.f32.mrf.mxu0
    %1391 = vmatprep.mubr.f32.mxu0 %v1299
    %1392 = vmatmul.mubr.f32.gmra.mxu0 %v1295
    %v1393 = vpop.f32.mrf.mxu0
    %v1394 = vadd.f32 0.0, %v1393
    %v1395 = vpop.f32.mrf.mxu0
    %1396 = vmatprep.mubr.f32.mxu0 %v1300
    %1397 = vmatmul.mubr.f32.gmra.mxu0 %v1296
    %v1398 = vpop.f32.mrf.mxu0
    %v1399 = vadd.f32 0.0, %v1398
    %v1400 = vpop.f32.mrf.mxu0
    %1401 = vdwg.mxu0
    %1402 = vmatprep.subr.mxu0 0.0
    %1403 = vmatpush1.msra.mxu0 %v929
    %1404 = vmatprep.subr.mxu0 0.0
    %1405 = vmatpush1.msra.mxu0 %v928
    %1406 = vmatprep.subr.mxu0 0.0
    %1407 = vmatpush1.msra.mxu0 %v927
    %1408 = vmatprep.subr.mxu0 0.0
    %1409 = vmatpush1.msra.mxu0 %v926
    %1410 = vmatprep.subr.mxu0 0.0
    %1411 = vmatpush1.msra.mxu0 %v925
    %1412 = vmatprep.subr.mxu0 0.0
    %1413 = vmatpush1.msra.mxu0 %v924
    %1414 = vmatprep.subr.mxu0 0.0
    %1415 = vmatpush1.msra.mxu0 %v923
    %1416 = vmatprep.subr.mxu0 0.0
    %1417 = vmatpush1.msra.mxu0 %v922
    %1418 = vmatprep.subr.mxu0 0.0
    %1419 = vmatpush1.msra.mxu0 %v921
    %1420 = vmatprep.subr.mxu0 0.0
    %1421 = vmatpush1.msra.mxu0 %v920
    %1422 = vmatprep.subr.mxu0 0.0
    %1423 = vmatpush1.msra.mxu0 %v919
    %1424 = vmatprep.subr.mxu0 0.0
    %1425 = vmatpush1.msra.mxu0 %v918
    %1426 = vmatprep.subr.mxu0 0.0
    %1427 = vmatpush1.msra.mxu0 %v917
    %1428 = vmatprep.subr.mxu0 0.0
    %1429 = vmatpush1.msra.mxu0 %v916
    %1430 = vmatprep.subr.mxu0 0.0
    %1431 = vmatpush1.msra.mxu0 %v915
    %1432 = vmatprep.subr.mxu0 0.0
    %1433 = vmatpush1.msra.mxu0 %v914
    %1434 = vmatprep.subr.mxu0 0.0
    %1435 = vmatpush2.msra.mxu0 %v945
    %1436 = vmatprep.subr.mxu0 0.0
    %1437 = vmatpush2.msra.mxu0 %v944
    %1438 = vmatprep.subr.mxu0 0.0
    %1439 = vmatpush2.msra.mxu0 %v943
    %1440 = vmatprep.subr.mxu0 0.0
    %1441 = vmatpush2.msra.mxu0 %v942
    %1442 = vmatprep.subr.mxu0 0.0
    %1443 = vmatpush2.msra.mxu0 %v941
    %1444 = vmatprep.subr.mxu0 0.0
    %1445 = vmatpush2.msra.mxu0 %v940
    %1446 = vmatprep.subr.mxu0 0.0
    %1447 = vmatpush2.msra.mxu0 %v939
    %1448 = vmatprep.subr.mxu0 0.0
    %1449 = vmatpush2.msra.mxu0 %v938
    %1450 = vmatprep.subr.mxu0 0.0
    %1451 = vmatpush2.msra.mxu0 %v937
    %1452 = vmatprep.subr.mxu0 0.0
    %1453 = vmatpush2.msra.mxu0 %v936
    %1454 = vmatprep.subr.mxu0 0.0
    %1455 = vmatpush2.msra.mxu0 %v935
    %1456 = vmatprep.subr.mxu0 0.0
    %1457 = vmatpush2.msra.mxu0 %v934
    %1458 = vmatprep.subr.mxu0 0.0
    %1459 = vmatpush2.msra.mxu0 %v933
    %1460 = vmatprep.subr.mxu0 0.0
    %1461 = vmatpush2.msra.mxu0 %v932
    %1462 = vmatprep.subr.mxu0 0.0
    %1463 = vmatpush2.msra.mxu0 %v931
    %1464 = vmatprep.subr.mxu0 0.0
    %1465 = vmatpush2.msra.mxu0 %v930
    %1466 = vmatprep.mubr.f32.mxu0 %v1305
    %1467 = vmatmul.mubr.f32.gmra.mxu0 %v1301
    %v1468 = vpop.f32.mrf.mxu0
    %v1469 = vadd.f32 %v1384, %v1468
    %v1470 = vpop.f32.mrf.mxu0
    %1471 = vmatprep.mubr.f32.mxu0 %v1306
    %1472 = vmatmul.mubr.f32.gmra.mxu0 %v1302
    %v1473 = vpop.f32.mrf.mxu0
    %v1474 = vadd.f32 %v1389, %v1473
    %v1475 = vpop.f32.mrf.mxu0
    %1476 = vmatprep.mubr.f32.mxu0 %v1307
    %1477 = vmatmul.mubr.f32.gmra.mxu0 %v1303
    %v1478 = vpop.f32.mrf.mxu0
    %v1479 = vadd.f32 %v1394, %v1478
    %v1480 = vpop.f32.mrf.mxu0
    %1481 = vmatprep.mubr.f32.mxu0 %v1308
    %1482 = vmatmul.mubr.f32.gmra.mxu0 %v1304
    %v1483 = vpop.f32.mrf.mxu0
    %v1484 = vadd.f32 %v1399, %v1483
    %v1485 = vpop.f32.mrf.mxu0
    %1486 = vdwg.mxu0
    %1487 = vmatprep.subr.mxu0 0.0
    %1488 = vmatpush1.msra.mxu0 0.0
    %1489 = vmatprep.subr.mxu0 0.0
    %1490 = vmatpush1.msra.mxu0 0.0
    %1491 = vmatprep.subr.mxu0 0.0
    %1492 = vmatpush1.msra.mxu0 0.0
    %1493 = vmatprep.subr.mxu0 0.0
    %1494 = vmatpush1.msra.mxu0 0.0
    %1495 = vmatprep.subr.mxu0 0.0
    %1496 = vmatpush1.msra.mxu0 0.0
    %1497 = vmatprep.subr.mxu0 0.0
    %1498 = vmatpush1.msra.mxu0 0.0
    %1499 = vmatprep.subr.mxu0 0.0
    %1500 = vmatpush1.msra.mxu0 0.0
    %1501 = vmatprep.subr.mxu0 0.0
    %1502 = vmatpush1.msra.mxu0 0.0
    %1503 = vmatprep.subr.mxu0 0.0
    %1504 = vmatpush1.msra.mxu0 %v953
    %1505 = vmatprep.subr.mxu0 0.0
    %1506 = vmatpush1.msra.mxu0 %v952
    %1507 = vmatprep.subr.mxu0 0.0
    %1508 = vmatpush1.msra.mxu0 %v951
    %1509 = vmatprep.subr.mxu0 0.0
    %1510 = vmatpush1.msra.mxu0 %v950
    %1511 = vmatprep.subr.mxu0 0.0
    %1512 = vmatpush1.msra.mxu0 %v949
    %1513 = vmatprep.subr.mxu0 0.0
    %1514 = vmatpush1.msra.mxu0 %v948
    %1515 = vmatprep.subr.mxu0 0.0
    %1516 = vmatpush1.msra.mxu0 %v947
    %1517 = vmatprep.subr.mxu0 0.0
    %1518 = vmatpush1.msra.mxu0 %v946
    %1519 = vmatprep.subr.mxu0 0.0
    %1520 = vmatpush2.msra.mxu0 0.0
    %1521 = vmatprep.subr.mxu0 0.0
    %1522 = vmatpush2.msra.mxu0 0.0
    %1523 = vmatprep.subr.mxu0 0.0
    %1524 = vmatpush2.msra.mxu0 0.0
    %1525 = vmatprep.subr.mxu0 0.0
    %1526 = vmatpush2.msra.mxu0 0.0
    %1527 = vmatprep.subr.mxu0 0.0
    %1528 = vmatpush2.msra.mxu0 0.0
    %1529 = vmatprep.subr.mxu0 0.0
    %1530 = vmatpush2.msra.mxu0 0.0
    %1531 = vmatprep.subr.mxu0 0.0
    %1532 = vmatpush2.msra.mxu0 0.0
    %1533 = vmatprep.subr.mxu0 0.0
    %1534 = vmatpush2.msra.mxu0 0.0
    %1535 = vmatprep.subr.mxu0 0.0
    %1536 = vmatpush2.msra.mxu0 0.0
    %1537 = vmatprep.subr.mxu0 0.0
    %1538 = vmatpush2.msra.mxu0 0.0
    %1539 = vmatprep.subr.mxu0 0.0
    %1540 = vmatpush2.msra.mxu0 0.0
    %1541 = vmatprep.subr.mxu0 0.0
    %1542 = vmatpush2.msra.mxu0 0.0
    %1543 = vmatprep.subr.mxu0 0.0
    %1544 = vmatpush2.msra.mxu0 0.0
    %1545 = vmatprep.subr.mxu0 0.0
    %1546 = vmatpush2.msra.mxu0 0.0
    %1547 = vmatprep.subr.mxu0 0.0
    %1548 = vmatpush2.msra.mxu0 0.0
    %1549 = vmatprep.subr.mxu0 0.0
    %1550 = vmatpush2.msra.mxu0 0.0
    %1551 = vmatprep.mubr.f32.mxu0 0.0
    %1552 = vmatmul.mubr.f32.gmra.mxu0 %v1309
    %v1553 = vpop.f32.mrf.mxu0
    %v1554 = vadd.f32 %v1469, %v1553
    %v1555 = vpop.f32.mrf.mxu0
    %1556 = vmatprep.mubr.f32.mxu0 0.0
    %1557 = vmatmul.mubr.f32.gmra.mxu0 %v1311
    %v1558 = vpop.f32.mrf.mxu0
    %v1559 = vadd.f32 %v1474, %v1558
    %v1560 = vpop.f32.mrf.mxu0
    %1561 = vmatprep.mubr.f32.mxu0 0.0
    %1562 = vmatmul.mubr.f32.gmra.mxu0 %v1313
    %v1563 = vpop.f32.mrf.mxu0
    %v1564 = vadd.f32 %v1479, %v1563
    %v1565 = vpop.f32.mrf.mxu0
    %1566 = vmatprep.mubr.f32.mxu0 0.0
    %1567 = vmatmul.mubr.f32.gmra.mxu0 %v1315
    %v1568 = vpop.f32.mrf.mxu0
    %v1569 = vadd.f32 %v1484, %v1568
    %v1570 = vpop.f32.mrf.mxu0
    %1571 = vdwg.mxu0
    %1576 = vrot.lane.b32.xlu0 %v1554, 64
    %v1577 = vpop.permute.xlu0 %1576
    %1578 = vrot.lane.b32.xlu0 %v1559, 64
    %v1579 = vpop.permute.xlu0 %1578
    %1580 = vrot.lane.b32.xlu0 %v1564, 64
    %v1581 = vpop.permute.xlu0 %1580
    %1582 = vrot.lane.b32.xlu0 %v1569, 64
    %v1583 = vpop.permute.xlu0 %1582
    %v1588 = vsel %vm147, %v1203, %v1577
    %v1589 = vsel %vm147, %v1208, %v1579
    %v1590 = vsel %vm147, %v1213, %v1581
    %v1591 = vsel %vm147, %v1218, %v1583
    %v1592 = vld [vmem:[%s4] sm:$0xff]
    %v1593 = vld [vmem:[%s4 + $0x8] sm:$0xff]
    %v1594 = vld [vmem:[%s4 + $0x10] sm:$0xff]
    %v1595 = vld [vmem:[%s4 + $0x18] sm:$0xff]
    %1597 = vset.pattern.permute.xlu0 0
    %1598 = vperm.xlu0 %1597, %v1592
    %v1599 = vpop.permute.xlu0 %1598
    %1602 = vset.pattern.permute.xlu0 0
    %1603 = vperm.xlu0 %1602, %v1593
    %v1604 = vpop.permute.xlu0 %1603
    %1607 = vset.pattern.permute.xlu0 0
    %1608 = vperm.xlu0 %1607, %v1594
    %v1609 = vpop.permute.xlu0 %1608
    %1612 = vset.pattern.permute.xlu0 0
    %1613 = vperm.xlu0 %1612, %v1595
    %v1614 = vpop.permute.xlu0 %1613
    %v1616 = vadd.f32 %v1588, %v1599
    %v1617 = vadd.f32 %v1589, %v1604
    %v1618 = vadd.f32 %v1590, %v1609
    %v1619 = vadd.f32 %v1591, %v1614
    %v1620 = vmax.f32 %v1616, 0.0
    %v1621 = vmax.f32 %v1617, 0.0
    %v1622 = vmax.f32 %v1618, 0.0
    %v1623 = vmax.f32 %v1619, 0.0
    %v1624 = vld [vmem:[%s6] sm:$0xff]
    %v1625 = vld [vmem:[%s6 + $0x8] sm:$0xff]
    %v1626 = vld [vmem:[%s6 + $0x10] sm:$0xff]
    %v1627 = vld [vmem:[%s6 + $0x18] sm:$0xff]
    %v1628 = vld [vmem:[%s6 + $0x20] sm:$0xff]
    %v1629 = vld [vmem:[%s6 + $0x28] sm:$0xff]
    %v1630 = vld [vmem:[%s6 + $0x30] sm:$0xff]
    %v1631 = vld [vmem:[%s6 + $0x38] sm:$0xff]
    %v1632 = vld [vmem:[%s6 + $0x40] sm:$0xff]
    %v1634 = vsel %vm250, %v1624, 0
    %v1637 = vsel %vm250, %v1625, 0
    %v1640 = vsel %vm250, %v1626, 0
    %v1643 = vsel %vm250, %v1627, 0
    %v1646 = vsel %vm250, %v1628, 0
    %v1649 = vsel %vm250, %v1629, 0
    %v1652 = vsel %vm250, %v1630, 0
    %v1655 = vsel %vm250, %v1631, 0
    %v1658 = vsel %vm250, %v1632, 0
    %1660 = vmatprep.subr.mxu0 0.0
    %1661 = vmatpush1.msra.mxu0 0.0
    %1662 = vmatprep.subr.mxu0 0.0
    %1663 = vmatpush1.msra.mxu0 0.0
    %1664 = vmatprep.subr.mxu0 0.0
    %1665 = vmatpush1.msra.mxu0 0.0
    %1666 = vmatprep.subr.mxu0 0.0
    %1667 = vmatpush1.msra.mxu0 0.0
    %1668 = vmatprep.subr.mxu0 0.0
    %1669 = vmatpush1.msra.mxu0 0.0
    %1670 = vmatprep.subr.mxu0 0.0
    %1671 = vmatpush1.msra.mxu0 0.0
    %1672 = vmatprep.subr.mxu0 0.0
    %1673 = vmatpush1.msra.mxu0 0.0
    %1674 = vmatprep.subr.mxu0 0.0
    %1675 = vmatpush1.msra.mxu0 0.0
    %1676 = vmatprep.subr.mxu0 0.0
    %1677 = vmatpush1.msra.mxu0 0.0
    %1678 = vmatprep.subr.mxu0 0.0
    %1679 = vmatpush1.msra.mxu0 0.0
    %1680 = vmatprep.subr.mxu0 0.0
    %1681 = vmatpush1.msra.mxu0 0.0
    %1682 = vmatprep.subr.mxu0 0.0
    %1683 = vmatpush1.msra.mxu0 0.0
    %1684 = vmatprep.subr.mxu0 0.0
    %1685 = vmatpush1.msra.mxu0 %v1623
    %1686 = vmatprep.subr.mxu0 0.0
    %1687 = vmatpush1.msra.mxu0 %v1622
    %1688 = vmatprep.subr.mxu0 0.0
    %1689 = vmatpush1.msra.mxu0 %v1621
    %1690 = vmatprep.subr.mxu0 0.0
    %1691 = vmatpush1.msra.mxu0 %v1620
    %1692 = vmatprep.subr.mxu0 0.0
    %1693 = vmatpush2.msra.mxu0 0.0
    %1694 = vmatprep.subr.mxu0 0.0
    %1695 = vmatpush2.msra.mxu0 0.0
    %1696 = vmatprep.subr.mxu0 0.0
    %1697 = vmatpush2.msra.mxu0 0.0
    %1698 = vmatprep.subr.mxu0 0.0
    %1699 = vmatpush2.msra.mxu0 0.0
    %1700 = vmatprep.subr.mxu0 0.0
    %1701 = vmatpush2.msra.mxu0 0.0
    %1702 = vmatprep.subr.mxu0 0.0
    %1703 = vmatpush2.msra.mxu0 0.0
    %1704 = vmatprep.subr.mxu0 0.0
    %1705 = vmatpush2.msra.mxu0 0.0
    %1706 = vmatprep.subr.mxu0 0.0
    %1707 = vmatpush2.msra.mxu0 0.0
    %1708 = vmatprep.subr.mxu0 0.0
    %1709 = vmatpush2.msra.mxu0 0.0
    %1710 = vmatprep.subr.mxu0 0.0
    %1711 = vmatpush2.msra.mxu0 0.0
    %1712 = vmatprep.subr.mxu0 0.0
    %1713 = vmatpush2.msra.mxu0 0.0
    %1714 = vmatprep.subr.mxu0 0.0
    %1715 = vmatpush2.msra.mxu0 0.0
    %1716 = vmatprep.subr.mxu0 0.0
    %1717 = vmatpush2.msra.mxu0 0.0
    %1718 = vmatprep.subr.mxu0 0.0
    %1719 = vmatpush2.msra.mxu0 0.0
    %1720 = vmatprep.subr.mxu0 0.0
    %1721 = vmatpush2.msra.mxu0 0.0
    %1722 = vmatprep.subr.mxu0 0.0
    %1723 = vmatpush2.msra.mxu0 0.0
    %1724 = vmatprep.mubr.f32.mxu0 0.0
    %1725 = vmatmul.mubr.f32.gmra.mxu0 %v1634
    %v1726 = vpop.f32.mrf.mxu0
    %v1727 = vadd.f32 0.0, %v1726
    %v1728 = vpop.f32.mrf.mxu0
    %1729 = vmatprep.mubr.f32.mxu0 0.0
    %1730 = vmatmul.mubr.f32.gmra.mxu0 %v1637
    %v1731 = vpop.f32.mrf.mxu0
    %v1732 = vadd.f32 0.0, %v1731
    %v1733 = vpop.f32.mrf.mxu0
    %1734 = vmatprep.mubr.f32.mxu0 0.0
    %1735 = vmatmul.mubr.f32.gmra.mxu0 %v1640
    %v1736 = vpop.f32.mrf.mxu0
    %v1737 = vadd.f32 0.0, %v1736
    %v1738 = vpop.f32.mrf.mxu0
    %1739 = vmatprep.mubr.f32.mxu0 0.0
    %1740 = vmatmul.mubr.f32.gmra.mxu0 %v1643
    %v1741 = vpop.f32.mrf.mxu0
    %v1742 = vadd.f32 0.0, %v1741
    %v1743 = vpop.f32.mrf.mxu0
    %1744 = vmatprep.mubr.f32.mxu0 0.0
    %1745 = vmatmul.mubr.f32.gmra.mxu0 %v1646
    %v1746 = vpop.f32.mrf.mxu0
    %v1747 = vadd.f32 0.0, %v1746
    %v1748 = vpop.f32.mrf.mxu0
    %1749 = vmatprep.mubr.f32.mxu0 0.0
    %1750 = vmatmul.mubr.f32.gmra.mxu0 %v1649
    %v1751 = vpop.f32.mrf.mxu0
    %v1752 = vadd.f32 0.0, %v1751
    %v1753 = vpop.f32.mrf.mxu0
    %1754 = vmatprep.mubr.f32.mxu0 0.0
    %1755 = vmatmul.mubr.f32.gmra.mxu0 %v1652
    %v1756 = vpop.f32.mrf.mxu0
    %v1757 = vadd.f32 0.0, %v1756
    %v1758 = vpop.f32.mrf.mxu0
    %1759 = vmatprep.mubr.f32.mxu0 0.0
    %1760 = vmatmul.mubr.f32.gmra.mxu0 %v1655
    %v1761 = vpop.f32.mrf.mxu0
    %v1762 = vadd.f32 0.0, %v1761
    %v1763 = vpop.f32.mrf.mxu0
    %1764 = vmatprep.mubr.f32.mxu0 0.0
    %1765 = vmatmul.mubr.f32.gmra.mxu0 %v1658
    %v1766 = vpop.f32.mrf.mxu0
    %v1767 = vadd.f32 0.0, %v1766
    %v1768 = vpop.f32.mrf.mxu0
    %1769 = vdwg.mxu0
    %1771 = vrot.lane.b32.xlu0 %v1732, 64
    %v1772 = vpop.permute.xlu0 %1771
    %1775 = vrot.lane.b32.xlu0 %v1742, 64
    %v1776 = vpop.permute.xlu0 %1775
    %1779 = vrot.lane.b32.xlu0 %v1752, 64
    %v1780 = vpop.permute.xlu0 %1779
    %1783 = vrot.lane.b32.xlu0 %v1762, 64
    %v1784 = vpop.permute.xlu0 %1783
    %v1786 = vsel %vm147, %v1727, %v1772
    %v1787 = vsel %vm147, %v1737, %v1776
    %v1788 = vsel %vm147, %v1747, %v1780
    %v1789 = vsel %vm147, %v1757, %v1784
    %1791 = vrot.lane.b32.xlu0 %v1727, 64
    %v1792 = vpop.permute.xlu0 %1791
    %1795 = vrot.lane.b32.xlu0 %v1737, 64
    %v1796 = vpop.permute.xlu0 %1795
    %1799 = vrot.lane.b32.xlu0 %v1747, 64
    %v1800 = vpop.permute.xlu0 %1799
    %1803 = vrot.lane.b32.xlu0 %v1757, 64
    %v1804 = vpop.permute.xlu0 %1803
    %1807 = vrot.lane.b32.xlu0 %v1767, 64
    %v1808 = vpop.permute.xlu0 %1807
    %v1809 = vsel %vm147, %v1792, %v1732
    %v1810 = vsel %vm147, %v1796, %v1742
    %v1811 = vsel %vm147, %v1800, %v1752
    %v1812 = vsel %vm147, %v1804, %v1762
    %v1813 = vld [vmem:[#allocation7] sm:$0xff]
    %v1814 = vld [vmem:[#allocation7 + $0x8] sm:$0xff]
    %v1815 = vld [vmem:[#allocation7 + $0x10] sm:$0xff]
    %v1816 = vld [vmem:[#allocation7 + $0x18] sm:$0xff]
    %v1817 = vld [vmem:[#allocation7 + $0x20] sm:$0xff]
    %v1818 = vld [vmem:[#allocation7 + $0x28] sm:$0xff]
    %v1819 = vld [vmem:[#allocation7 + $0x30] sm:$0xff]
    %v1820 = vld [vmem:[#allocation7 + $0x38] sm:$0xff]
    %v1821 = vld [vmem:[#allocation7 + $0x40] sm:$0xff]
    %v1822 = vld [vmem:[#allocation7 + $0x48] sm:$0xff]
    %v1823 = vld [vmem:[#allocation7 + $0x50] sm:$0xff]
    %v1824 = vld [vmem:[#allocation7 + $0x58] sm:$0xff]
    %v1825 = vld [vmem:[#allocation7 + $0x60] sm:$0xff]
    %v1826 = vld [vmem:[#allocation7 + $0x68] sm:$0xff]
    %v1827 = vld [vmem:[#allocation7 + $0x70] sm:$0xff]
    %v1828 = vld [vmem:[#allocation7 + $0x78] sm:$0xff]
    %v1829 = vld [vmem:[#allocation7 + $0x80] sm:$0xff]
    %v1830 = vld [vmem:[#allocation7 + $0x88] sm:$0xff]
    %v1831 = vld [vmem:[#allocation7 + $0x90] sm:$0xff]
    %v1832 = vld [vmem:[#allocation7 + $0x98] sm:$0xff]
    %v1833 = vld [vmem:[#allocation7 + $0xa0] sm:$0xff]
    %v1834 = vld [vmem:[#allocation7 + $0xa8] sm:$0xff]
    %v1835 = vld [vmem:[#allocation7 + $0xb0] sm:$0xff]
    %v1836 = vld [vmem:[#allocation7 + $0xb8] sm:$0xff]
    %v1837 = vld [vmem:[#allocation7 + $0xc0] sm:$0xff]
    %v1838 = vld [vmem:[#allocation7 + $0xc8] sm:$0xff]
    %v1839 = vld [vmem:[#allocation7 + $0xd0] sm:$0xff]
    %v1840 = vld [vmem:[#allocation7 + $0xd8] sm:$0xff]
    %v1841 = vld [vmem:[#allocation7 + $0xe0] sm:$0xff]
    %v1842 = vld [vmem:[#allocation7 + $0xe8] sm:$0xff]
    %v1843 = vld [vmem:[#allocation7 + $0xf0] sm:$0xff]
    %v1844 = vld [vmem:[#allocation7 + $0xf8] sm:$0xff]
    %v1845 = vld [vmem:[#allocation7 + $0x100] sm:$0xff]
    %v1846 = vld [vmem:[#allocation7 + $0x108] sm:$0xff]
    %v1847 = vld [vmem:[#allocation7 + $0x110] sm:$0xff]
    %v1848 = vld [vmem:[#allocation7 + $0x118] sm:$0xff]
    %v1849 = vld [vmem:[#allocation7 + $0x120] sm:$0xff]
    %v1850 = vld [vmem:[#allocation7 + $0x128] sm:$0xff]
    %v1851 = vld [vmem:[#allocation7 + $0x130] sm:$0xff]
    %v1852 = vld [vmem:[#allocation7 + $0x138] sm:$0xff]
    %v1853 = vld [vmem:[#allocation7 + $0x140] sm:$0xff]
    %v1854 = vld [vmem:[#allocation7 + $0x148] sm:$0xff]
    %v1855 = vld [vmem:[#allocation7 + $0x150] sm:$0xff]
    %v1856 = vld [vmem:[#allocation7 + $0x158] sm:$0xff]
    %v1857 = vld [vmem:[#allocation7 + $0x160] sm:$0xff]
    %v1858 = vld [vmem:[#allocation7 + $0x168] sm:$0xff]
    %v1859 = vld [vmem:[#allocation7 + $0x170] sm:$0xff]
    %v1860 = vld [vmem:[#allocation7 + $0x178] sm:$0xff]
    %v1861 = vld [vmem:[#allocation7 + $0x180] sm:$0xff]
    %v1862 = vld [vmem:[#allocation7 + $0x188] sm:$0xff]
    %v1863 = vld [vmem:[#allocation7 + $0x190] sm:$0xff]
    %v1864 = vld [vmem:[#allocation7 + $0x198] sm:$0xff]
    %v1865 = vld [vmem:[#allocation7 + $0x1a0] sm:$0xff]
    %v1866 = vld [vmem:[#allocation7 + $0x1a8] sm:$0xff]
    %v1867 = vld [vmem:[#allocation7 + $0x1b0] sm:$0xff]
    %v1868 = vld [vmem:[#allocation7 + $0x1b8] sm:$0xff]
    %v1869 = vld [vmem:[#allocation7 + $0x1c0] sm:$0xff]
    %v1870 = vld [vmem:[#allocation7 + $0x1c8] sm:$0xff]
    %v1871 = vld [vmem:[#allocation7 + $0x1d0] sm:$0xff]
    %v1872 = vld [vmem:[#allocation7 + $0x1d8] sm:$0xff]
    %v1873 = vld [vmem:[#allocation7 + $0x1e0] sm:$0xff]
    %v1874 = vld [vmem:[#allocation7 + $0x1e8] sm:$0xff]
    %v1875 = vld [vmem:[#allocation7 + $0x1f0] sm:$0xff]
    %v1876 = vld [vmem:[#allocation7 + $0x1f8] sm:$0xff]
    %v1877 = vld [vmem:[#allocation7 + $0x200] sm:$0xff]
    %v1878 = vld [vmem:[#allocation7 + $0x208] sm:$0xff]
    %v1879 = vld [vmem:[#allocation7 + $0x210] sm:$0xff]
    %v1880 = vld [vmem:[#allocation7 + $0x218] sm:$0xff]
    %v1881 = vld [vmem:[#allocation7 + $0x220] sm:$0xff]
    %v1882 = vld [vmem:[#allocation7 + $0x228] sm:$0xff]
    %v1883 = vld [vmem:[#allocation7 + $0x230] sm:$0xff]
    %v1884 = vld [vmem:[#allocation7 + $0x238] sm:$0xff]
    %v1885 = vld [vmem:[#allocation7 + $0x240] sm:$0xff]
    %v1886 = vld [vmem:[#allocation7 + $0x248] sm:$0xff]
    %v1887 = vld [vmem:[#allocation7 + $0x250] sm:$0xff]
    %v1888 = vld [vmem:[#allocation7 + $0x258] sm:$0xff]
    %v1889 = vld [vmem:[#allocation7 + $0x260] sm:$0xff]
    %v1890 = vld [vmem:[#allocation7 + $0x268] sm:$0xff]
    %v1891 = vld [vmem:[#allocation7 + $0x270] sm:$0xff]
    %v1892 = vld [vmem:[#allocation7 + $0x278] sm:$0xff]
    %v1893 = vld [vmem:[#allocation7 + $0x280] sm:$0xff]
    %v1894 = vld [vmem:[#allocation7 + $0x288] sm:$0xff]
    %v1895 = vld [vmem:[#allocation7 + $0x290] sm:$0xff]
    %v1896 = vld [vmem:[#allocation7 + $0x298] sm:$0xff]
    %v1897 = vld [vmem:[#allocation7 + $0x2a0] sm:$0xff]
    %v1898 = vld [vmem:[#allocation7 + $0x2a8] sm:$0xff]
    %v1899 = vld [vmem:[#allocation7 + $0x2b0] sm:$0xff]
    %v1900 = vld [vmem:[#allocation7 + $0x2b8] sm:$0xff]
    %v1901 = vld [vmem:[#allocation7 + $0x2c0] sm:$0xff]
    %v1902 = vld [vmem:[#allocation7 + $0x2c8] sm:$0xff]
    %v1903 = vld [vmem:[#allocation7 + $0x2d0] sm:$0xff]
    %v1904 = vld [vmem:[#allocation7 + $0x2d8] sm:$0xff]
    %v1905 = vld [vmem:[#allocation7 + $0x2e0] sm:$0xff]
    %v1906 = vld [vmem:[#allocation7 + $0x2e8] sm:$0xff]
    %v1907 = vld [vmem:[#allocation7 + $0x2f0] sm:$0xff]
    %v1908 = vld [vmem:[#allocation7 + $0x2f8] sm:$0xff]
    %v1909 = vld [vmem:[#allocation7 + $0x300] sm:$0xff]
    %v1910 = vld [vmem:[#allocation7 + $0x308] sm:$0xff]
    %v1911 = vld [vmem:[#allocation7 + $0x310] sm:$0xff]
    %v1912 = vld [vmem:[#allocation7 + $0x318] sm:$0xff]
    %v1913 = vld [vmem:[#allocation7 + $0x320] sm:$0xff]
    %v1914 = vld [vmem:[#allocation7 + $0x328] sm:$0xff]
    %v1915 = vld [vmem:[#allocation7 + $0x330] sm:$0xff]
    %v1916 = vld [vmem:[#allocation7 + $0x338] sm:$0xff]
    %v1917 = vld [vmem:[#allocation7 + $0x340] sm:$0xff]
    %v1918 = vld [vmem:[#allocation7 + $0x348] sm:$0xff]
    %v1919 = vld [vmem:[#allocation7 + $0x350] sm:$0xff]
    %v1920 = vld [vmem:[#allocation7 + $0x358] sm:$0xff]
    %v1921 = vld [vmem:[#allocation7 + $0x360] sm:$0xff]
    %v1922 = vld [vmem:[#allocation7 + $0x368] sm:$0xff]
    %v1923 = vld [vmem:[#allocation7 + $0x370] sm:$0xff]
    %v1924 = vld [vmem:[#allocation7 + $0x378] sm:$0xff]
    %v1925 = vld [vmem:[#allocation7 + $0x380] sm:$0xff]
    %v1926 = vld [vmem:[#allocation7 + $0x388] sm:$0xff]
    %v1927 = vld [vmem:[#allocation7 + $0x390] sm:$0xff]
    %v1928 = vld [vmem:[#allocation7 + $0x398] sm:$0xff]
    %v1929 = vld [vmem:[#allocation7 + $0x3a0] sm:$0xff]
    %v1930 = vld [vmem:[#allocation7 + $0x3a8] sm:$0xff]
    %v1931 = vld [vmem:[#allocation7 + $0x3b0] sm:$0xff]
    %v1932 = vld [vmem:[#allocation7 + $0x3b8] sm:$0xff]
    %v1933 = vld [vmem:[#allocation7 + $0x3c0] sm:$0xff]
    %v1934 = vld [vmem:[#allocation7 + $0x3c8] sm:$0xff]
    %v1935 = vld [vmem:[#allocation7 + $0x3d0] sm:$0xff]
    %v1936 = vld [vmem:[#allocation7 + $0x3d8] sm:$0xff]
    %v1937 = vld [vmem:[#allocation7 + $0x3e0] sm:$0xff]
    %v1938 = vld [vmem:[#allocation7 + $0x3e8] sm:$0xff]
    %v1939 = vld [vmem:[#allocation7 + $0x3f0] sm:$0xff]
    %v1940 = vld [vmem:[#allocation7 + $0x3f8] sm:$0xff]
    %v1941 = vld [vmem:[#allocation7 + $0x400] sm:$0xff]
    %v1942 = vld [vmem:[#allocation7 + $0x408] sm:$0xff]
    %v1943 = vld [vmem:[#allocation7 + $0x410] sm:$0xff]
    %v1944 = vld [vmem:[#allocation7 + $0x418] sm:$0xff]
    %v1945 = vld [vmem:[#allocation7 + $0x420] sm:$0xff]
    %v1946 = vld [vmem:[#allocation7 + $0x428] sm:$0xff]
    %v1947 = vld [vmem:[#allocation7 + $0x430] sm:$0xff]
    %v1948 = vld [vmem:[#allocation7 + $0x438] sm:$0xff]
    %v1949 = vld [vmem:[#allocation7 + $0x440] sm:$0xff]
    %v1950 = vld [vmem:[#allocation7 + $0x448] sm:$0xff]
    %v1951 = vld [vmem:[#allocation7 + $0x450] sm:$0xff]
    %v1952 = vld [vmem:[#allocation7 + $0x458] sm:$0xff]
    %v1953 = vld [vmem:[#allocation7 + $0x460] sm:$0xff]
    %v1954 = vld [vmem:[#allocation7 + $0x468] sm:$0xff]
    %v1955 = vld [vmem:[#allocation7 + $0x470] sm:$0xff]
    %v1956 = vld [vmem:[#allocation7 + $0x478] sm:$0xff]
    %v1957 = vld [vmem:[#allocation7 + $0x480] sm:$0xff]
    %v1958 = vld [vmem:[#allocation7 + $0x488] sm:$0xff]
    %v1959 = vld [vmem:[#allocation7 + $0x490] sm:$0xff]
    %v1960 = vld [vmem:[#allocation7 + $0x498] sm:$0xff]
    %v1961 = vld [vmem:[#allocation7 + $0x4a0] sm:$0xff]
    %v1962 = vld [vmem:[#allocation7 + $0x4a8] sm:$0xff]
    %v1963 = vld [vmem:[#allocation7 + $0x4b0] sm:$0xff]
    %v1964 = vld [vmem:[#allocation7 + $0x4b8] sm:$0xff]
    %v1965 = vld [vmem:[#allocation7 + $0x4c0] sm:$0xff]
    %v1966 = vld [vmem:[#allocation7 + $0x4c8] sm:$0xff]
    %v1967 = vld [vmem:[#allocation7 + $0x4d0] sm:$0xff]
    %v1968 = vld [vmem:[#allocation7 + $0x4d8] sm:$0xff]
    %v1969 = vld [vmem:[#allocation7 + $0x4e0] sm:$0xff]
    %v1970 = vld [vmem:[#allocation7 + $0x4e8] sm:$0xff]
    %v1971 = vld [vmem:[#allocation7 + $0x4f0] sm:$0xff]
    %v1972 = vld [vmem:[#allocation7 + $0x4f8] sm:$0xff]
    %v1973 = vld [vmem:[#allocation7 + $0x500] sm:$0xff]
    %v1974 = vld [vmem:[#allocation7 + $0x508] sm:$0xff]
    %v1975 = vld [vmem:[#allocation7 + $0x510] sm:$0xff]
    %v1976 = vld [vmem:[#allocation7 + $0x518] sm:$0xff]
    %v1977 = vld [vmem:[#allocation7 + $0x520] sm:$0xff]
    %v1978 = vld [vmem:[#allocation7 + $0x528] sm:$0xff]
    %v1979 = vld [vmem:[#allocation7 + $0x530] sm:$0xff]
    %v1980 = vld [vmem:[#allocation7 + $0x538] sm:$0xff]
    %v1981 = vld [vmem:[#allocation7 + $0x540] sm:$0xff]
    %v1982 = vld [vmem:[#allocation7 + $0x548] sm:$0xff]
    %v1983 = vld [vmem:[#allocation7 + $0x550] sm:$0xff]
    %v1984 = vld [vmem:[#allocation7 + $0x558] sm:$0xff]
    %v1985 = vld [vmem:[#allocation7 + $0x560] sm:$0xff]
    %v1986 = vld [vmem:[#allocation7 + $0x568] sm:$0xff]
    %v1987 = vld [vmem:[#allocation7 + $0x570] sm:$0xff]
    %v1988 = vld [vmem:[#allocation7 + $0x578] sm:$0xff]
    %v1989 = vld [vmem:[#allocation7 + $0x580] sm:$0xff]
    %v1990 = vld [vmem:[#allocation7 + $0x588] sm:$0xff]
    %v1991 = vld [vmem:[#allocation7 + $0x590] sm:$0xff]
    %v1992 = vld [vmem:[#allocation7 + $0x598] sm:$0xff]
    %v1993 = vld [vmem:[#allocation7 + $0x5a0] sm:$0xff]
    %v1994 = vld [vmem:[#allocation7 + $0x5a8] sm:$0xff]
    %v1995 = vld [vmem:[#allocation7 + $0x5b0] sm:$0xff]
    %v1996 = vld [vmem:[#allocation7 + $0x5b8] sm:$0xff]
    %v1997 = vld [vmem:[#allocation7 + $0x5c0] sm:$0xff]
    %v1998 = vld [vmem:[#allocation7 + $0x5c8] sm:$0xff]
    %v1999 = vld [vmem:[#allocation7 + $0x5d0] sm:$0xff]
    %v2000 = vld [vmem:[#allocation7 + $0x5d8] sm:$0xff]
    %v2001 = vld [vmem:[#allocation7 + $0x5e0] sm:$0xff]
    %v2002 = vld [vmem:[#allocation7 + $0x5e8] sm:$0xff]
    %v2003 = vld [vmem:[#allocation7 + $0x5f0] sm:$0xff]
    %v2004 = vld [vmem:[#allocation7 + $0x5f8] sm:$0xff]
    %v2005 = vld [vmem:[#allocation7 + $0x600] sm:$0xff]
    %v2006 = vld [vmem:[#allocation7 + $0x608] sm:$0xff]
    %v2007 = vld [vmem:[#allocation7 + $0x610] sm:$0xff]
    %v2008 = vld [vmem:[#allocation7 + $0x618] sm:$0xff]
    %v2009 = vld [vmem:[#allocation7 + $0x620] sm:$0xff]
    %v2010 = vld [vmem:[#allocation7 + $0x628] sm:$0xff]
    %v2011 = vld [vmem:[#allocation7 + $0x630] sm:$0xff]
    %v2012 = vld [vmem:[#allocation7 + $0x638] sm:$0xff]
    %v2013 = vld [vmem:[#allocation7 + $0x640] sm:$0xff]
    %v2014 = vld [vmem:[#allocation7 + $0x648] sm:$0xff]
    %v2015 = vld [vmem:[#allocation7 + $0x650] sm:$0xff]
    %v2016 = vld [vmem:[#allocation7 + $0x658] sm:$0xff]
    %v2017 = vld [vmem:[#allocation7 + $0x660] sm:$0xff]
    %v2018 = vld [vmem:[#allocation7 + $0x668] sm:$0xff]
    %v2019 = vld [vmem:[#allocation7 + $0x670] sm:$0xff]
    %v2020 = vld [vmem:[#allocation7 + $0x678] sm:$0xff]
    %v2021 = vld [vmem:[#allocation7 + $0x680] sm:$0xff]
    %v2022 = vld [vmem:[#allocation7 + $0x688] sm:$0xff]
    %v2023 = vld [vmem:[#allocation7 + $0x690] sm:$0xff]
    %v2024 = vld [vmem:[#allocation7 + $0x698] sm:$0xff]
    %v2025 = vld [vmem:[#allocation7 + $0x6a0] sm:$0xff]
    %v2026 = vld [vmem:[#allocation7 + $0x6a8] sm:$0xff]
    %v2027 = vld [vmem:[#allocation7 + $0x6b0] sm:$0xff]
    %v2028 = vld [vmem:[#allocation7 + $0x6b8] sm:$0xff]
    %v2029 = vld [vmem:[#allocation7 + $0x6c0] sm:$0xff]
    %v2030 = vld [vmem:[#allocation7 + $0x6c8] sm:$0xff]
    %v2031 = vld [vmem:[#allocation7 + $0x6d0] sm:$0xff]
    %v2032 = vld [vmem:[#allocation7 + $0x6d8] sm:$0xff]
    %v2033 = vld [vmem:[#allocation7 + $0x6e0] sm:$0xff]
    %v2034 = vld [vmem:[#allocation7 + $0x6e8] sm:$0xff]
    %v2035 = vld [vmem:[#allocation7 + $0x6f0] sm:$0xff]
    %v2036 = vld [vmem:[#allocation7 + $0x6f8] sm:$0xff]
    %v2037 = vld [vmem:[#allocation7 + $0x700] sm:$0xff]
    %v2038 = vld [vmem:[#allocation7 + $0x708] sm:$0xff]
    %v2039 = vld [vmem:[#allocation7 + $0x710] sm:$0xff]
    %v2040 = vld [vmem:[#allocation7 + $0x718] sm:$0xff]
    %v2041 = vld [vmem:[#allocation7 + $0x720] sm:$0xff]
    %v2042 = vld [vmem:[#allocation7 + $0x728] sm:$0xff]
    %v2043 = vld [vmem:[#allocation7 + $0x730] sm:$0xff]
    %v2044 = vld [vmem:[#allocation7 + $0x738] sm:$0xff]
    %v2045 = vld [vmem:[#allocation7 + $0x740] sm:$0xff]
    %v2046 = vld [vmem:[#allocation7 + $0x748] sm:$0xff]
    %v2047 = vld [vmem:[#allocation7 + $0x750] sm:$0xff]
    %v2048 = vld [vmem:[#allocation7 + $0x758] sm:$0xff]
    %v2049 = vld [vmem:[#allocation7 + $0x760] sm:$0xff]
    %v2050 = vld [vmem:[#allocation7 + $0x768] sm:$0xff]
    %v2051 = vld [vmem:[#allocation7 + $0x770] sm:$0xff]
    %v2052 = vld [vmem:[#allocation7 + $0x778] sm:$0xff]
    %v2053 = vld [vmem:[#allocation7 + $0x780] sm:$0xff]
    %v2054 = vld [vmem:[#allocation7 + $0x788] sm:$0xff]
    %v2055 = vld [vmem:[#allocation7 + $0x790] sm:$0xff]
    %v2056 = vld [vmem:[#allocation7 + $0x798] sm:$0xff]
    %v2057 = vld [vmem:[#allocation7 + $0x7a0] sm:$0xff]
    %v2058 = vld [vmem:[#allocation7 + $0x7a8] sm:$0xff]
    %v2059 = vld [vmem:[#allocation7 + $0x7b0] sm:$0xff]
    %v2060 = vld [vmem:[#allocation7 + $0x7b8] sm:$0xff]
    %v2061 = vld [vmem:[#allocation7 + $0x7c0] sm:$0xff]
    %v2062 = vld [vmem:[#allocation7 + $0x7c8] sm:$0xff]
    %v2063 = vld [vmem:[#allocation7 + $0x7d0] sm:$0xff]
    %v2064 = vld [vmem:[#allocation7 + $0x7d8] sm:$0xff]
    %v2065 = vld [vmem:[#allocation7 + $0x7e0] sm:$0xff]
    %v2066 = vld [vmem:[#allocation7 + $0x7e8] sm:$0xff]
    %v2067 = vld [vmem:[#allocation7 + $0x7f0] sm:$0xff]
    %v2068 = vld [vmem:[#allocation7 + $0x7f8] sm:$0xff]
    %v2069 = vld [vmem:[#allocation7 + $0x800] sm:$0xff]
    %v2070 = vld [vmem:[#allocation7 + $0x808] sm:$0xff]
    %v2071 = vld [vmem:[#allocation7 + $0x810] sm:$0xff]
    %v2072 = vld [vmem:[#allocation7 + $0x818] sm:$0xff]
    %v2073 = vld [vmem:[#allocation7 + $0x820] sm:$0xff]
    %v2074 = vld [vmem:[#allocation7 + $0x828] sm:$0xff]
    %v2075 = vld [vmem:[#allocation7 + $0x830] sm:$0xff]
    %v2076 = vld [vmem:[#allocation7 + $0x838] sm:$0xff]
    %v2077 = vld [vmem:[#allocation7 + $0x840] sm:$0xff]
    %v2078 = vld [vmem:[#allocation7 + $0x848] sm:$0xff]
    %v2079 = vld [vmem:[#allocation7 + $0x850] sm:$0xff]
    %v2080 = vld [vmem:[#allocation7 + $0x858] sm:$0xff]
    %v2081 = vld [vmem:[#allocation7 + $0x860] sm:$0xff]
    %v2082 = vld [vmem:[#allocation7 + $0x868] sm:$0xff]
    %v2083 = vld [vmem:[#allocation7 + $0x870] sm:$0xff]
    %v2084 = vld [vmem:[#allocation7 + $0x878] sm:$0xff]
    %v2085 = vld [vmem:[#allocation7 + $0x880] sm:$0xff]
    %v2086 = vld [vmem:[#allocation7 + $0x888] sm:$0xff]
    %v2087 = vld [vmem:[#allocation7 + $0x890] sm:$0xff]
    %v2088 = vld [vmem:[#allocation7 + $0x898] sm:$0xff]
    %v2089 = vld [vmem:[#allocation7 + $0x8a0] sm:$0xff]
    %v2090 = vld [vmem:[#allocation7 + $0x8a8] sm:$0xff]
    %v2091 = vld [vmem:[#allocation7 + $0x8b0] sm:$0xff]
    %v2092 = vld [vmem:[#allocation7 + $0x8b8] sm:$0xff]
    %v2093 = vld [vmem:[#allocation7 + $0x8c0] sm:$0xff]
    %v2094 = vld [vmem:[#allocation7 + $0x8c8] sm:$0xff]
    %v2095 = vld [vmem:[#allocation7 + $0x8d0] sm:$0xff]
    %v2096 = vld [vmem:[#allocation7 + $0x8d8] sm:$0xff]
    %v2097 = vld [vmem:[#allocation7 + $0x8e0] sm:$0xff]
    %v2098 = vld [vmem:[#allocation7 + $0x8e8] sm:$0xff]
    %v2099 = vld [vmem:[#allocation7 + $0x8f0] sm:$0xff]
    %v2100 = vld [vmem:[#allocation7 + $0x8f8] sm:$0xff]
    %v2101 = vld [vmem:[#allocation7 + $0x900] sm:$0xff]
    %v2102 = vld [vmem:[#allocation7 + $0x908] sm:$0xff]
    %v2103 = vld [vmem:[#allocation7 + $0x910] sm:$0xff]
    %v2104 = vld [vmem:[#allocation7 + $0x918] sm:$0xff]
    %v2105 = vld [vmem:[#allocation7 + $0x920] sm:$0xff]
    %v2106 = vld [vmem:[#allocation7 + $0x928] sm:$0xff]
    %v2107 = vld [vmem:[#allocation7 + $0x930] sm:$0xff]
    %v2108 = vld [vmem:[#allocation7 + $0x938] sm:$0xff]
    %v2109 = vld [vmem:[#allocation7 + $0x940] sm:$0xff]
    %v2110 = vld [vmem:[#allocation7 + $0x948] sm:$0xff]
    %v2111 = vld [vmem:[#allocation7 + $0x950] sm:$0xff]
    %v2112 = vld [vmem:[#allocation7 + $0x958] sm:$0xff]
    %v2113 = vld [vmem:[#allocation7 + $0x960] sm:$0xff]
    %v2114 = vld [vmem:[#allocation7 + $0x968] sm:$0xff]
    %v2115 = vld [vmem:[#allocation7 + $0x970] sm:$0xff]
    %v2116 = vld [vmem:[#allocation7 + $0x978] sm:$0xff]
    %v2117 = vld [vmem:[#allocation7 + $0x980] sm:$0xff]
    %v2118 = vld [vmem:[#allocation7 + $0x988] sm:$0xff]
    %v2119 = vld [vmem:[#allocation7 + $0x990] sm:$0xff]
    %v2120 = vld [vmem:[#allocation7 + $0x998] sm:$0xff]
    %v2121 = vld [vmem:[#allocation7 + $0x9a0] sm:$0xff]
    %v2122 = vld [vmem:[#allocation7 + $0x9a8] sm:$0xff]
    %v2123 = vld [vmem:[#allocation7 + $0x9b0] sm:$0xff]
    %v2124 = vld [vmem:[#allocation7 + $0x9b8] sm:$0xff]
    %v2125 = vld [vmem:[#allocation7 + $0x9c0] sm:$0xff]
    %v2126 = vld [vmem:[#allocation7 + $0x9c8] sm:$0xff]
    %v2127 = vld [vmem:[#allocation7 + $0x9d0] sm:$0xff]
    %v2128 = vld [vmem:[#allocation7 + $0x9d8] sm:$0xff]
    %v2129 = vld [vmem:[#allocation7 + $0x9e0] sm:$0xff]
    %v2130 = vld [vmem:[#allocation7 + $0x9e8] sm:$0xff]
    %v2131 = vld [vmem:[#allocation7 + $0x9f0] sm:$0xff]
    %v2132 = vld [vmem:[#allocation7 + $0x9f8] sm:$0xff]
    %v2133 = vld [vmem:[#allocation7 + $0xa00] sm:$0xff]
    %v2134 = vld [vmem:[#allocation7 + $0xa08] sm:$0xff]
    %v2135 = vld [vmem:[#allocation7 + $0xa10] sm:$0xff]
    %v2136 = vld [vmem:[#allocation7 + $0xa18] sm:$0xff]
    %v2137 = vld [vmem:[#allocation7 + $0xa20] sm:$0xff]
    %v2138 = vld [vmem:[#allocation7 + $0xa28] sm:$0xff]
    %v2139 = vld [vmem:[#allocation7 + $0xa30] sm:$0xff]
    %v2140 = vld [vmem:[#allocation7 + $0xa38] sm:$0xff]
    %v2141 = vld [vmem:[#allocation7 + $0xa40] sm:$0xff]
    %v2142 = vld [vmem:[#allocation7 + $0xa48] sm:$0xff]
    %v2143 = vld [vmem:[#allocation7 + $0xa50] sm:$0xff]
    %v2144 = vld [vmem:[#allocation7 + $0xa58] sm:$0xff]
    %v2145 = vld [vmem:[#allocation7 + $0xa60] sm:$0xff]
    %v2146 = vld [vmem:[#allocation7 + $0xa68] sm:$0xff]
    %v2147 = vld [vmem:[#allocation7 + $0xa70] sm:$0xff]
    %v2148 = vld [vmem:[#allocation7 + $0xa78] sm:$0xff]
    %v2149 = vld [vmem:[#allocation7 + $0xa80] sm:$0xff]
    %v2150 = vld [vmem:[#allocation7 + $0xa88] sm:$0xff]
    %v2151 = vld [vmem:[#allocation7 + $0xa90] sm:$0xff]
    %v2152 = vld [vmem:[#allocation7 + $0xa98] sm:$0xff]
    %v2153 = vld [vmem:[#allocation7 + $0xaa0] sm:$0xff]
    %v2154 = vld [vmem:[#allocation7 + $0xaa8] sm:$0xff]
    %v2155 = vld [vmem:[#allocation7 + $0xab0] sm:$0xff]
    %v2156 = vld [vmem:[#allocation7 + $0xab8] sm:$0xff]
    %v2157 = vld [vmem:[#allocation7 + $0xac0] sm:$0xff]
    %v2158 = vld [vmem:[#allocation7 + $0xac8] sm:$0xff]
    %v2159 = vld [vmem:[#allocation7 + $0xad0] sm:$0xff]
    %v2160 = vld [vmem:[#allocation7 + $0xad8] sm:$0xff]
    %v2161 = vld [vmem:[#allocation7 + $0xae0] sm:$0xff]
    %v2162 = vld [vmem:[#allocation7 + $0xae8] sm:$0xff]
    %v2163 = vld [vmem:[#allocation7 + $0xaf0] sm:$0xff]
    %v2164 = vld [vmem:[#allocation7 + $0xaf8] sm:$0xff]
    %v2165 = vld [vmem:[#allocation7 + $0xb00] sm:$0xff]
    %v2166 = vld [vmem:[#allocation7 + $0xb08] sm:$0xff]
    %v2167 = vld [vmem:[#allocation7 + $0xb10] sm:$0xff]
    %v2168 = vld [vmem:[#allocation7 + $0xb18] sm:$0xff]
    %v2169 = vld [vmem:[#allocation7 + $0xb20] sm:$0xff]
    %v2170 = vld [vmem:[#allocation7 + $0xb28] sm:$0xff]
    %v2171 = vld [vmem:[#allocation7 + $0xb30] sm:$0xff]
    %v2172 = vld [vmem:[#allocation7 + $0xb38] sm:$0xff]
    %v2173 = vld [vmem:[#allocation7 + $0xb40] sm:$0xff]
    %v2174 = vld [vmem:[#allocation7 + $0xb48] sm:$0xff]
    %v2175 = vld [vmem:[#allocation7 + $0xb50] sm:$0xff]
    %v2176 = vld [vmem:[#allocation7 + $0xb58] sm:$0xff]
    %v2177 = vld [vmem:[#allocation7 + $0xb60] sm:$0xff]
    %v2178 = vld [vmem:[#allocation7 + $0xb68] sm:$0xff]
    %v2179 = vld [vmem:[#allocation7 + $0xb70] sm:$0xff]
    %v2180 = vld [vmem:[#allocation7 + $0xb78] sm:$0xff]
    %v2181 = vld [vmem:[#allocation7 + $0xb80] sm:$0xff]
    %v2182 = vld [vmem:[#allocation7 + $0xb88] sm:$0xff]
    %v2183 = vld [vmem:[#allocation7 + $0xb90] sm:$0xff]
    %v2184 = vld [vmem:[#allocation7 + $0xb98] sm:$0xff]
    %v2185 = vld [vmem:[#allocation7 + $0xba0] sm:$0xff]
    %v2186 = vld [vmem:[#allocation7 + $0xba8] sm:$0xff]
    %v2187 = vld [vmem:[#allocation7 + $0xbb0] sm:$0xff]
    %v2188 = vld [vmem:[#allocation7 + $0xbb8] sm:$0xff]
    %v2189 = vld [vmem:[#allocation7 + $0xbc0] sm:$0xff]
    %v2190 = vld [vmem:[#allocation7 + $0xbc8] sm:$0xff]
    %v2191 = vld [vmem:[#allocation7 + $0xbd0] sm:$0xff]
    %v2192 = vld [vmem:[#allocation7 + $0xbd8] sm:$0xff]
    %v2193 = vld [vmem:[#allocation7 + $0xbe0] sm:$0xff]
    %v2194 = vld [vmem:[#allocation7 + $0xbe8] sm:$0xff]
    %v2195 = vld [vmem:[#allocation7 + $0xbf0] sm:$0xff]
    %v2196 = vld [vmem:[#allocation7 + $0xbf8] sm:$0xff]
    %v2197 = vld [vmem:[#allocation7 + $0xc00] sm:$0xff]
    %v2198 = vld [vmem:[#allocation7 + $0xc08] sm:$0xff]
    %v2199 = vld [vmem:[#allocation7 + $0xc10] sm:$0xff]
    %v2200 = vld [vmem:[#allocation7 + $0xc18] sm:$0xff]
    %v2201 = vld [vmem:[#allocation7 + $0xc20] sm:$0xff]
    %v2202 = vld [vmem:[#allocation7 + $0xc28] sm:$0xff]
    %v2203 = vld [vmem:[#allocation7 + $0xc30] sm:$0xff]
    %v2204 = vld [vmem:[#allocation7 + $0xc38] sm:$0xff]
    %v2205 = vld [vmem:[#allocation7 + $0xc40] sm:$0xff]
    %v2206 = vld [vmem:[#allocation7 + $0xc48] sm:$0xff]
    %v2207 = vld [vmem:[#allocation7 + $0xc50] sm:$0xff]
    %v2208 = vld [vmem:[#allocation7 + $0xc58] sm:$0xff]
    %v2209 = vld [vmem:[#allocation7 + $0xc60] sm:$0xff]
    %v2210 = vld [vmem:[#allocation7 + $0xc68] sm:$0xff]
    %v2211 = vld [vmem:[#allocation7 + $0xc70] sm:$0xff]
    %v2212 = vld [vmem:[#allocation7 + $0xc78] sm:$0xff]
    %v2213 = vld [vmem:[#allocation7 + $0xc80] sm:$0xff]
    %v2214 = vld [vmem:[#allocation7 + $0xc88] sm:$0xff]
    %v2215 = vld [vmem:[#allocation7 + $0xc90] sm:$0xff]
    %v2216 = vld [vmem:[#allocation7 + $0xc98] sm:$0xff]
    %v2217 = vld [vmem:[#allocation7 + $0xca0] sm:$0xff]
    %v2218 = vld [vmem:[#allocation7 + $0xca8] sm:$0xff]
    %v2219 = vld [vmem:[#allocation7 + $0xcb0] sm:$0xff]
    %v2220 = vld [vmem:[#allocation7 + $0xcb8] sm:$0xff]
    %v2221 = vld [vmem:[#allocation7 + $0xcc0] sm:$0xff]
    %v2222 = vld [vmem:[#allocation7 + $0xcc8] sm:$0xff]
    %v2223 = vld [vmem:[#allocation7 + $0xcd0] sm:$0xff]
    %v2224 = vld [vmem:[#allocation7 + $0xcd8] sm:$0xff]
    %v2225 = vld [vmem:[#allocation7 + $0xce0] sm:$0xff]
    %v2226 = vld [vmem:[#allocation7 + $0xce8] sm:$0xff]
    %v2227 = vld [vmem:[#allocation7 + $0xcf0] sm:$0xff]
    %v2228 = vld [vmem:[#allocation7 + $0xcf8] sm:$0xff]
    %v2229 = vld [vmem:[#allocation7 + $0xd00] sm:$0xff]
    %v2230 = vld [vmem:[#allocation7 + $0xd08] sm:$0xff]
    %v2231 = vld [vmem:[#allocation7 + $0xd10] sm:$0xff]
    %v2232 = vld [vmem:[#allocation7 + $0xd18] sm:$0xff]
    %v2233 = vld [vmem:[#allocation7 + $0xd20] sm:$0xff]
    %v2234 = vld [vmem:[#allocation7 + $0xd28] sm:$0xff]
    %v2235 = vld [vmem:[#allocation7 + $0xd30] sm:$0xff]
    %v2236 = vld [vmem:[#allocation7 + $0xd38] sm:$0xff]
    %v2237 = vld [vmem:[#allocation7 + $0xd40] sm:$0xff]
    %v2238 = vld [vmem:[#allocation7 + $0xd48] sm:$0xff]
    %v2239 = vld [vmem:[#allocation7 + $0xd50] sm:$0xff]
    %v2240 = vld [vmem:[#allocation7 + $0xd58] sm:$0xff]
    %v2241 = vld [vmem:[#allocation7 + $0xd60] sm:$0xff]
    %v2242 = vld [vmem:[#allocation7 + $0xd68] sm:$0xff]
    %v2243 = vld [vmem:[#allocation7 + $0xd70] sm:$0xff]
    %v2244 = vld [vmem:[#allocation7 + $0xd78] sm:$0xff]
    %v2245 = vld [vmem:[#allocation7 + $0xd80] sm:$0xff]
    %v2246 = vld [vmem:[#allocation7 + $0xd88] sm:$0xff]
    %v2247 = vld [vmem:[#allocation7 + $0xd90] sm:$0xff]
    %v2248 = vld [vmem:[#allocation7 + $0xd98] sm:$0xff]
    %v2249 = vld [vmem:[#allocation7 + $0xda0] sm:$0xff]
    %v2250 = vld [vmem:[#allocation7 + $0xda8] sm:$0xff]
    %v2251 = vld [vmem:[#allocation7 + $0xdb0] sm:$0xff]
    %v2252 = vld [vmem:[#allocation7 + $0xdb8] sm:$0xff]
    %v2253 = vld [vmem:[#allocation7 + $0xdc0] sm:$0xff]
    %v2254 = vld [vmem:[#allocation7 + $0xdc8] sm:$0xff]
    %v2255 = vld [vmem:[#allocation7 + $0xdd0] sm:$0xff]
    %v2256 = vld [vmem:[#allocation7 + $0xdd8] sm:$0xff]
    %v2257 = vld [vmem:[#allocation7 + $0xde0] sm:$0xff]
    %v2258 = vld [vmem:[#allocation7 + $0xde8] sm:$0xff]
    %v2259 = vld [vmem:[#allocation7 + $0xdf0] sm:$0xff]
    %v2260 = vld [vmem:[#allocation7 + $0xdf8] sm:$0xff]
    %v2261 = vld [vmem:[#allocation7 + $0xe00] sm:$0xff]
    %v2262 = vld [vmem:[#allocation7 + $0xe08] sm:$0xff]
    %v2263 = vld [vmem:[#allocation7 + $0xe10] sm:$0xff]
    %v2264 = vld [vmem:[#allocation7 + $0xe18] sm:$0xff]
    %v2265 = vld [vmem:[#allocation7 + $0xe20] sm:$0xff]
    %v2266 = vld [vmem:[#allocation7 + $0xe28] sm:$0xff]
    %v2267 = vld [vmem:[#allocation7 + $0xe30] sm:$0xff]
    %v2268 = vld [vmem:[#allocation7 + $0xe38] sm:$0xff]
    %v2269 = vld [vmem:[#allocation7 + $0xe40] sm:$0xff]
    %v2270 = vld [vmem:[#allocation7 + $0xe48] sm:$0xff]
    %v2271 = vld [vmem:[#allocation7 + $0xe50] sm:$0xff]
    %v2272 = vld [vmem:[#allocation7 + $0xe58] sm:$0xff]
    %v2273 = vld [vmem:[#allocation7 + $0xe60] sm:$0xff]
    %v2274 = vld [vmem:[#allocation7 + $0xe68] sm:$0xff]
    %v2275 = vld [vmem:[#allocation7 + $0xe70] sm:$0xff]
    %v2276 = vld [vmem:[#allocation7 + $0xe78] sm:$0xff]
    %v2277 = vld [vmem:[#allocation7 + $0xe80] sm:$0xff]
    %v2278 = vld [vmem:[#allocation7 + $0xe88] sm:$0xff]
    %v2279 = vld [vmem:[#allocation7 + $0xe90] sm:$0xff]
    %v2280 = vld [vmem:[#allocation7 + $0xe98] sm:$0xff]
    %v2281 = vld [vmem:[#allocation7 + $0xea0] sm:$0xff]
    %v2282 = vld [vmem:[#allocation7 + $0xea8] sm:$0xff]
    %v2283 = vld [vmem:[#allocation7 + $0xeb0] sm:$0xff]
    %v2284 = vld [vmem:[#allocation7 + $0xeb8] sm:$0xff]
    %v2285 = vld [vmem:[#allocation7 + $0xec0] sm:$0xff]
    %v2286 = vld [vmem:[#allocation7 + $0xec8] sm:$0xff]
    %v2287 = vld [vmem:[#allocation7 + $0xed0] sm:$0xff]
    %v2288 = vld [vmem:[#allocation7 + $0xed8] sm:$0xff]
    %v2289 = vld [vmem:[#allocation7 + $0xee0] sm:$0xff]
    %v2290 = vld [vmem:[#allocation7 + $0xee8] sm:$0xff]
    %v2291 = vld [vmem:[#allocation7 + $0xef0] sm:$0xff]
    %v2292 = vld [vmem:[#allocation7 + $0xef8] sm:$0xff]
    %v2293 = vld [vmem:[#allocation7 + $0xf00] sm:$0xff]
    %v2294 = vld [vmem:[#allocation7 + $0xf08] sm:$0xff]
    %v2295 = vld [vmem:[#allocation7 + $0xf10] sm:$0xff]
    %v2296 = vld [vmem:[#allocation7 + $0xf18] sm:$0xff]
    %v2297 = vld [vmem:[#allocation7 + $0xf20] sm:$0xff]
    %v2298 = vld [vmem:[#allocation7 + $0xf28] sm:$0xff]
    %v2299 = vld [vmem:[#allocation7 + $0xf30] sm:$0xff]
    %v2300 = vld [vmem:[#allocation7 + $0xf38] sm:$0xff]
    %v2301 = vld [vmem:[#allocation7 + $0xf40] sm:$0xff]
    %v2302 = vld [vmem:[#allocation7 + $0xf48] sm:$0xff]
    %v2303 = vld [vmem:[#allocation7 + $0xf50] sm:$0xff]
    %v2304 = vld [vmem:[#allocation7 + $0xf58] sm:$0xff]
    %v2305 = vld [vmem:[#allocation7 + $0xf60] sm:$0xff]
    %v2306 = vld [vmem:[#allocation7 + $0xf68] sm:$0xff]
    %v2307 = vld [vmem:[#allocation7 + $0xf70] sm:$0xff]
    %v2308 = vld [vmem:[#allocation7 + $0xf78] sm:$0xff]
    %v2309 = vld [vmem:[#allocation7 + $0xf80] sm:$0xff]
    %v2310 = vld [vmem:[#allocation7 + $0xf88] sm:$0xff]
    %v2311 = vld [vmem:[#allocation7 + $0xf90] sm:$0xff]
    %v2312 = vld [vmem:[#allocation7 + $0xf98] sm:$0xff]
    %v2313 = vld [vmem:[#allocation7 + $0xfa0] sm:$0xff]
    %v2314 = vld [vmem:[#allocation7 + $0xfa8] sm:$0xff]
    %v2315 = vld [vmem:[#allocation7 + $0xfb0] sm:$0xff]
    %v2316 = vld [vmem:[#allocation7 + $0xfb8] sm:$0xff]
    %v2317 = vld [vmem:[#allocation7 + $0xfc0] sm:$0xff]
    %v2318 = vld [vmem:[#allocation7 + $0xfc8] sm:$0xff]
    %v2319 = vld [vmem:[#allocation7 + $0xfd0] sm:$0xff]
    %v2320 = vld [vmem:[#allocation7 + $0xfd8] sm:$0xff]
    %v2321 = vld [vmem:[#allocation7 + $0xfe0] sm:$0xff]
    %v2322 = vld [vmem:[#allocation7 + $0xfe8] sm:$0xff]
    %v2323 = vld [vmem:[#allocation7 + $0xff0] sm:$0xff]
    %v2324 = vld [vmem:[#allocation7 + $0xff8] sm:$0xff]
    %v2325 = vld [vmem:[#allocation7 + $0x1000] sm:$0xff]
    %v2326 = vld [vmem:[#allocation7 + $0x1008] sm:$0xff]
    %v2327 = vld [vmem:[#allocation7 + $0x1010] sm:$0xff]
    %v2328 = vld [vmem:[#allocation7 + $0x1018] sm:$0xff]
    %v2329 = vld [vmem:[#allocation7 + $0x1020] sm:$0xff]
    %v2330 = vld [vmem:[#allocation7 + $0x1028] sm:$0xff]
    %v2331 = vld [vmem:[#allocation7 + $0x1030] sm:$0xff]
    %v2332 = vld [vmem:[#allocation7 + $0x1038] sm:$0xff]
    %v2333 = vld [vmem:[#allocation7 + $0x1040] sm:$0xff]
    %v2334 = vld [vmem:[#allocation7 + $0x1048] sm:$0xff]
    %v2335 = vld [vmem:[#allocation7 + $0x1050] sm:$0xff]
    %v2336 = vld [vmem:[#allocation7 + $0x1058] sm:$0xff]
    %v2337 = vld [vmem:[#allocation7 + $0x1060] sm:$0xff]
    %v2338 = vld [vmem:[#allocation7 + $0x1068] sm:$0xff]
    %v2339 = vld [vmem:[#allocation7 + $0x1070] sm:$0xff]
    %v2340 = vld [vmem:[#allocation7 + $0x1078] sm:$0xff]
    %v2341 = vld [vmem:[#allocation7 + $0x1080] sm:$0xff]
    %v2342 = vld [vmem:[#allocation7 + $0x1088] sm:$0xff]
    %v2343 = vld [vmem:[#allocation7 + $0x1090] sm:$0xff]
    %v2344 = vld [vmem:[#allocation7 + $0x1098] sm:$0xff]
    %v2345 = vld [vmem:[#allocation7 + $0x10a0] sm:$0xff]
    %v2346 = vld [vmem:[#allocation7 + $0x10a8] sm:$0xff]
    %v2347 = vld [vmem:[#allocation7 + $0x10b0] sm:$0xff]
    %v2348 = vld [vmem:[#allocation7 + $0x10b8] sm:$0xff]
    %v2349 = vld [vmem:[#allocation7 + $0x10c0] sm:$0xff]
    %v2350 = vld [vmem:[#allocation7 + $0x10c8] sm:$0xff]
    %v2351 = vld [vmem:[#allocation7 + $0x10d0] sm:$0xff]
    %v2352 = vld [vmem:[#allocation7 + $0x10d8] sm:$0xff]
    %v2353 = vld [vmem:[#allocation7 + $0x10e0] sm:$0xff]
    %v2354 = vld [vmem:[#allocation7 + $0x10e8] sm:$0xff]
    %v2355 = vld [vmem:[#allocation7 + $0x10f0] sm:$0xff]
    %v2356 = vld [vmem:[#allocation7 + $0x10f8] sm:$0xff]
    %v2357 = vld [vmem:[#allocation7 + $0x1100] sm:$0xff]
    %v2358 = vld [vmem:[#allocation7 + $0x1108] sm:$0xff]
    %v2359 = vld [vmem:[#allocation7 + $0x1110] sm:$0xff]
    %v2360 = vld [vmem:[#allocation7 + $0x1118] sm:$0xff]
    %v2361 = vld [vmem:[#allocation7 + $0x1120] sm:$0xff]
    %v2362 = vld [vmem:[#allocation7 + $0x1128] sm:$0xff]
    %v2363 = vld [vmem:[#allocation7 + $0x1130] sm:$0xff]
    %v2364 = vld [vmem:[#allocation7 + $0x1138] sm:$0xff]
    %v2365 = vld [vmem:[#allocation7 + $0x1140] sm:$0xff]
    %v2366 = vld [vmem:[#allocation7 + $0x1148] sm:$0xff]
    %v2367 = vld [vmem:[#allocation7 + $0x1150] sm:$0xff]
    %v2368 = vld [vmem:[#allocation7 + $0x1158] sm:$0xff]
    %v2369 = vld [vmem:[#allocation7 + $0x1160] sm:$0xff]
    %v2370 = vld [vmem:[#allocation7 + $0x1168] sm:$0xff]
    %v2371 = vld [vmem:[#allocation7 + $0x1170] sm:$0xff]
    %v2372 = vld [vmem:[#allocation7 + $0x1178] sm:$0xff]
    %v2373 = vld [vmem:[#allocation7 + $0x1180] sm:$0xff]
    %v2374 = vld [vmem:[#allocation7 + $0x1188] sm:$0xff]
    %v2375 = vld [vmem:[#allocation7 + $0x1190] sm:$0xff]
    %v2376 = vld [vmem:[#allocation7 + $0x1198] sm:$0xff]
    %v2377 = vld [vmem:[#allocation7 + $0x11a0] sm:$0xff]
    %v2378 = vld [vmem:[#allocation7 + $0x11a8] sm:$0xff]
    %v2379 = vld [vmem:[#allocation7 + $0x11b0] sm:$0xff]
    %v2380 = vld [vmem:[#allocation7 + $0x11b8] sm:$0xff]
    %v2381 = vld [vmem:[#allocation7 + $0x11c0] sm:$0xff]
    %v2382 = vld [vmem:[#allocation7 + $0x11c8] sm:$0xff]
    %v2383 = vld [vmem:[#allocation7 + $0x11d0] sm:$0xff]
    %v2384 = vld [vmem:[#allocation7 + $0x11d8] sm:$0xff]
    %v2385 = vld [vmem:[#allocation7 + $0x11e0] sm:$0xff]
    %v2386 = vld [vmem:[#allocation7 + $0x11e8] sm:$0xff]
    %v2387 = vld [vmem:[#allocation7 + $0x11f0] sm:$0xff]
    %v2388 = vld [vmem:[#allocation7 + $0x11f8] sm:$0xff]
    %v2389 = vld [vmem:[%s7] sm:$0xff]
    %v2390 = vld [vmem:[%s7 + $0x8] sm:$0xff]
    %2392 = vset.pattern.permute.xlu0 0
    %2393 = vperm.xlu0 %2392, %v2389
    %v2394 = vpop.permute.xlu0 %2393
    %2397 = vset.pattern.permute.xlu0 0
    %2398 = vperm.xlu0 %2397, %v2390
    %v2399 = vpop.permute.xlu0 %2398
    %v2401 = vsel %vm147, %v1767, 0
    %v2403 = vsel %vm147, %v1808, 0
    %2405 = vmatprep.subr.mxu0 %v1934
    %2406 = vmatpush1.msra.mxu0 %v1933
    %2407 = vmatprep.subr.mxu0 %v1926
    %2408 = vmatpush1.msra.mxu0 %v1925
    %2409 = vmatprep.subr.mxu0 %v1918
    %2410 = vmatpush1.msra.mxu0 %v1917
    %2411 = vmatprep.subr.mxu0 %v1910
    %2412 = vmatpush1.msra.mxu0 %v1909
    %2413 = vmatprep.subr.mxu0 %v1902
    %2414 = vmatpush1.msra.mxu0 %v1901
    %2415 = vmatprep.subr.mxu0 %v1894
    %2416 = vmatpush1.msra.mxu0 %v1893
    %2417 = vmatprep.subr.mxu0 %v1886
    %2418 = vmatpush1.msra.mxu0 %v1885
    %2419 = vmatprep.subr.mxu0 %v1878
    %2420 = vmatpush1.msra.mxu0 %v1877
    %2421 = vmatprep.subr.mxu0 %v1870
    %2422 = vmatpush1.msra.mxu0 %v1869
    %2423 = vmatprep.subr.mxu0 %v1862
    %2424 = vmatpush1.msra.mxu0 %v1861
    %2425 = vmatprep.subr.mxu0 %v1854
    %2426 = vmatpush1.msra.mxu0 %v1853
    %2427 = vmatprep.subr.mxu0 %v1846
    %2428 = vmatpush1.msra.mxu0 %v1845
    %2429 = vmatprep.subr.mxu0 %v1838
    %2430 = vmatpush1.msra.mxu0 %v1837
    %2431 = vmatprep.subr.mxu0 %v1830
    %2432 = vmatpush1.msra.mxu0 %v1829
    %2433 = vmatprep.subr.mxu0 %v1822
    %2434 = vmatpush1.msra.mxu0 %v1821
    %2435 = vmatprep.subr.mxu0 %v1814
    %2436 = vmatpush1.msra.mxu0 %v1813
    %2437 = vmatprep.subr.mxu0 %v2062
    %2438 = vmatpush2.msra.mxu0 %v2061
    %2439 = vmatprep.subr.mxu0 %v2054
    %2440 = vmatpush2.msra.mxu0 %v2053
    %2441 = vmatprep.subr.mxu0 %v2046
    %2442 = vmatpush2.msra.mxu0 %v2045
    %2443 = vmatprep.subr.mxu0 %v2038
    %2444 = vmatpush2.msra.mxu0 %v2037
    %2445 = vmatprep.subr.mxu0 %v2030
    %2446 = vmatpush2.msra.mxu0 %v2029
    %2447 = vmatprep.subr.mxu0 %v2022
    %2448 = vmatpush2.msra.mxu0 %v2021
    %2449 = vmatprep.subr.mxu0 %v2014
    %2450 = vmatpush2.msra.mxu0 %v2013
    %2451 = vmatprep.subr.mxu0 %v2006
    %2452 = vmatpush2.msra.mxu0 %v2005
    %2453 = vmatprep.subr.mxu0 %v1998
    %2454 = vmatpush2.msra.mxu0 %v1997
    %2455 = vmatprep.subr.mxu0 %v1990
    %2456 = vmatpush2.msra.mxu0 %v1989
    %2457 = vmatprep.subr.mxu0 %v1982
    %2458 = vmatpush2.msra.mxu0 %v1981
    %2459 = vmatprep.subr.mxu0 %v1974
    %2460 = vmatpush2.msra.mxu0 %v1973
    %2461 = vmatprep.subr.mxu0 %v1966
    %2462 = vmatpush2.msra.mxu0 %v1965
    %2463 = vmatprep.subr.mxu0 %v1958
    %2464 = vmatpush2.msra.mxu0 %v1957
    %2465 = vmatprep.subr.mxu0 %v1950
    %2466 = vmatpush2.msra.mxu0 %v1949
    %2467 = vmatprep.subr.mxu0 %v1942
    %2468 = vmatpush2.msra.mxu0 %v1941
    %2469 = vmatprep.mubr.f32.mxu0 %v1787
    %2470 = vmatmul.mubr.f32.gmra.mxu0 %v1786
    %v2471 = vpop.f32.mrf.mxu0
    %v2472 = vadd.f32 %v2394, %v2471
    %v2473 = vpop.f32.mrf.mxu0
    %v2474 = vadd.f32 %v2394, %v2473
    %2475 = vmatprep.mubr.f32.mxu0 %v1810
    %2476 = vmatmul.mubr.f32.gmra.mxu0 %v1809
    %v2477 = vpop.f32.mrf.mxu0
    %v2478 = vadd.f32 %v2399, %v2477
    %v2479 = vpop.f32.mrf.mxu0
    %v2480 = vadd.f32 %v2399, %v2479
    %2481 = vdwg.mxu0
    %2482 = vmatprep.subr.mxu0 %v2190
    %2483 = vmatpush1.msra.mxu0 %v2189
    %2484 = vmatprep.subr.mxu0 %v2182
    %2485 = vmatpush1.msra.mxu0 %v2181
    %2486 = vmatprep.subr.mxu0 %v2174
    %2487 = vmatpush1.msra.mxu0 %v2173
    %2488 = vmatprep.subr.mxu0 %v2166
    %2489 = vmatpush1.msra.mxu0 %v2165
    %2490 = vmatprep.subr.mxu0 %v2158
    %2491 = vmatpush1.msra.mxu0 %v2157
    %2492 = vmatprep.subr.mxu0 %v2150
    %2493 = vmatpush1.msra.mxu0 %v2149
    %2494 = vmatprep.subr.mxu0 %v2142
    %2495 = vmatpush1.msra.mxu0 %v2141
    %2496 = vmatprep.subr.mxu0 %v2134
    %2497 = vmatpush1.msra.mxu0 %v2133
    %2498 = vmatprep.subr.mxu0 %v2126
    %2499 = vmatpush1.msra.mxu0 %v2125
    %2500 = vmatprep.subr.mxu0 %v2118
    %2501 = vmatpush1.msra.mxu0 %v2117
    %2502 = vmatprep.subr.mxu0 %v2110
    %2503 = vmatpush1.msra.mxu0 %v2109
    %2504 = vmatprep.subr.mxu0 %v2102
    %2505 = vmatpush1.msra.mxu0 %v2101
    %2506 = vmatprep.subr.mxu0 %v2094
    %2507 = vmatpush1.msra.mxu0 %v2093
    %2508 = vmatprep.subr.mxu0 %v2086
    %2509 = vmatpush1.msra.mxu0 %v2085
    %2510 = vmatprep.subr.mxu0 %v2078
    %2511 = vmatpush1.msra.mxu0 %v2077
    %2512 = vmatprep.subr.mxu0 %v2070
    %2513 = vmatpush1.msra.mxu0 %v2069
    %2514 = vmatprep.subr.mxu0 %v2318
    %2515 = vmatpush2.msra.mxu0 %v2317
    %2516 = vmatprep.subr.mxu0 %v2310
    %2517 = vmatpush2.msra.mxu0 %v2309
    %2518 = vmatprep.subr.mxu0 %v2302
    %2519 = vmatpush2.msra.mxu0 %v2301
    %2520 = vmatprep.subr.mxu0 %v2294
    %2521 = vmatpush2.msra.mxu0 %v2293
    %2522 = vmatprep.subr.mxu0 %v2286
    %2523 = vmatpush2.msra.mxu0 %v2285
    %2524 = vmatprep.subr.mxu0 %v2278
    %2525 = vmatpush2.msra.mxu0 %v2277
    %2526 = vmatprep.subr.mxu0 %v2270
    %2527 = vmatpush2.msra.mxu0 %v2269
    %2528 = vmatprep.subr.mxu0 %v2262
    %2529 = vmatpush2.msra.mxu0 %v2261
    %2530 = vmatprep.subr.mxu0 %v2254
    %2531 = vmatpush2.msra.mxu0 %v2253
    %2532 = vmatprep.subr.mxu0 %v2246
    %2533 = vmatpush2.msra.mxu0 %v2245
    %2534 = vmatprep.subr.mxu0 %v2238
    %2535 = vmatpush2.msra.mxu0 %v2237
    %2536 = vmatprep.subr.mxu0 %v2230
    %2537 = vmatpush2.msra.mxu0 %v2229
    %2538 = vmatprep.subr.mxu0 %v2222
    %2539 = vmatpush2.msra.mxu0 %v2221
    %2540 = vmatprep.subr.mxu0 %v2214
    %2541 = vmatpush2.msra.mxu0 %v2213
    %2542 = vmatprep.subr.mxu0 %v2206
    %2543 = vmatpush2.msra.mxu0 %v2205
    %2544 = vmatprep.subr.mxu0 %v2198
    %2545 = vmatpush2.msra.mxu0 %v2197
    %2546 = vmatprep.mubr.f32.mxu0 %v1789
    %2547 = vmatmul.mubr.f32.gmra.mxu0 %v1788
    %v2548 = vpop.f32.mrf.mxu0
    %v2549 = vadd.f32 %v2472, %v2548
    %v2550 = vpop.f32.mrf.mxu0
    %v2551 = vadd.f32 %v2474, %v2550
    %2552 = vmatprep.mubr.f32.mxu0 %v1812
    %2553 = vmatmul.mubr.f32.gmra.mxu0 %v1811
    %v2554 = vpop.f32.mrf.mxu0
    %v2555 = vadd.f32 %v2478, %v2554
    %v2556 = vpop.f32.mrf.mxu0
    %v2557 = vadd.f32 %v2480, %v2556
    %2558 = vdwg.mxu0
    %2559 = vmatprep.subr.mxu0 0.0
    %2560 = vmatpush1.msra.mxu0 0.0
    %2561 = vmatprep.subr.mxu0 0.0
    %2562 = vmatpush1.msra.mxu0 0.0
    %2563 = vmatprep.subr.mxu0 0.0
    %2564 = vmatpush1.msra.mxu0 0.0
    %2565 = vmatprep.subr.mxu0 0.0
    %2566 = vmatpush1.msra.mxu0 0.0
    %2567 = vmatprep.subr.mxu0 0.0
    %2568 = vmatpush1.msra.mxu0 0.0
    %2569 = vmatprep.subr.mxu0 0.0
    %2570 = vmatpush1.msra.mxu0 0.0
    %2571 = vmatprep.subr.mxu0 0.0
    %2572 = vmatpush1.msra.mxu0 0.0
    %2573 = vmatprep.subr.mxu0 0.0
    %2574 = vmatpush1.msra.mxu0 0.0
    %2575 = vmatprep.subr.mxu0 %v2382
    %2576 = vmatpush1.msra.mxu0 %v2381
    %2577 = vmatprep.subr.mxu0 %v2374
    %2578 = vmatpush1.msra.mxu0 %v2373
    %2579 = vmatprep.subr.mxu0 %v2366
    %2580 = vmatpush1.msra.mxu0 %v2365
    %2581 = vmatprep.subr.mxu0 %v2358
    %2582 = vmatpush1.msra.mxu0 %v2357
    %2583 = vmatprep.subr.mxu0 %v2350
    %2584 = vmatpush1.msra.mxu0 %v2349
    %2585 = vmatprep.subr.mxu0 %v2342
    %2586 = vmatpush1.msra.mxu0 %v2341
    %2587 = vmatprep.subr.mxu0 %v2334
    %2588 = vmatpush1.msra.mxu0 %v2333
    %2589 = vmatprep.subr.mxu0 %v2326
    %2590 = vmatpush1.msra.mxu0 %v2325
    %2591 = vmatprep.subr.mxu0 0.0
    %2592 = vmatpush2.msra.mxu0 0.0
    %2593 = vmatprep.subr.mxu0 0.0
    %2594 = vmatpush2.msra.mxu0 0.0
    %2595 = vmatprep.subr.mxu0 0.0
    %2596 = vmatpush2.msra.mxu0 0.0
    %2597 = vmatprep.subr.mxu0 0.0
    %2598 = vmatpush2.msra.mxu0 0.0
    %2599 = vmatprep.subr.mxu0 0.0
    %2600 = vmatpush2.msra.mxu0 0.0
    %2601 = vmatprep.subr.mxu0 0.0
    %2602 = vmatpush2.msra.mxu0 0.0
    %2603 = vmatprep.subr.mxu0 0.0
    %2604 = vmatpush2.msra.mxu0 0.0
    %2605 = vmatprep.subr.mxu0 0.0
    %2606 = vmatpush2.msra.mxu0 0.0
    %2607 = vmatprep.subr.mxu0 0.0
    %2608 = vmatpush2.msra.mxu0 0.0
    %2609 = vmatprep.subr.mxu0 0.0
    %2610 = vmatpush2.msra.mxu0 0.0
    %2611 = vmatprep.subr.mxu0 0.0
    %2612 = vmatpush2.msra.mxu0 0.0
    %2613 = vmatprep.subr.mxu0 0.0
    %2614 = vmatpush2.msra.mxu0 0.0
    %2615 = vmatprep.subr.mxu0 0.0
    %2616 = vmatpush2.msra.mxu0 0.0
    %2617 = vmatprep.subr.mxu0 0.0
    %2618 = vmatpush2.msra.mxu0 0.0
    %2619 = vmatprep.subr.mxu0 0.0
    %2620 = vmatpush2.msra.mxu0 0.0
    %2621 = vmatprep.subr.mxu0 0.0
    %2622 = vmatpush2.msra.mxu0 0.0
    %2623 = vmatprep.mubr.f32.mxu0 0.0
    %2624 = vmatmul.mubr.f32.gmra.mxu0 %v2401
    %v2625 = vpop.f32.mrf.mxu0
    %v2626 = vadd.f32 %v2549, %v2625
    %v2627 = vpop.f32.mrf.mxu0
    %v2628 = vadd.f32 %v2551, %v2627
    %2629 = vmatprep.mubr.f32.mxu0 0.0
    %2630 = vmatmul.mubr.f32.gmra.mxu0 %v2403
    %v2631 = vpop.f32.mrf.mxu0
    %v2632 = vadd.f32 %v2555, %v2631
    %v2633 = vpop.f32.mrf.mxu0
    %v2634 = vadd.f32 %v2557, %v2633
    %2635 = vdwg.mxu0
    %2636 = vmatprep.subr.mxu0 %v1936
    %2637 = vmatpush1.msra.mxu0 %v1935
    %2638 = vmatprep.subr.mxu0 %v1928
    %2639 = vmatpush1.msra.mxu0 %v1927
    %2640 = vmatprep.subr.mxu0 %v1920
    %2641 = vmatpush1.msra.mxu0 %v1919
    %2642 = vmatprep.subr.mxu0 %v1912
    %2643 = vmatpush1.msra.mxu0 %v1911
    %2644 = vmatprep.subr.mxu0 %v1904
    %2645 = vmatpush1.msra.mxu0 %v1903
    %2646 = vmatprep.subr.mxu0 %v1896
    %2647 = vmatpush1.msra.mxu0 %v1895
    %2648 = vmatprep.subr.mxu0 %v1888
    %2649 = vmatpush1.msra.mxu0 %v1887
    %2650 = vmatprep.subr.mxu0 %v1880
    %2651 = vmatpush1.msra.mxu0 %v1879
    %2652 = vmatprep.subr.mxu0 %v1872
    %2653 = vmatpush1.msra.mxu0 %v1871
    %2654 = vmatprep.subr.mxu0 %v1864
    %2655 = vmatpush1.msra.mxu0 %v1863
    %2656 = vmatprep.subr.mxu0 %v1856
    %2657 = vmatpush1.msra.mxu0 %v1855
    %2658 = vmatprep.subr.mxu0 %v1848
    %2659 = vmatpush1.msra.mxu0 %v1847
    %2660 = vmatprep.subr.mxu0 %v1840
    %2661 = vmatpush1.msra.mxu0 %v1839
    %2662 = vmatprep.subr.mxu0 %v1832
    %2663 = vmatpush1.msra.mxu0 %v1831
    %2664 = vmatprep.subr.mxu0 %v1824
    %2665 = vmatpush1.msra.mxu0 %v1823
    %2666 = vmatprep.subr.mxu0 %v1816
    %2667 = vmatpush1.msra.mxu0 %v1815
    %2668 = vmatprep.subr.mxu0 %v2064
    %2669 = vmatpush2.msra.mxu0 %v2063
    %2670 = vmatprep.subr.mxu0 %v2056
    %2671 = vmatpush2.msra.mxu0 %v2055
    %2672 = vmatprep.subr.mxu0 %v2048
    %2673 = vmatpush2.msra.mxu0 %v2047
    %2674 = vmatprep.subr.mxu0 %v2040
    %2675 = vmatpush2.msra.mxu0 %v2039
    %2676 = vmatprep.subr.mxu0 %v2032
    %2677 = vmatpush2.msra.mxu0 %v2031
    %2678 = vmatprep.subr.mxu0 %v2024
    %2679 = vmatpush2.msra.mxu0 %v2023
    %2680 = vmatprep.subr.mxu0 %v2016
    %2681 = vmatpush2.msra.mxu0 %v2015
    %2682 = vmatprep.subr.mxu0 %v2008
    %2683 = vmatpush2.msra.mxu0 %v2007
    %2684 = vmatprep.subr.mxu0 %v2000
    %2685 = vmatpush2.msra.mxu0 %v1999
    %2686 = vmatprep.subr.mxu0 %v1992
    %2687 = vmatpush2.msra.mxu0 %v1991
    %2688 = vmatprep.subr.mxu0 %v1984
    %2689 = vmatpush2.msra.mxu0 %v1983
    %2690 = vmatprep.subr.mxu0 %v1976
    %2691 = vmatpush2.msra.mxu0 %v1975
    %2692 = vmatprep.subr.mxu0 %v1968
    %2693 = vmatpush2.msra.mxu0 %v1967
    %2694 = vmatprep.subr.mxu0 %v1960
    %2695 = vmatpush2.msra.mxu0 %v1959
    %2696 = vmatprep.subr.mxu0 %v1952
    %2697 = vmatpush2.msra.mxu0 %v1951
    %2698 = vmatprep.subr.mxu0 %v1944
    %2699 = vmatpush2.msra.mxu0 %v1943
    %2700 = vmatprep.mubr.f32.mxu0 %v1787
    %2701 = vmatmul.mubr.f32.gmra.mxu0 %v1786
    %v2702 = vpop.f32.mrf.mxu0
    %v2703 = vadd.f32 %v2394, %v2702
    %v2704 = vpop.f32.mrf.mxu0
    %v2705 = vadd.f32 %v2394, %v2704
    %2706 = vmatprep.mubr.f32.mxu0 %v1810
    %2707 = vmatmul.mubr.f32.gmra.mxu0 %v1809
    %v2708 = vpop.f32.mrf.mxu0
    %v2709 = vadd.f32 %v2399, %v2708
    %v2710 = vpop.f32.mrf.mxu0
    %v2711 = vadd.f32 %v2399, %v2710
    %2712 = vdwg.mxu0
    %2713 = vmatprep.subr.mxu0 %v2192
    %2714 = vmatpush1.msra.mxu0 %v2191
    %2715 = vmatprep.subr.mxu0 %v2184
    %2716 = vmatpush1.msra.mxu0 %v2183
    %2717 = vmatprep.subr.mxu0 %v2176
    %2718 = vmatpush1.msra.mxu0 %v2175
    %2719 = vmatprep.subr.mxu0 %v2168
    %2720 = vmatpush1.msra.mxu0 %v2167
    %2721 = vmatprep.subr.mxu0 %v2160
    %2722 = vmatpush1.msra.mxu0 %v2159
    %2723 = vmatprep.subr.mxu0 %v2152
    %2724 = vmatpush1.msra.mxu0 %v2151
    %2725 = vmatprep.subr.mxu0 %v2144
    %2726 = vmatpush1.msra.mxu0 %v2143
    %2727 = vmatprep.subr.mxu0 %v2136
    %2728 = vmatpush1.msra.mxu0 %v2135
    %2729 = vmatprep.subr.mxu0 %v2128
    %2730 = vmatpush1.msra.mxu0 %v2127
    %2731 = vmatprep.subr.mxu0 %v2120
    %2732 = vmatpush1.msra.mxu0 %v2119
    %2733 = vmatprep.subr.mxu0 %v2112
    %2734 = vmatpush1.msra.mxu0 %v2111
    %2735 = vmatprep.subr.mxu0 %v2104
    %2736 = vmatpush1.msra.mxu0 %v2103
    %2737 = vmatprep.subr.mxu0 %v2096
    %2738 = vmatpush1.msra.mxu0 %v2095
    %2739 = vmatprep.subr.mxu0 %v2088
    %2740 = vmatpush1.msra.mxu0 %v2087
    %2741 = vmatprep.subr.mxu0 %v2080
    %2742 = vmatpush1.msra.mxu0 %v2079
    %2743 = vmatprep.subr.mxu0 %v2072
    %2744 = vmatpush1.msra.mxu0 %v2071
    %2745 = vmatprep.subr.mxu0 %v2320
    %2746 = vmatpush2.msra.mxu0 %v2319
    %2747 = vmatprep.subr.mxu0 %v2312
    %2748 = vmatpush2.msra.mxu0 %v2311
    %2749 = vmatprep.subr.mxu0 %v2304
    %2750 = vmatpush2.msra.mxu0 %v2303
    %2751 = vmatprep.subr.mxu0 %v2296
    %2752 = vmatpush2.msra.mxu0 %v2295
    %2753 = vmatprep.subr.mxu0 %v2288
    %2754 = vmatpush2.msra.mxu0 %v2287
    %2755 = vmatprep.subr.mxu0 %v2280
    %2756 = vmatpush2.msra.mxu0 %v2279
    %2757 = vmatprep.subr.mxu0 %v2272
    %2758 = vmatpush2.msra.mxu0 %v2271
    %2759 = vmatprep.subr.mxu0 %v2264
    %2760 = vmatpush2.msra.mxu0 %v2263
    %2761 = vmatprep.subr.mxu0 %v2256
    %2762 = vmatpush2.msra.mxu0 %v2255
    %2763 = vmatprep.subr.mxu0 %v2248
    %2764 = vmatpush2.msra.mxu0 %v2247
    %2765 = vmatprep.subr.mxu0 %v2240
    %2766 = vmatpush2.msra.mxu0 %v2239
    %2767 = vmatprep.subr.mxu0 %v2232
    %2768 = vmatpush2.msra.mxu0 %v2231
    %2769 = vmatprep.subr.mxu0 %v2224
    %2770 = vmatpush2.msra.mxu0 %v2223
    %2771 = vmatprep.subr.mxu0 %v2216
    %2772 = vmatpush2.msra.mxu0 %v2215
    %2773 = vmatprep.subr.mxu0 %v2208
    %2774 = vmatpush2.msra.mxu0 %v2207
    %2775 = vmatprep.subr.mxu0 %v2200
    %2776 = vmatpush2.msra.mxu0 %v2199
    %2777 = vmatprep.mubr.f32.mxu0 %v1789
    %2778 = vmatmul.mubr.f32.gmra.mxu0 %v1788
    %v2779 = vpop.f32.mrf.mxu0
    %v2780 = vadd.f32 %v2703, %v2779
    %v2781 = vpop.f32.mrf.mxu0
    %v2782 = vadd.f32 %v2705, %v2781
    %2783 = vmatprep.mubr.f32.mxu0 %v1812
    %2784 = vmatmul.mubr.f32.gmra.mxu0 %v1811
    %v2785 = vpop.f32.mrf.mxu0
    %v2786 = vadd.f32 %v2709, %v2785
    %v2787 = vpop.f32.mrf.mxu0
    %v2788 = vadd.f32 %v2711, %v2787
    %2789 = vdwg.mxu0
    %2790 = vmatprep.subr.mxu0 0.0
    %2791 = vmatpush1.msra.mxu0 0.0
    %2792 = vmatprep.subr.mxu0 0.0
    %2793 = vmatpush1.msra.mxu0 0.0
    %2794 = vmatprep.subr.mxu0 0.0
    %2795 = vmatpush1.msra.mxu0 0.0
    %2796 = vmatprep.subr.mxu0 0.0
    %2797 = vmatpush1.msra.mxu0 0.0
    %2798 = vmatprep.subr.mxu0 0.0
    %2799 = vmatpush1.msra.mxu0 0.0
    %2800 = vmatprep.subr.mxu0 0.0
    %2801 = vmatpush1.msra.mxu0 0.0
    %2802 = vmatprep.subr.mxu0 0.0
    %2803 = vmatpush1.msra.mxu0 0.0
    %2804 = vmatprep.subr.mxu0 0.0
    %2805 = vmatpush1.msra.mxu0 0.0
    %2806 = vmatprep.subr.mxu0 %v2384
    %2807 = vmatpush1.msra.mxu0 %v2383
    %2808 = vmatprep.subr.mxu0 %v2376
    %2809 = vmatpush1.msra.mxu0 %v2375
    %2810 = vmatprep.subr.mxu0 %v2368
    %2811 = vmatpush1.msra.mxu0 %v2367
    %2812 = vmatprep.subr.mxu0 %v2360
    %2813 = vmatpush1.msra.mxu0 %v2359
    %2814 = vmatprep.subr.mxu0 %v2352
    %2815 = vmatpush1.msra.mxu0 %v2351
    %2816 = vmatprep.subr.mxu0 %v2344
    %2817 = vmatpush1.msra.mxu0 %v2343
    %2818 = vmatprep.subr.mxu0 %v2336
    %2819 = vmatpush1.msra.mxu0 %v2335
    %2820 = vmatprep.subr.mxu0 %v2328
    %2821 = vmatpush1.msra.mxu0 %v2327
    %2822 = vmatprep.subr.mxu0 0.0
    %2823 = vmatpush2.msra.mxu0 0.0
    %2824 = vmatprep.subr.mxu0 0.0
    %2825 = vmatpush2.msra.mxu0 0.0
    %2826 = vmatprep.subr.mxu0 0.0
    %2827 = vmatpush2.msra.mxu0 0.0
    %2828 = vmatprep.subr.mxu0 0.0
    %2829 = vmatpush2.msra.mxu0 0.0
    %2830 = vmatprep.subr.mxu0 0.0
    %2831 = vmatpush2.msra.mxu0 0.0
    %2832 = vmatprep.subr.mxu0 0.0
    %2833 = vmatpush2.msra.mxu0 0.0
    %2834 = vmatprep.subr.mxu0 0.0
    %2835 = vmatpush2.msra.mxu0 0.0
    %2836 = vmatprep.subr.mxu0 0.0
    %2837 = vmatpush2.msra.mxu0 0.0
    %2838 = vmatprep.subr.mxu0 0.0
    %2839 = vmatpush2.msra.mxu0 0.0
    %2840 = vmatprep.subr.mxu0 0.0
    %2841 = vmatpush2.msra.mxu0 0.0
    %2842 = vmatprep.subr.mxu0 0.0
    %2843 = vmatpush2.msra.mxu0 0.0
    %2844 = vmatprep.subr.mxu0 0.0
    %2845 = vmatpush2.msra.mxu0 0.0
    %2846 = vmatprep.subr.mxu0 0.0
    %2847 = vmatpush2.msra.mxu0 0.0
    %2848 = vmatprep.subr.mxu0 0.0
    %2849 = vmatpush2.msra.mxu0 0.0
    %2850 = vmatprep.subr.mxu0 0.0
    %2851 = vmatpush2.msra.mxu0 0.0
    %2852 = vmatprep.subr.mxu0 0.0
    %2853 = vmatpush2.msra.mxu0 0.0
    %2854 = vmatprep.mubr.f32.mxu0 0.0
    %2855 = vmatmul.mubr.f32.gmra.mxu0 %v2401
    %v2856 = vpop.f32.mrf.mxu0
    %v2857 = vadd.f32 %v2780, %v2856
    %v2858 = vpop.f32.mrf.mxu0
    %v2859 = vadd.f32 %v2782, %v2858
    %2860 = vmatprep.mubr.f32.mxu0 0.0
    %2861 = vmatmul.mubr.f32.gmra.mxu0 %v2403
    %v2862 = vpop.f32.mrf.mxu0
    %v2863 = vadd.f32 %v2786, %v2862
    %v2864 = vpop.f32.mrf.mxu0
    %v2865 = vadd.f32 %v2788, %v2864
    %2866 = vdwg.mxu0
    %2867 = vmatprep.subr.mxu0 %v1938
    %2868 = vmatpush1.msra.mxu0 %v1937
    %2869 = vmatprep.subr.mxu0 %v1930
    %2870 = vmatpush1.msra.mxu0 %v1929
    %2871 = vmatprep.subr.mxu0 %v1922
    %2872 = vmatpush1.msra.mxu0 %v1921
    %2873 = vmatprep.subr.mxu0 %v1914
    %2874 = vmatpush1.msra.mxu0 %v1913
    %2875 = vmatprep.subr.mxu0 %v1906
    %2876 = vmatpush1.msra.mxu0 %v1905
    %2877 = vmatprep.subr.mxu0 %v1898
    %2878 = vmatpush1.msra.mxu0 %v1897
    %2879 = vmatprep.subr.mxu0 %v1890
    %2880 = vmatpush1.msra.mxu0 %v1889
    %2881 = vmatprep.subr.mxu0 %v1882
    %2882 = vmatpush1.msra.mxu0 %v1881
    %2883 = vmatprep.subr.mxu0 %v1874
    %2884 = vmatpush1.msra.mxu0 %v1873
    %2885 = vmatprep.subr.mxu0 %v1866
    %2886 = vmatpush1.msra.mxu0 %v1865
    %2887 = vmatprep.subr.mxu0 %v1858
    %2888 = vmatpush1.msra.mxu0 %v1857
    %2889 = vmatprep.subr.mxu0 %v1850
    %2890 = vmatpush1.msra.mxu0 %v1849
    %2891 = vmatprep.subr.mxu0 %v1842
    %2892 = vmatpush1.msra.mxu0 %v1841
    %2893 = vmatprep.subr.mxu0 %v1834
    %2894 = vmatpush1.msra.mxu0 %v1833
    %2895 = vmatprep.subr.mxu0 %v1826
    %2896 = vmatpush1.msra.mxu0 %v1825
    %2897 = vmatprep.subr.mxu0 %v1818
    %2898 = vmatpush1.msra.mxu0 %v1817
    %2899 = vmatprep.subr.mxu0 %v2066
    %2900 = vmatpush2.msra.mxu0 %v2065
    %2901 = vmatprep.subr.mxu0 %v2058
    %2902 = vmatpush2.msra.mxu0 %v2057
    %2903 = vmatprep.subr.mxu0 %v2050
    %2904 = vmatpush2.msra.mxu0 %v2049
    %2905 = vmatprep.subr.mxu0 %v2042
    %2906 = vmatpush2.msra.mxu0 %v2041
    %2907 = vmatprep.subr.mxu0 %v2034
    %2908 = vmatpush2.msra.mxu0 %v2033
    %2909 = vmatprep.subr.mxu0 %v2026
    %2910 = vmatpush2.msra.mxu0 %v2025
    %2911 = vmatprep.subr.mxu0 %v2018
    %2912 = vmatpush2.msra.mxu0 %v2017
    %2913 = vmatprep.subr.mxu0 %v2010
    %2914 = vmatpush2.msra.mxu0 %v2009
    %2915 = vmatprep.subr.mxu0 %v2002
    %2916 = vmatpush2.msra.mxu0 %v2001
    %2917 = vmatprep.subr.mxu0 %v1994
    %2918 = vmatpush2.msra.mxu0 %v1993
    %2919 = vmatprep.subr.mxu0 %v1986
    %2920 = vmatpush2.msra.mxu0 %v1985
    %2921 = vmatprep.subr.mxu0 %v1978
    %2922 = vmatpush2.msra.mxu0 %v1977
    %2923 = vmatprep.subr.mxu0 %v1970
    %2924 = vmatpush2.msra.mxu0 %v1969
    %2925 = vmatprep.subr.mxu0 %v1962
    %2926 = vmatpush2.msra.mxu0 %v1961
    %2927 = vmatprep.subr.mxu0 %v1954
    %2928 = vmatpush2.msra.mxu0 %v1953
    %2929 = vmatprep.subr.mxu0 %v1946
    %2930 = vmatpush2.msra.mxu0 %v1945
    %2931 = vmatprep.mubr.f32.mxu0 %v1787
    %2932 = vmatmul.mubr.f32.gmra.mxu0 %v1786
    %v2933 = vpop.f32.mrf.mxu0
    %v2934 = vadd.f32 %v2394, %v2933
    %v2935 = vpop.f32.mrf.mxu0
    %v2936 = vadd.f32 %v2394, %v2935
    %2937 = vmatprep.mubr.f32.mxu0 %v1810
    %2938 = vmatmul.mubr.f32.gmra.mxu0 %v1809
    %v2939 = vpop.f32.mrf.mxu0
    %v2940 = vadd.f32 %v2399, %v2939
    %v2941 = vpop.f32.mrf.mxu0
    %v2942 = vadd.f32 %v2399, %v2941
    %2943 = vdwg.mxu0
    %2944 = vmatprep.subr.mxu0 %v2194
    %2945 = vmatpush1.msra.mxu0 %v2193
    %2946 = vmatprep.subr.mxu0 %v2186
    %2947 = vmatpush1.msra.mxu0 %v2185
    %2948 = vmatprep.subr.mxu0 %v2178
    %2949 = vmatpush1.msra.mxu0 %v2177
    %2950 = vmatprep.subr.mxu0 %v2170
    %2951 = vmatpush1.msra.mxu0 %v2169
    %2952 = vmatprep.subr.mxu0 %v2162
    %2953 = vmatpush1.msra.mxu0 %v2161
    %2954 = vmatprep.subr.mxu0 %v2154
    %2955 = vmatpush1.msra.mxu0 %v2153
    %2956 = vmatprep.subr.mxu0 %v2146
    %2957 = vmatpush1.msra.mxu0 %v2145
    %2958 = vmatprep.subr.mxu0 %v2138
    %2959 = vmatpush1.msra.mxu0 %v2137
    %2960 = vmatprep.subr.mxu0 %v2130
    %2961 = vmatpush1.msra.mxu0 %v2129
    %2962 = vmatprep.subr.mxu0 %v2122
    %2963 = vmatpush1.msra.mxu0 %v2121
    %2964 = vmatprep.subr.mxu0 %v2114
    %2965 = vmatpush1.msra.mxu0 %v2113
    %2966 = vmatprep.subr.mxu0 %v2106
    %2967 = vmatpush1.msra.mxu0 %v2105
    %2968 = vmatprep.subr.mxu0 %v2098
    %2969 = vmatpush1.msra.mxu0 %v2097
    %2970 = vmatprep.subr.mxu0 %v2090
    %2971 = vmatpush1.msra.mxu0 %v2089
    %2972 = vmatprep.subr.mxu0 %v2082
    %2973 = vmatpush1.msra.mxu0 %v2081
    %2974 = vmatprep.subr.mxu0 %v2074
    %2975 = vmatpush1.msra.mxu0 %v2073
    %2976 = vmatprep.subr.mxu0 %v2322
    %2977 = vmatpush2.msra.mxu0 %v2321
    %2978 = vmatprep.subr.mxu0 %v2314
    %2979 = vmatpush2.msra.mxu0 %v2313
    %2980 = vmatprep.subr.mxu0 %v2306
    %2981 = vmatpush2.msra.mxu0 %v2305
    %2982 = vmatprep.subr.mxu0 %v2298
    %2983 = vmatpush2.msra.mxu0 %v2297
    %2984 = vmatprep.subr.mxu0 %v2290
    %2985 = vmatpush2.msra.mxu0 %v2289
    %2986 = vmatprep.subr.mxu0 %v2282
    %2987 = vmatpush2.msra.mxu0 %v2281
    %2988 = vmatprep.subr.mxu0 %v2274
    %2989 = vmatpush2.msra.mxu0 %v2273
    %2990 = vmatprep.subr.mxu0 %v2266
    %2991 = vmatpush2.msra.mxu0 %v2265
    %2992 = vmatprep.subr.mxu0 %v2258
    %2993 = vmatpush2.msra.mxu0 %v2257
    %2994 = vmatprep.subr.mxu0 %v2250
    %2995 = vmatpush2.msra.mxu0 %v2249
    %2996 = vmatprep.subr.mxu0 %v2242
    %2997 = vmatpush2.msra.mxu0 %v2241
    %2998 = vmatprep.subr.mxu0 %v2234
    %2999 = vmatpush2.msra.mxu0 %v2233
    %3000 = vmatprep.subr.mxu0 %v2226
    %3001 = vmatpush2.msra.mxu0 %v2225
    %3002 = vmatprep.subr.mxu0 %v2218
    %3003 = vmatpush2.msra.mxu0 %v2217
    %3004 = vmatprep.subr.mxu0 %v2210
    %3005 = vmatpush2.msra.mxu0 %v2209
    %3006 = vmatprep.subr.mxu0 %v2202
    %3007 = vmatpush2.msra.mxu0 %v2201
    %3008 = vmatprep.mubr.f32.mxu0 %v1789
    %3009 = vmatmul.mubr.f32.gmra.mxu0 %v1788
    %v3010 = vpop.f32.mrf.mxu0
    %v3011 = vadd.f32 %v2934, %v3010
    %v3012 = vpop.f32.mrf.mxu0
    %v3013 = vadd.f32 %v2936, %v3012
    %3014 = vmatprep.mubr.f32.mxu0 %v1812
    %3015 = vmatmul.mubr.f32.gmra.mxu0 %v1811
    %v3016 = vpop.f32.mrf.mxu0
    %v3017 = vadd.f32 %v2940, %v3016
    %v3018 = vpop.f32.mrf.mxu0
    %v3019 = vadd.f32 %v2942, %v3018
    %3020 = vdwg.mxu0
    %3021 = vmatprep.subr.mxu0 0.0
    %3022 = vmatpush1.msra.mxu0 0.0
    %3023 = vmatprep.subr.mxu0 0.0
    %3024 = vmatpush1.msra.mxu0 0.0
    %3025 = vmatprep.subr.mxu0 0.0
    %3026 = vmatpush1.msra.mxu0 0.0
    %3027 = vmatprep.subr.mxu0 0.0
    %3028 = vmatpush1.msra.mxu0 0.0
    %3029 = vmatprep.subr.mxu0 0.0
    %3030 = vmatpush1.msra.mxu0 0.0
    %3031 = vmatprep.subr.mxu0 0.0
    %3032 = vmatpush1.msra.mxu0 0.0
    %3033 = vmatprep.subr.mxu0 0.0
    %3034 = vmatpush1.msra.mxu0 0.0
    %3035 = vmatprep.subr.mxu0 0.0
    %3036 = vmatpush1.msra.mxu0 0.0
    %3037 = vmatprep.subr.mxu0 %v2386
    %3038 = vmatpush1.msra.mxu0 %v2385
    %3039 = vmatprep.subr.mxu0 %v2378
    %3040 = vmatpush1.msra.mxu0 %v2377
    %3041 = vmatprep.subr.mxu0 %v2370
    %3042 = vmatpush1.msra.mxu0 %v2369
    %3043 = vmatprep.subr.mxu0 %v2362
    %3044 = vmatpush1.msra.mxu0 %v2361
    %3045 = vmatprep.subr.mxu0 %v2354
    %3046 = vmatpush1.msra.mxu0 %v2353
    %3047 = vmatprep.subr.mxu0 %v2346
    %3048 = vmatpush1.msra.mxu0 %v2345
    %3049 = vmatprep.subr.mxu0 %v2338
    %3050 = vmatpush1.msra.mxu0 %v2337
    %3051 = vmatprep.subr.mxu0 %v2330
    %3052 = vmatpush1.msra.mxu0 %v2329
    %3053 = vmatprep.subr.mxu0 0.0
    %3054 = vmatpush2.msra.mxu0 0.0
    %3055 = vmatprep.subr.mxu0 0.0
    %3056 = vmatpush2.msra.mxu0 0.0
    %3057 = vmatprep.subr.mxu0 0.0
    %3058 = vmatpush2.msra.mxu0 0.0
    %3059 = vmatprep.subr.mxu0 0.0
    %3060 = vmatpush2.msra.mxu0 0.0
    %3061 = vmatprep.subr.mxu0 0.0
    %3062 = vmatpush2.msra.mxu0 0.0
    %3063 = vmatprep.subr.mxu0 0.0
    %3064 = vmatpush2.msra.mxu0 0.0
    %3065 = vmatprep.subr.mxu0 0.0
    %3066 = vmatpush2.msra.mxu0 0.0
    %3067 = vmatprep.subr.mxu0 0.0
    %3068 = vmatpush2.msra.mxu0 0.0
    %3069 = vmatprep.subr.mxu0 0.0
    %3070 = vmatpush2.msra.mxu0 0.0
    %3071 = vmatprep.subr.mxu0 0.0
    %3072 = vmatpush2.msra.mxu0 0.0
    %3073 = vmatprep.subr.mxu0 0.0
    %3074 = vmatpush2.msra.mxu0 0.0
    %3075 = vmatprep.subr.mxu0 0.0
    %3076 = vmatpush2.msra.mxu0 0.0
    %3077 = vmatprep.subr.mxu0 0.0
    %3078 = vmatpush2.msra.mxu0 0.0
    %3079 = vmatprep.subr.mxu0 0.0
    %3080 = vmatpush2.msra.mxu0 0.0
    %3081 = vmatprep.subr.mxu0 0.0
    %3082 = vmatpush2.msra.mxu0 0.0
    %3083 = vmatprep.subr.mxu0 0.0
    %3084 = vmatpush2.msra.mxu0 0.0
    %3085 = vmatprep.mubr.f32.mxu0 0.0
    %3086 = vmatmul.mubr.f32.gmra.mxu0 %v2401
    %v3087 = vpop.f32.mrf.mxu0
    %v3088 = vadd.f32 %v3011, %v3087
    %v3089 = vpop.f32.mrf.mxu0
    %v3090 = vadd.f32 %v3013, %v3089
    %3091 = vmatprep.mubr.f32.mxu0 0.0
    %3092 = vmatmul.mubr.f32.gmra.mxu0 %v2403
    %v3093 = vpop.f32.mrf.mxu0
    %v3094 = vadd.f32 %v3017, %v3093
    %v3095 = vpop.f32.mrf.mxu0
    %v3096 = vadd.f32 %v3019, %v3095
    %3097 = vdwg.mxu0
    %3098 = vmatprep.subr.mxu0 %v1940
    %3099 = vmatpush1.msra.mxu0 %v1939
    %3100 = vmatprep.subr.mxu0 %v1932
    %3101 = vmatpush1.msra.mxu0 %v1931
    %3102 = vmatprep.subr.mxu0 %v1924
    %3103 = vmatpush1.msra.mxu0 %v1923
    %3104 = vmatprep.subr.mxu0 %v1916
    %3105 = vmatpush1.msra.mxu0 %v1915
    %3106 = vmatprep.subr.mxu0 %v1908
    %3107 = vmatpush1.msra.mxu0 %v1907
    %3108 = vmatprep.subr.mxu0 %v1900
    %3109 = vmatpush1.msra.mxu0 %v1899
    %3110 = vmatprep.subr.mxu0 %v1892
    %3111 = vmatpush1.msra.mxu0 %v1891
    %3112 = vmatprep.subr.mxu0 %v1884
    %3113 = vmatpush1.msra.mxu0 %v1883
    %3114 = vmatprep.subr.mxu0 %v1876
    %3115 = vmatpush1.msra.mxu0 %v1875
    %3116 = vmatprep.subr.mxu0 %v1868
    %3117 = vmatpush1.msra.mxu0 %v1867
    %3118 = vmatprep.subr.mxu0 %v1860
    %3119 = vmatpush1.msra.mxu0 %v1859
    %3120 = vmatprep.subr.mxu0 %v1852
    %3121 = vmatpush1.msra.mxu0 %v1851
    %3122 = vmatprep.subr.mxu0 %v1844
    %3123 = vmatpush1.msra.mxu0 %v1843
    %3124 = vmatprep.subr.mxu0 %v1836
    %3125 = vmatpush1.msra.mxu0 %v1835
    %3126 = vmatprep.subr.mxu0 %v1828
    %3127 = vmatpush1.msra.mxu0 %v1827
    %3128 = vmatprep.subr.mxu0 %v1820
    %3129 = vmatpush1.msra.mxu0 %v1819
    %3130 = vmatprep.subr.mxu0 %v2068
    %3131 = vmatpush2.msra.mxu0 %v2067
    %3132 = vmatprep.subr.mxu0 %v2060
    %3133 = vmatpush2.msra.mxu0 %v2059
    %3134 = vmatprep.subr.mxu0 %v2052
    %3135 = vmatpush2.msra.mxu0 %v2051
    %3136 = vmatprep.subr.mxu0 %v2044
    %3137 = vmatpush2.msra.mxu0 %v2043
    %3138 = vmatprep.subr.mxu0 %v2036
    %3139 = vmatpush2.msra.mxu0 %v2035
    %3140 = vmatprep.subr.mxu0 %v2028
    %3141 = vmatpush2.msra.mxu0 %v2027
    %3142 = vmatprep.subr.mxu0 %v2020
    %3143 = vmatpush2.msra.mxu0 %v2019
    %3144 = vmatprep.subr.mxu0 %v2012
    %3145 = vmatpush2.msra.mxu0 %v2011
    %3146 = vmatprep.subr.mxu0 %v2004
    %3147 = vmatpush2.msra.mxu0 %v2003
    %3148 = vmatprep.subr.mxu0 %v1996
    %3149 = vmatpush2.msra.mxu0 %v1995
    %3150 = vmatprep.subr.mxu0 %v1988
    %3151 = vmatpush2.msra.mxu0 %v1987
    %3152 = vmatprep.subr.mxu0 %v1980
    %3153 = vmatpush2.msra.mxu0 %v1979
    %3154 = vmatprep.subr.mxu0 %v1972
    %3155 = vmatpush2.msra.mxu0 %v1971
    %3156 = vmatprep.subr.mxu0 %v1964
    %3157 = vmatpush2.msra.mxu0 %v1963
    %3158 = vmatprep.subr.mxu0 %v1956
    %3159 = vmatpush2.msra.mxu0 %v1955
    %3160 = vmatprep.subr.mxu0 %v1948
    %3161 = vmatpush2.msra.mxu0 %v1947
    %3162 = vmatprep.mubr.f32.mxu0 %v1787
    %3163 = vmatmul.mubr.f32.gmra.mxu0 %v1786
    %v3164 = vpop.f32.mrf.mxu0
    %v3165 = vadd.f32 %v2394, %v3164
    %v3166 = vpop.f32.mrf.mxu0
    %v3167 = vadd.f32 %v2394, %v3166
    %3168 = vmatprep.mubr.f32.mxu0 %v1810
    %3169 = vmatmul.mubr.f32.gmra.mxu0 %v1809
    %v3170 = vpop.f32.mrf.mxu0
    %v3171 = vadd.f32 %v2399, %v3170
    %v3172 = vpop.f32.mrf.mxu0
    %v3173 = vadd.f32 %v2399, %v3172
    %3174 = vdwg.mxu0
    %3175 = vmatprep.subr.mxu0 %v2196
    %3176 = vmatpush1.msra.mxu0 %v2195
    %3177 = vmatprep.subr.mxu0 %v2188
    %3178 = vmatpush1.msra.mxu0 %v2187
    %3179 = vmatprep.subr.mxu0 %v2180
    %3180 = vmatpush1.msra.mxu0 %v2179
    %3181 = vmatprep.subr.mxu0 %v2172
    %3182 = vmatpush1.msra.mxu0 %v2171
    %3183 = vmatprep.subr.mxu0 %v2164
    %3184 = vmatpush1.msra.mxu0 %v2163
    %3185 = vmatprep.subr.mxu0 %v2156
    %3186 = vmatpush1.msra.mxu0 %v2155
    %3187 = vmatprep.subr.mxu0 %v2148
    %3188 = vmatpush1.msra.mxu0 %v2147
    %3189 = vmatprep.subr.mxu0 %v2140
    %3190 = vmatpush1.msra.mxu0 %v2139
    %3191 = vmatprep.subr.mxu0 %v2132
    %3192 = vmatpush1.msra.mxu0 %v2131
    %3193 = vmatprep.subr.mxu0 %v2124
    %3194 = vmatpush1.msra.mxu0 %v2123
    %3195 = vmatprep.subr.mxu0 %v2116
    %3196 = vmatpush1.msra.mxu0 %v2115
    %3197 = vmatprep.subr.mxu0 %v2108
    %3198 = vmatpush1.msra.mxu0 %v2107
    %3199 = vmatprep.subr.mxu0 %v2100
    %3200 = vmatpush1.msra.mxu0 %v2099
    %3201 = vmatprep.subr.mxu0 %v2092
    %3202 = vmatpush1.msra.mxu0 %v2091
    %3203 = vmatprep.subr.mxu0 %v2084
    %3204 = vmatpush1.msra.mxu0 %v2083
    %3205 = vmatprep.subr.mxu0 %v2076
    %3206 = vmatpush1.msra.mxu0 %v2075
    %3207 = vmatprep.subr.mxu0 %v2324
    %3208 = vmatpush2.msra.mxu0 %v2323
    %3209 = vmatprep.subr.mxu0 %v2316
    %3210 = vmatpush2.msra.mxu0 %v2315
    %3211 = vmatprep.subr.mxu0 %v2308
    %3212 = vmatpush2.msra.mxu0 %v2307
    %3213 = vmatprep.subr.mxu0 %v2300
    %3214 = vmatpush2.msra.mxu0 %v2299
    %3215 = vmatprep.subr.mxu0 %v2292
    %3216 = vmatpush2.msra.mxu0 %v2291
    %3217 = vmatprep.subr.mxu0 %v2284
    %3218 = vmatpush2.msra.mxu0 %v2283
    %3219 = vmatprep.subr.mxu0 %v2276
    %3220 = vmatpush2.msra.mxu0 %v2275
    %3221 = vmatprep.subr.mxu0 %v2268
    %3222 = vmatpush2.msra.mxu0 %v2267
    %3223 = vmatprep.subr.mxu0 %v2260
    %3224 = vmatpush2.msra.mxu0 %v2259
    %3225 = vmatprep.subr.mxu0 %v2252
    %3226 = vmatpush2.msra.mxu0 %v2251
    %3227 = vmatprep.subr.mxu0 %v2244
    %3228 = vmatpush2.msra.mxu0 %v2243
    %3229 = vmatprep.subr.mxu0 %v2236
    %3230 = vmatpush2.msra.mxu0 %v2235
    %3231 = vmatprep.subr.mxu0 %v2228
    %3232 = vmatpush2.msra.mxu0 %v2227
    %3233 = vmatprep.subr.mxu0 %v2220
    %3234 = vmatpush2.msra.mxu0 %v2219
    %3235 = vmatprep.subr.mxu0 %v2212
    %3236 = vmatpush2.msra.mxu0 %v2211
    %3237 = vmatprep.subr.mxu0 %v2204
    %3238 = vmatpush2.msra.mxu0 %v2203
    %3239 = vmatprep.mubr.f32.mxu0 %v1789
    %3240 = vmatmul.mubr.f32.gmra.mxu0 %v1788
    %v3241 = vpop.f32.mrf.mxu0
    %v3242 = vadd.f32 %v3165, %v3241
    %v3243 = vpop.f32.mrf.mxu0
    %v3244 = vadd.f32 %v3167, %v3243
    %3245 = vmatprep.mubr.f32.mxu0 %v1812
    %3246 = vmatmul.mubr.f32.gmra.mxu0 %v1811
    %v3247 = vpop.f32.mrf.mxu0
    %v3248 = vadd.f32 %v3171, %v3247
    %v3249 = vpop.f32.mrf.mxu0
    %v3250 = vadd.f32 %v3173, %v3249
    %3251 = vdwg.mxu0
    %3252 = vmatprep.subr.mxu0 0.0
    %3253 = vmatpush1.msra.mxu0 0.0
    %3254 = vmatprep.subr.mxu0 0.0
    %3255 = vmatpush1.msra.mxu0 0.0
    %3256 = vmatprep.subr.mxu0 0.0
    %3257 = vmatpush1.msra.mxu0 0.0
    %3258 = vmatprep.subr.mxu0 0.0
    %3259 = vmatpush1.msra.mxu0 0.0
    %3260 = vmatprep.subr.mxu0 0.0
    %3261 = vmatpush1.msra.mxu0 0.0
    %3262 = vmatprep.subr.mxu0 0.0
    %3263 = vmatpush1.msra.mxu0 0.0
    %3264 = vmatprep.subr.mxu0 0.0
    %3265 = vmatpush1.msra.mxu0 0.0
    %3266 = vmatprep.subr.mxu0 0.0
    %3267 = vmatpush1.msra.mxu0 0.0
    %3268 = vmatprep.subr.mxu0 %v2388
    %3269 = vmatpush1.msra.mxu0 %v2387
    %3270 = vmatprep.subr.mxu0 %v2380
    %3271 = vmatpush1.msra.mxu0 %v2379
    %3272 = vmatprep.subr.mxu0 %v2372
    %3273 = vmatpush1.msra.mxu0 %v2371
    %3274 = vmatprep.subr.mxu0 %v2364
    %3275 = vmatpush1.msra.mxu0 %v2363
    %3276 = vmatprep.subr.mxu0 %v2356
    %3277 = vmatpush1.msra.mxu0 %v2355
    %3278 = vmatprep.subr.mxu0 %v2348
    %3279 = vmatpush1.msra.mxu0 %v2347
    %3280 = vmatprep.subr.mxu0 %v2340
    %3281 = vmatpush1.msra.mxu0 %v2339
    %3282 = vmatprep.subr.mxu0 %v2332
    %3283 = vmatpush1.msra.mxu0 %v2331
    %3284 = vmatprep.subr.mxu0 0.0
    %3285 = vmatpush2.msra.mxu0 0.0
    %3286 = vmatprep.subr.mxu0 0.0
    %3287 = vmatpush2.msra.mxu0 0.0
    %3288 = vmatprep.subr.mxu0 0.0
    %3289 = vmatpush2.msra.mxu0 0.0
    %3290 = vmatprep.subr.mxu0 0.0
    %3291 = vmatpush2.msra.mxu0 0.0
    %3292 = vmatprep.subr.mxu0 0.0
    %3293 = vmatpush2.msra.mxu0 0.0
    %3294 = vmatprep.subr.mxu0 0.0
    %3295 = vmatpush2.msra.mxu0 0.0
    %3296 = vmatprep.subr.mxu0 0.0
    %3297 = vmatpush2.msra.mxu0 0.0
    %3298 = vmatprep.subr.mxu0 0.0
    %3299 = vmatpush2.msra.mxu0 0.0
    %3300 = vmatprep.subr.mxu0 0.0
    %3301 = vmatpush2.msra.mxu0 0.0
    %3302 = vmatprep.subr.mxu0 0.0
    %3303 = vmatpush2.msra.mxu0 0.0
    %3304 = vmatprep.subr.mxu0 0.0
    %3305 = vmatpush2.msra.mxu0 0.0
    %3306 = vmatprep.subr.mxu0 0.0
    %3307 = vmatpush2.msra.mxu0 0.0
    %3308 = vmatprep.subr.mxu0 0.0
    %3309 = vmatpush2.msra.mxu0 0.0
    %3310 = vmatprep.subr.mxu0 0.0
    %3311 = vmatpush2.msra.mxu0 0.0
    %3312 = vmatprep.subr.mxu0 0.0
    %3313 = vmatpush2.msra.mxu0 0.0
    %3314 = vmatprep.subr.mxu0 0.0
    %3315 = vmatpush2.msra.mxu0 0.0
    %3316 = vmatprep.mubr.f32.mxu0 0.0
    %3317 = vmatmul.mubr.f32.gmra.mxu0 %v2401
    %v3318 = vpop.f32.mrf.mxu0
    %v3319 = vadd.f32 %v3242, %v3318
    %v3320 = vpop.f32.mrf.mxu0
    %v3321 = vadd.f32 %v3244, %v3320
    %3322 = vmatprep.mubr.f32.mxu0 0.0
    %3323 = vmatmul.mubr.f32.gmra.mxu0 %v2403
    %v3324 = vpop.f32.mrf.mxu0
    %v3325 = vadd.f32 %v3248, %v3324
    %v3326 = vpop.f32.mrf.mxu0
    %v3327 = vadd.f32 %v3250, %v3326
    %3328 = vdwg.mxu0
    %v3329 = vmax.f32 %v2626, 0.0
    %v3330 = vmax.f32 %v2628, 0.0
    %v3331 = vmax.f32 %v2857, 0.0
    %v3332 = vmax.f32 %v2859, 0.0
    %v3333 = vmax.f32 %v3088, 0.0
    %v3334 = vmax.f32 %v3090, 0.0
    %v3335 = vmax.f32 %v3319, 0.0
    %v3336 = vmax.f32 %v3321, 0.0
    %v3337 = vmax.f32 %v2632, 0.0
    %v3338 = vmax.f32 %v2634, 0.0
    %v3339 = vmax.f32 %v2863, 0.0
    %v3340 = vmax.f32 %v2865, 0.0
    %v3341 = vmax.f32 %v3094, 0.0
    %v3342 = vmax.f32 %v3096, 0.0
    %v3343 = vmax.f32 %v3325, 0.0
    %v3344 = vmax.f32 %v3327, 0.0
    %3345 = vst [vmem:[#allocation8] sm:$0xff] %v3329
    %3346 = vst [vmem:[#allocation8 + $0x8] sm:$0xff] %v3330
    %3347 = vst [vmem:[#allocation8 + $0x10] sm:$0xff] %v3331
    %3348 = vst [vmem:[#allocation8 + $0x18] sm:$0xff] %v3332
    %3349 = vst [vmem:[#allocation8 + $0x20] sm:$0xff] %v3333
    %3350 = vst [vmem:[#allocation8 + $0x28] sm:$0xff] %v3334
    %3351 = vst [vmem:[#allocation8 + $0x30] sm:$0xff] %v3335
    %3352 = vst [vmem:[#allocation8 + $0x38] sm:$0xff] %v3336
    %3353 = vst [vmem:[#allocation8 + $0x40] sm:$0xff] %v3337
    %3354 = vst [vmem:[#allocation8 + $0x48] sm:$0xff] %v3338
    %3355 = vst [vmem:[#allocation8 + $0x50] sm:$0xff] %v3339
    %3356 = vst [vmem:[#allocation8 + $0x58] sm:$0xff] %v3340
    %3357 = vst [vmem:[#allocation8 + $0x60] sm:$0xff] %v3341
    %3358 = vst [vmem:[#allocation8 + $0x68] sm:$0xff] %v3342
    %3359 = vst [vmem:[#allocation8 + $0x70] sm:$0xff] %v3343
    %3360 = vst [vmem:[#allocation8 + $0x78] sm:$0xff] %v3344
    // Predicated region
    $region50: #{tpu_custom_call.1} parent=1 // pred_check
      _
    $region51: #{tpu_custom_call.1} parent=1 // pred_check_branch
      %3362 = sbr.rel (0) target = $region53
    $region52: #{tpu_custom_call.1} parent=1 // pred_region
      %s3364 = ssub.s32 2048, 2048
      %3365 = vsyncadd [#allocation4], %s3364
      %s3366 = sshll.u32 [#allocation8], 4
      %s3367 = int_to_ptr.vmem [resolvable:$true] %s3366
      %3372 = dma.vmem_to_hbm [thread:$0]  %s3367, 2048, %s9, [#allocation4], 1024, 1024, 64
    $region53: #{tpu_custom_call.1} parent=1 // pred_fallthru
      _
    // Predicated region
    $region54: #{tpu_custom_call.1} parent=1 // pred_check
      _
    $region55: #{tpu_custom_call.1} parent=1 // pred_check_branch
      %3374 = sbr.rel (0) target = $region57
    $region56: #{tpu_custom_call.1} parent=1 // pred_region
      %3375 = dma.done [#allocation4], 2048
    $region57: #{tpu_custom_call.1} parent=1 // pred_fallthru
      _
    %3376 = vsyncpa [#allocation3], 1
    %3377 = vsyncpa [#allocation6], 1
    %3378 = vsyncpa [#allocation4], 1

</llo_original>
